<compile_context>
chip_gen: v7x
topology: tpu7x:2x2x1
jax: 0.10.0
libtpu: 0.0.40
codegen_flags: <defaults>
</compile_context>

<pallas_src>
import functools

import jax
import jax.numpy as jnp
import numpy as np
from jax.experimental import pallas as pl
from jax.experimental.pallas import tpu as pltpu


# ----------------------------------------------------------------------------
# Pallas kernel: one batch tile (bt rows) fully resident in VMEM.
# ----------------------------------------------------------------------------
def _ts_lstm_kernel(x_ref, w_ref, b_ref, out_ref, comb_ref, *, d, h, o):
    f32 = jnp.float32
    H2, H4, H6, H8 = 2 * h, 4 * h, 6 * h, 8 * h

    # Row offsets inside the packed weight slab (lane width = 8h).
    r_in = 0            # fused input weight      (d , 8h)
    r_l1 = d            # LSTM layer-1 gates      (2h, 6h)  cols [0, 6h)
    r_c = d + H2        # combine_fc              (4h, h )  cols [0, h)
    r_d2 = d + H2       # deep_fc2                (h , h )  cols [h, 2h)
    r_o = d + H2        # output_fc               (h , o )  cols [2h, 2h+o)

    # Column offsets inside the packed bias row.
    c_in, c_d2, c_l1, c_c, c_o = 0, H8, 9 * h, 15 * h, 16 * h

    x = x_ref[...].astype(f32)

    # --- 1. ONE fused MXU pass for everything fed by x (BN folded in) -------
    # columns: [direct(h) | deep1(h) | i_f i_b o_f o_b (4h) | g_f g_b (2h)]
    fused = (jnp.dot(x, w_ref[r_in:r_in + d, :H8], preferred_element_type=f32)
             + b_ref[:, c_in:c_in + H8])

    dd = jnp.maximum(fused[:, :H2], 0.0)       # relu on direct & deep1 together
    direct = dd[:, :h]
    deep1 = dd[:, h:H2]

    # --- 2. LSTM layer 0, both directions at once (f gate dead: c0 == 0) ----
    # Single lane-dense sigmoid over the contiguous [i_f i_b o_f o_b] block.
    sg0 = jax.nn.sigmoid(fused[:, H2:H6])               # (bt, 4h)
    tg0 = jnp.tanh(fused[:, H6:H8])                      # (bt, 2h)
    l0 = sg0[:, H2:H4] * jnp.tanh(sg0[:, :H2] * tg0)     # (bt, 2h) = [h0_f | h0_b]

    # --- 3. deep_fc2 ---------------------------------------------------------
    deep = jnp.maximum(
        jnp.dot(deep1, w_ref[r_d2:r_d2 + h, h:H2], preferred_element_type=f32)
        + b_ref[:, c_d2:c_d2 + h], 0.0)

    # --- 4. LSTM layer 1, both directions as ONE matmul ----------------------
    g1 = (jnp.dot(l0, w_ref[r_l1:r_l1 + H2, :H6], preferred_element_type=f32)
          + b_ref[:, c_l1:c_l1 + H6])
    sg1 = jax.nn.sigmoid(g1[:, :H4])                     # dense [i_f i_b o_f o_b]
    tg1 = jnp.tanh(g1[:, H4:H6])                         # [g_f g_b]
    lstm = sg1[:, H2:H4] * jnp.tanh(sg1[:, :H2] * tg1)   # (bt, 2h) = [h1_f | h1_b]

    # --- 5. combine_fc: stage [direct|deep|lstm] into VMEM scratch, ONE dot ---
    comb_ref[:, :h] = direct
    comb_ref[:, h:H2] = deep
    comb_ref[:, H2:H4] = lstm
    comb = jnp.maximum(
        jnp.dot(comb_ref[...], w_ref[r_c:r_c + H4, :h], preferred_element_type=f32)
        + b_ref[:, c_c:c_c + h], 0.0)

    # --- 6. output_fc (dropout identity in eval); output is NOT lane-padded ---
    out = (jnp.dot(comb, w_ref[r_o:r_o + h, H2:H2 + o], preferred_element_type=f32)
           + b_ref[:, c_o:c_o + o])
    out_ref[...] = out.astype(out_ref.dtype)


# ----------------------------------------------------------------------------
# Wrapper: batch-tiled grid (kept a multiple of 2 for v7x megacore), weights
# and biases resident (constant block index).
# ----------------------------------------------------------------------------
def _round_up(n, m):
    return ((n + m - 1) // m) * m


def _cdiv(a, b):
    return -(-a // b)


@functools.partial(jax.jit, static_argnames=(
    "input_dim", "hidden_dim", "output_dim", "max_block_b"))
def time_series_lstm_forward(x, w_packed, b_packed, *, input_dim, hidden_dim,
                             output_dim, max_block_b=1024):
    b = x.shape[0]
    d, h, o = input_dim, hidden_dim, output_dim

    bp8 = _round_up(b, 8)
    # As few grid steps as possible (step overhead dominates at this FLOP/row),
    # but keep the grid a multiple of 2 so v7x's two TensorCores split evenly.
    ntiles = max(1, _cdiv(bp8, max_block_b))
    if bp8 > 8 and ntiles < 2:
        ntiles = 2
    if ntiles > 1 and ntiles % 2:
        ntiles += 1
    bt = _round_up(_cdiv(bp8, ntiles), 8)
    bp = ntiles * bt
    xp = jnp.pad(x, ((0, bp - b), (0, 0))) if bp != b else x

    kernel = functools.partial(_ts_lstm_kernel, d=d, h=h, o=o)
    out = pl.pallas_call(
        kernel,
        grid=(ntiles,),
        in_specs=[
            pl.BlockSpec((bt, d), lambda i: (i, 0)),          # batch tile of x
            pl.BlockSpec(w_packed.shape, lambda i: (0, 0)),   # weights: fetched once
            pl.BlockSpec(b_packed.shape, lambda i: (0, 0)),   # biases:  fetched once
        ],
        out_specs=pl.BlockSpec((bt, o), lambda i: (i, 0)),    # un-padded output
        out_shape=jax.ShapeDtypeStruct((bp, o), jnp.float32),
        scratch_shapes=[pltpu.VMEM((bt, 4 * h), jnp.float32)],  # combine staging
        compiler_params=pltpu.CompilerParams(
            dimension_semantics=("parallel",)),   # batch tiles split across TCs
    )(xp, w_packed, b_packed)
    return out[:b]


# ----------------------------------------------------------------------------
# Parameter construction (PyTorch-equivalent layout) + packing for the kernel.
# ----------------------------------------------------------------------------
def make_params(key, input_dim, hidden_dim, output_dim):
    ks = jax.random.split(key, 16)
    d, h, o = input_dim, hidden_dim, output_dim

    def lin(k, fan_in, fan_out):
        # Kaiming-style scale; exact init distribution only needs determinism.
        return jax.random.normal(k, (fan_in, fan_out), jnp.float32) * np.sqrt(
            2.0 / fan_in)

    # BatchNorm1d (eval): gamma=1, beta=0, running_mean=0, running_var=1.
    eps = 1e-5
    gamma = jnp.ones((1, d), jnp.float32)
    beta = jnp.zeros((1, d), jnp.float32)
    run_mean = jnp.zeros((1, d), jnp.float32)
    run_var = jnp.ones((1, d), jnp.float32)
    bn_scale = gamma / jnp.sqrt(run_var + eps)
    bn_shift = beta - run_mean * bn_scale

    return dict(
        bn_scale=bn_scale, bn_shift=bn_shift,
        # direct / deep pathways
        wd=lin(ks[0], d, h), bd=jnp.zeros((1, h), jnp.float32),
        w1=lin(ks[1], d, h), b1=jnp.zeros((1, h), jnp.float32),
        w2=lin(ks[2], h, h), b2=jnp.zeros((1, h), jnp.float32),
        # LSTM input->hidden weights (transposed), PyTorch gate order (i,f,g,o).
        # Biases here are the folded sum b_ih + b_hh (both zero-init in the
        # module -- when real trained weights are loaded they MUST be summed).
        wl0f=lin(ks[3], d, 4 * h), bl0f=jnp.zeros((1, 4 * h), jnp.float32),
        wl0b=lin(ks[4], d, 4 * h), bl0b=jnp.zeros((1, 4 * h), jnp.float32),
        wl1f=lin(ks[5], 2 * h, 4 * h), bl1f=jnp.zeros((1, 4 * h), jnp.float32),
        wl1b=lin(ks[6], 2 * h, 4 * h), bl1b=jnp.zeros((1, 4 * h), jnp.float32),
        # combine / output heads
        wc=lin(ks[7], 4 * h, h), bc=jnp.zeros((1, h), jnp.float32),
        wo=lin(ks[8], h, o), bo=jnp.zeros((1, o), jnp.float32),
    )


def pack_params(p, input_dim, hidden_dim, output_dim):
    """Pack all parameters into one weight slab + one bias row.

    * forget-gate columns are dropped (dead: c0 == 0, seq_len == 1),
    * gates grouped so [i_f i_b o_f o_b] is lane-contiguous (one wide sigmoid),
    * BatchNorm (eval) is folded into the fused input weight/bias,
    * deep_fc2 / output_fc share the unused lanes of the combine-weight rows.
    Slab shape: (d + 6h, 8h).  Bias row: (1, 16h + o).
    """
    d, h, o = input_dim, hidden_dim, output_dim
    H2, H4 = 2 * h, 4 * h
    lanes = 8 * h
    assert o <= 6 * h, "output_dim must fit next to deep_fc2 in the combine rows"

    s = p["bn_scale"].reshape(1, d)
    t = p["bn_shift"].reshape(1, d)

    def igo(w, b):  # drop f gate; keep (i, g, o) blocks (PyTorch order i,f,g,o)
        return ((w[:, 0:h], w[:, 2 * h:3 * h], w[:, 3 * h:4 * h]),
                (b[:, 0:h], b[:, 2 * h:3 * h], b[:, 3 * h:4 * h]))

    (w0fi, w0fg, w0fo), (b0fi, b0fg, b0fo) = igo(p["wl0f"], p["bl0f"])
    (w0bi, w0bg, w0bo), (b0bi, b0bg, b0bo) = igo(p["wl0b"], p["bl0b"])
    (w1fi, w1fg, w1fo), (b1fi, b1fg, b1fo) = igo(p["wl1f"], p["bl1f"])
    (w1bi, w1bg, w1bo), (b1bi, b1bg, b1bo) = igo(p["wl1b"], p["bl1b"])

    # Fused input weight (d, 8h): [direct | deep1 | i_f i_b o_f o_b | g_f g_b]
    w_in = jnp.concatenate(
        [p["wd"], p["w1"], w0fi, w0bi, w0fo, w0bo, w0fg, w0bg], axis=1)
    b_in = jnp.concatenate(
        [p["bd"], p["b1"], b0fi, b0bi, b0fo, b0bo, b0fg, b0bg], axis=1)
    # Fold BN (xn = x*s + t):  xn @ W + b  ==  x @ (s^T * W) + (t @ W + b)
    b_in = b_in + jnp.dot(t, w_in)          # uses the UNSCALED w_in (correct)
    w_in = s.reshape(d, 1) * w_in

    # Fused layer-1 gate weight (2h, 6h): [i_f i_b o_f o_b | g_f g_b]
    w_l1 = jnp.concatenate([w1fi, w1bi, w1fo, w1bo, w1fg, w1bg], axis=1)
    b_l1 = jnp.concatenate([b1fi, b1bi, b1fo, b1bo, b1fg, b1bg], axis=1)

    # Combine rows (4h, 8h): wc in cols [0,h); deep_fc2 in cols [h,2h);
    # output_fc in cols [2h, 2h+o); remaining lanes zero.
    blkC = jnp.zeros((H4, lanes), jnp.float32)
    blkC = blkC.at[:, 0:h].set(p["wc"])
    blkC = blkC.at[0:h, h:H2].set(p["w2"])
    blkC = blkC.at[0:h, H2:H2 + o].set(p["wo"])

    def pad_cols(w):
        return jnp.pad(w, ((0, 0), (0, lanes - w.shape[1])))

    w_packed = jnp.concatenate([
        pad_cols(w_in),      # rows 0        : d
        pad_cols(w_l1),      # rows d        : d + 2h
        blkC,                # rows d + 2h   : d + 6h
    ], axis=0)
    b_packed = jnp.concatenate([b_in, p["b2"], b_l1, p["bc"], p["bo"]], axis=1)
    return w_packed, b_packed


# ----------------------------------------------------------------------------
# Pure-JAX reference (mirrors the PyTorch module math) for validation.
# ----------------------------------------------------------------------------
def reference_forward(x, p):
    xn = x * p["bn_scale"] + p["bn_shift"]
    relu = lambda v: jnp.maximum(v, 0.0)
    direct = relu(xn @ p["wd"] + p["bd"])
    deep = relu(relu(xn @ p["w1"] + p["b1"]) @ p["w2"] + p["b2"])

    def cell(inp, w, b):  # seq_len == 1, h0 = c0 = 0 -> f gate has no effect
        g = inp @ w + b
        h = g.shape[-1] // 4
        i = jax.nn.sigmoid(g[:, :h])
        gg = jnp.tanh(g[:, 2 * h:3 * h])
        o = jax.nn.sigmoid(g[:, 3 * h:])
        return o * jnp.tanh(i * gg)

    l0 = jnp.concatenate(
        [cell(xn, p["wl0f"], p["bl0f"]), cell(xn, p["wl0b"], p["bl0b"])], -1)
    lstm_out = jnp.concatenate(
        [cell(l0, p["wl1f"], p["bl1f"]), cell(l0, p["wl1b"], p["bl1b"])], -1)
    combined = jnp.concatenate([direct, deep, lstm_out], -1)
    comb = relu(combined @ p["wc"] + p["bc"])
    return comb @ p["wo"] + p["bo"]


if __name__ == "__main__":
    INPUT_DIM, HIDDEN_DIM, OUTPUT_DIM, BATCH = 8, 32, 2, 512

    key = jax.random.PRNGKey(0)
    k_x, k_p = jax.random.split(key)
    x = jax.random.normal(k_x, (BATCH, INPUT_DIM), jnp.float32)
    params = make_params(k_p, INPUT_DIM, HIDDEN_DIM, OUTPUT_DIM)
    w_packed, b_packed = pack_params(params, INPUT_DIM, HIDDEN_DIM, OUTPUT_DIM)

    out = time_series_lstm_forward(
        x, w_packed, b_packed,
        input_dim=INPUT_DIM, hidden_dim=HIDDEN_DIM, output_dim=OUTPUT_DIM,
        max_block_b=1024)       # BATCH=512 -> grid=2 tiles of 256 rows
    out = jax.block_until_ready(out)

    ref = reference_forward(x, params)
    np.testing.assert_allclose(np.asarray(out), np.asarray(ref),
                               rtol=2e-3, atol=2e-3)
    assert out.shape == (BATCH, OUTPUT_DIM)
    print("KERNEL_OK")
</pallas_src>

<mosaic_0001>
module attributes {stable_mosaic.version = 11 : i64} {
  func.func @_ts_lstm_kernel(%arg0: i32, %arg1: memref<256x8xf32, #tpu.memory_space<vmem>>, %arg2: memref<200x256xf32, #tpu.memory_space<vmem>>, %arg3: memref<1x514xf32, #tpu.memory_space<vmem>>, %arg4: memref<256x2xf32, #tpu.memory_space<vmem>>, %arg5: memref<256x128xf32, #tpu.memory_space<vmem>>) attributes {dimension_semantics = [#tpu.dimension_semantics<parallel>], iteration_bounds = array<i64: 2>, scalar_prefetch = 0 : i64, scratch_operands = 1 : i64, tpu.core_type = #tpu.core_type<tc>, window_params = [{transform_indices = @transform_0, window_bounds = array<i64: 256, 8>}, {pipeline_mode = #tpu.pipeline_mode<synchronous>, transform_indices = @transform_1, window_bounds = array<i64: 200, 256>}, {pipeline_mode = #tpu.pipeline_mode<synchronous>, transform_indices = @transform_2, window_bounds = array<i64: 1, 514>}, {transform_indices = @transform_3, window_bounds = array<i64: 256, 2>}]} {
    %c0 = arith.constant 0 : index
    %c0_0 = arith.constant 0 : index
    %0 = vector.load %arg1[%c0, %c0_0] : memref<256x8xf32, #tpu.memory_space<vmem>>, vector<256x8xf32>
    %c0_1 = arith.constant 0 : index
    %c0_2 = arith.constant 0 : index
    %1 = vector.load %arg2[%c0_1, %c0_2] : memref<200x256xf32, #tpu.memory_space<vmem>>, vector<8x256xf32>
    %cst = arith.constant dense<0.000000e+00> : vector<256x256xf32>
    %2 = tpu.matmul %0, %1, %cst {dimension_numbers = #tpu.dot_dimension_numbers<[1], [0], [0], [1], [0, 0, 1, 1], [], []>} : vector<256x8xf32>, vector<8x256xf32>, vector<256x256xf32> -> vector<256x256xf32>
    %c0_3 = arith.constant 0 : index
    %c0_4 = arith.constant 0 : index
    %3 = vector.load %arg3[%c0_3, %c0_4] : memref<1x514xf32, #tpu.memory_space<vmem>>, vector<1x256xf32>
    %4 = vector.broadcast %3 : vector<1x256xf32> to vector<256x256xf32>
    %5 = arith.addf %2, %4 : vector<256x256xf32>
    %6 = vector.extract_strided_slice %5 {offsets = [0, 0], sizes = [256, 64], strides = [1, 1]} : vector<256x256xf32> to vector<256x64xf32>
    %cst_5 = arith.constant 0.000000e+00 : f32
    %7 = vector.broadcast %cst_5 : f32 to vector<256x64xf32>
    %8 = arith.maximumf %6, %7 : vector<256x64xf32>
    %9 = vector.extract_strided_slice %8 {offsets = [0, 0], sizes = [256, 32], strides = [1, 1]} : vector<256x64xf32> to vector<256x32xf32>
    %10 = vector.extract_strided_slice %8 {offsets = [0, 32], sizes = [256, 32], strides = [1, 1]} : vector<256x64xf32> to vector<256x32xf32>
    %11 = vector.extract_strided_slice %5 {offsets = [0, 64], sizes = [256, 128], strides = [1, 1]} : vector<256x256xf32> to vector<256x128xf32>
    %12 = arith.negf %11 : vector<256x128xf32>
    %13 = math.exp %12 : vector<256x128xf32>
    %cst_6 = arith.constant 1.000000e+00 : f32
    %14 = vector.broadcast %cst_6 : f32 to vector<256x128xf32>
    %15 = arith.addf %14, %13 : vector<256x128xf32>
    %16 = arith.divf %14, %15 : vector<256x128xf32>
    %17 = vector.extract_strided_slice %5 {offsets = [0, 192], sizes = [256, 64], strides = [1, 1]} : vector<256x256xf32> to vector<256x64xf32>
    %18 = math.tanh %17 : vector<256x64xf32>
    %19 = vector.extract_strided_slice %16 {offsets = [0, 64], sizes = [256, 64], strides = [1, 1]} : vector<256x128xf32> to vector<256x64xf32>
    %20 = vector.extract_strided_slice %16 {offsets = [0, 0], sizes = [256, 64], strides = [1, 1]} : vector<256x128xf32> to vector<256x64xf32>
    %21 = arith.mulf %20, %18 : vector<256x64xf32>
    %22 = math.tanh %21 : vector<256x64xf32>
    %23 = arith.mulf %19, %22 : vector<256x64xf32>
    %c72 = arith.constant 72 : index
    %c32 = arith.constant 32 : index
    %24 = vector.load %arg2[%c72, %c32] : memref<200x256xf32, #tpu.memory_space<vmem>>, vector<32x32xf32>
    %cst_7 = arith.constant dense<0.000000e+00> : vector<256x32xf32>
    %25 = tpu.matmul %10, %24, %cst_7 {dimension_numbers = #tpu.dot_dimension_numbers<[1], [0], [0], [1], [0, 0, 1, 1], [], []>} : vector<256x32xf32>, vector<32x32xf32>, vector<256x32xf32> -> vector<256x32xf32>
    %c0_8 = arith.constant 0 : index
    %c256 = arith.constant 256 : index
    %26 = vector.load %arg3[%c0_8, %c256] : memref<1x514xf32, #tpu.memory_space<vmem>>, vector<1x32xf32>
    %27 = vector.broadcast %26 : vector<1x32xf32> to vector<256x32xf32>
    %28 = arith.addf %25, %27 : vector<256x32xf32>
    %cst_9 = arith.constant 0.000000e+00 : f32
    %29 = vector.broadcast %cst_9 : f32 to vector<256x32xf32>
    %30 = arith.maximumf %28, %29 : vector<256x32xf32>
    %c8 = arith.constant 8 : index
    %c0_10 = arith.constant 0 : index
    %31 = vector.load %arg2[%c8, %c0_10] : memref<200x256xf32, #tpu.memory_space<vmem>>, vector<64x192xf32>
    %cst_11 = arith.constant dense<0.000000e+00> : vector<256x192xf32>
    %32 = tpu.matmul %23, %31, %cst_11 {dimension_numbers = #tpu.dot_dimension_numbers<[1], [0], [0], [1], [0, 0, 1, 1], [], []>} : vector<256x64xf32>, vector<64x192xf32>, vector<256x192xf32> -> vector<256x192xf32>
    %c0_12 = arith.constant 0 : index
    %c288 = arith.constant 288 : index
    %33 = vector.load %arg3[%c0_12, %c288] : memref<1x514xf32, #tpu.memory_space<vmem>>, vector<1x192xf32>
    %34 = vector.broadcast %33 : vector<1x192xf32> to vector<256x192xf32>
    %35 = arith.addf %32, %34 : vector<256x192xf32>
    %36 = vector.extract_strided_slice %35 {offsets = [0, 0], sizes = [256, 128], strides = [1, 1]} : vector<256x192xf32> to vector<256x128xf32>
    %37 = arith.negf %36 : vector<256x128xf32>
    %38 = math.exp %37 : vector<256x128xf32>
    %cst_13 = arith.constant 1.000000e+00 : f32
    %39 = vector.broadcast %cst_13 : f32 to vector<256x128xf32>
    %40 = arith.addf %39, %38 : vector<256x128xf32>
    %41 = arith.divf %39, %40 : vector<256x128xf32>
    %42 = vector.extract_strided_slice %35 {offsets = [0, 128], sizes = [256, 64], strides = [1, 1]} : vector<256x192xf32> to vector<256x64xf32>
    %43 = math.tanh %42 : vector<256x64xf32>
    %44 = vector.extract_strided_slice %41 {offsets = [0, 64], sizes = [256, 64], strides = [1, 1]} : vector<256x128xf32> to vector<256x64xf32>
    %45 = vector.extract_strided_slice %41 {offsets = [0, 0], sizes = [256, 64], strides = [1, 1]} : vector<256x128xf32> to vector<256x64xf32>
    %46 = arith.mulf %45, %43 : vector<256x64xf32>
    %47 = math.tanh %46 : vector<256x64xf32>
    %48 = arith.mulf %44, %47 : vector<256x64xf32>
    %c0_14 = arith.constant 0 : index
    %c0_15 = arith.constant 0 : index
    %49 = vector.load %arg5[%c0_14, %c0_15] : memref<256x128xf32, #tpu.memory_space<vmem>>, vector<256x32xf32>
    tpu.vector_store %arg5[%c0_14, %c0_15], %9 {strides = array<i32>} : memref<256x128xf32, #tpu.memory_space<vmem>>, vector<256x32xf32>,
    %c0_16 = arith.constant 0 : index
    %c32_17 = arith.constant 32 : index
    %50 = vector.load %arg5[%c0_16, %c32_17] : memref<256x128xf32, #tpu.memory_space<vmem>>, vector<256x32xf32>
    tpu.vector_store %arg5[%c0_16, %c32_17], %30 {strides = array<i32>} : memref<256x128xf32, #tpu.memory_space<vmem>>, vector<256x32xf32>,
    %c0_18 = arith.constant 0 : index
    %c64 = arith.constant 64 : index
    %51 = vector.load %arg5[%c0_18, %c64] : memref<256x128xf32, #tpu.memory_space<vmem>>, vector<256x64xf32>
    tpu.vector_store %arg5[%c0_18, %c64], %48 {strides = array<i32>} : memref<256x128xf32, #tpu.memory_space<vmem>>, vector<256x64xf32>,
    %c0_19 = arith.constant 0 : index
    %c0_20 = arith.constant 0 : index
    %52 = vector.load %arg5[%c0_19, %c0_20] : memref<256x128xf32, #tpu.memory_space<vmem>>, vector<256x128xf32>
    %c72_21 = arith.constant 72 : index
    %c0_22 = arith.constant 0 : index
    %53 = vector.load %arg2[%c72_21, %c0_22] : memref<200x256xf32, #tpu.memory_space<vmem>>, vector<128x32xf32>
    %cst_23 = arith.constant dense<0.000000e+00> : vector<256x32xf32>
    %54 = tpu.matmul %52, %53, %cst_23 {dimension_numbers = #tpu.dot_dimension_numbers<[1], [0], [0], [1], [0, 0, 1, 1], [], []>} : vector<256x128xf32>, vector<128x32xf32>, vector<256x32xf32> -> vector<256x32xf32>
    %c0_24 = arith.constant 0 : index
    %c480 = arith.constant 480 : index
    %55 = vector.load %arg3[%c0_24, %c480] : memref<1x514xf32, #tpu.memory_space<vmem>>, vector<1x32xf32>
    %56 = vector.broadcast %55 : vector<1x32xf32> to vector<256x32xf32>
    %57 = arith.addf %54, %56 : vector<256x32xf32>
    %cst_25 = arith.constant 0.000000e+00 : f32
    %58 = vector.broadcast %cst_25 : f32 to vector<256x32xf32>
    %59 = arith.maximumf %57, %58 : vector<256x32xf32>
    %c72_26 = arith.constant 72 : index
    %c64_27 = arith.constant 64 : index
    %60 = vector.load %arg2[%c72_26, %c64_27] : memref<200x256xf32, #tpu.memory_space<vmem>>, vector<32x2xf32>
    %cst_28 = arith.constant dense<0.000000e+00> : vector<256x2xf32>
    %61 = tpu.matmul %59, %60, %cst_28 {dimension_numbers = #tpu.dot_dimension_numbers<[1], [0], [0], [1], [0, 0, 1, 1], [], []>} : vector<256x32xf32>, vector<32x2xf32>, vector<256x2xf32> -> vector<256x2xf32>
    %c0_29 = arith.constant 0 : index
    %c512 = arith.constant 512 : index
    %62 = vector.load %arg3[%c0_29, %c512] : memref<1x514xf32, #tpu.memory_space<vmem>>, vector<1x2xf32>
    %63 = vector.broadcast %62 : vector<1x2xf32> to vector<256x2xf32>
    %64 = arith.addf %61, %63 : vector<256x2xf32>
    %c0_30 = arith.constant 0 : index
    %c0_31 = arith.constant 0 : index
    %65 = vector.load %arg4[%c0_30, %c0_31] : memref<256x2xf32, #tpu.memory_space<vmem>>, vector<256x2xf32>
    tpu.vector_store %arg4[%c0_30, %c0_31], %64 {strides = array<i32>} : memref<256x2xf32, #tpu.memory_space<vmem>>, vector<256x2xf32>,
    return
  }
  func.func @transform_0(%arg0: i32) -> (i32, i32) {
    %c0_i32 = arith.constant 0 : i32
    %c0_i32_0 = arith.constant 0 : i32
    return %arg0, %c0_i32 : i32, i32
  }
  func.func @transform_1(%arg0: i32) -> (i32, i32) {
    %c0_i32 = arith.constant 0 : i32
    %c0_i32_0 = arith.constant 0 : i32
    %c0_i32_1 = arith.constant 0 : i32
    return %c0_i32, %c0_i32_0 : i32, i32
  }
  func.func @transform_2(%arg0: i32) -> (i32, i32) {
    %c0_i32 = arith.constant 0 : i32
    %c0_i32_0 = arith.constant 0 : i32
    %c0_i32_1 = arith.constant 0 : i32
    return %c0_i32, %c0_i32_0 : i32, i32
  }
  func.func @transform_3(%arg0: i32) -> (i32, i32) {
    %c0_i32 = arith.constant 0 : i32
    %c0_i32_0 = arith.constant 0 : i32
    return %arg0, %c0_i32 : i32, i32
  }
}

</mosaic_0001>

<llo_original>
// kernel: time_series_lstm_forward.1
$region0: #{time_series_lstm_forward.1}
  #allocation0 [shape = 'u32[]', space=smem, size = 0x4, offset = 0x4, fixed_abs, tag = 'smem constant byte address 0x4 - core index']
  #allocation1 [shape = 'u32[144,128]{1,0:T(1,128)}', space=vmem, size = 0x12000, scoped, tag = 'internal scratch']
  #allocation2 [shape = 'f32[256,128]{1,0:T(8,128)}', space=vmem, size = 0x20000, scoped, tag = 'scratch operand']
  %s0 = inlined_call_operand.vmem [shape: f32[512,8], index: 0, kind: input, shape index: {}]
  %s1 = inlined_call_operand.vmem [shape: f32[200,256], index: 1, kind: input, shape index: {}]
  %s2 = inlined_call_operand.vmem [shape: f32[1,514], index: 2, kind: input, shape index: {}]
  %s3 = inlined_call_operand.vmem [shape: f32[512,2], index: 3, kind: output, shape index: {}]
  %s4 = sld [smem:[#allocation0]]
  $region45: #{time_series_lstm_forward.1} parent=0
    _
  %s6 = ssub.s32 1, %s4
  %s7 = scalar_select 0, %s6, %s4
  loop: start=0, step=1, limit=4
  $region2: #{time_series_lstm_forward.1} parent=0 // loop_pre_header
    _
  $region3: #{time_series_lstm_forward.1} parent=0 // loop_header
    %s9 = sphi 0, %s13
    %p10 = scmp.ge.s32.totalorder %s9, 4
    %s19 = sphi 0, %s21
    %s22 = sphi 0, %s19
    %s23 = sphi 0, %s22
    %s39 = sphi 0, %s23
    %s43 = sphi 0, %s43
    %s45 = sphi 0, %s43
    %s46 = sphi 0, %s45
    %s60 = sphi 0, %s46
    %s64 = sphi 0, %s64
    %s66 = sphi 0, %s64
    %s67 = sphi 0, %s66
    %s81 = sphi 0, %s67
    %s87 = sphi 0, %s89
    %s90 = sphi 0, %s87
    %s91 = sphi 0, %s90
    %s107 = sphi 0, %s91
  $region4: #{time_series_lstm_forward.1} parent=0 // loop_header_branch
    %12 = sbr.rel (%p10) target = $region8
  $region5: #{time_series_lstm_forward.1} parent=0 // loop_body
    %s14 = ssub.s32 %s9, 1
    %s15 = ssub.s32 %s9, 2
    %s16 = sadd.s32 %s9, 1
    %s17 = ssub.s32 %s9, %s16
    %p18 = scmp.eq.s32.totalorder %s17, 0
    %s20 = sadd.s32 %s19, 1
    %s21 = scalar_select %p18, %s19, %s20
    %p24 = pneg %p18
    %p25 = scmp.eq.s32.totalorder %s9, 1
    %p26 = por %p24, %p25
    %p27 = scmp.ne.s32.totalorder %s19, %s22
    %p28 = scmp.eq.s32.totalorder %s9, 0
    %p29 = por %p27, %p28
    %p30 = scmp.ne.s32.totalorder %s19, %s22
    %p31 = scmp.eq.s32.totalorder %s14, 1
    %p32 = por %p30, %p31
    %p33 = scmp.ne.s32.totalorder %s22, %s23
    %p34 = scmp.eq.s32.totalorder %s14, 0
    %p35 = por %p33, %p34
    %p36 = scmp.ne.s32.totalorder %s22, %s23
    %p37 = scmp.eq.s32.totalorder %s15, 1
    %p38 = por %p36, %p37
    %p40 = scmp.ne.s32.totalorder %s23, %s39
    %p41 = scmp.eq.s32.totalorder %s15, 0
    %p42 = por %p40, %p41
    %s44 = sadd.s32 %s43, 1
    %p47 = scmp.eq.s32.totalorder %s9, 1
    %p48 = scmp.ne.s32.totalorder %s43, %s45
    %p49 = scmp.eq.s32.totalorder %s9, 0
    %p50 = por %p48, %p49
    %p51 = scmp.ne.s32.totalorder %s43, %s45
    %p52 = scmp.eq.s32.totalorder %s14, 1
    %p53 = por %p51, %p52
    %p54 = scmp.ne.s32.totalorder %s45, %s46
    %p55 = scmp.eq.s32.totalorder %s14, 0
    %p56 = por %p54, %p55
    %p57 = scmp.ne.s32.totalorder %s45, %s46
    %p58 = scmp.eq.s32.totalorder %s15, 1
    %p59 = por %p57, %p58
    %p61 = scmp.ne.s32.totalorder %s46, %s60
    %p62 = scmp.eq.s32.totalorder %s15, 0
    %p63 = por %p61, %p62
    %s65 = sadd.s32 %s64, 1
    %p68 = scmp.eq.s32.totalorder %s9, 1
    %p69 = scmp.ne.s32.totalorder %s64, %s66
    %p70 = scmp.eq.s32.totalorder %s9, 0
    %p71 = por %p69, %p70
    %p72 = scmp.ne.s32.totalorder %s64, %s66
    %p73 = scmp.eq.s32.totalorder %s14, 1
    %p74 = por %p72, %p73
    %p75 = scmp.ne.s32.totalorder %s66, %s67
    %p76 = scmp.eq.s32.totalorder %s14, 0
    %p77 = por %p75, %p76
    %p78 = scmp.ne.s32.totalorder %s66, %s67
    %p79 = scmp.eq.s32.totalorder %s15, 1
    %p80 = por %p78, %p79
    %p82 = scmp.ne.s32.totalorder %s67, %s81
    %p83 = scmp.eq.s32.totalorder %s15, 0
    %p84 = por %p82, %p83
    %s85 = ssub.s32 %s9, %s16
    %p86 = scmp.eq.s32.totalorder %s85, 0
    %s88 = sadd.s32 %s87, 1
    %s89 = scalar_select %p86, %s87, %s88
    %p92 = pneg %p86
    %p93 = scmp.eq.s32.totalorder %s9, 1
    %p94 = por %p92, %p93
    %p95 = scmp.ne.s32.totalorder %s87, %s90
    %p96 = scmp.eq.s32.totalorder %s9, 0
    %p97 = por %p95, %p96
    %p98 = scmp.ne.s32.totalorder %s87, %s90
    %p99 = scmp.eq.s32.totalorder %s14, 1
    %p100 = por %p98, %p99
    %p101 = scmp.ne.s32.totalorder %s90, %s91
    %p102 = scmp.eq.s32.totalorder %s14, 0
    %p103 = por %p101, %p102
    %p104 = scmp.ne.s32.totalorder %s90, %s91
    %p105 = scmp.eq.s32.totalorder %s15, 1
    %p106 = por %p104, %p105
    %p108 = scmp.ne.s32.totalorder %s91, %s107
    %p109 = scmp.eq.s32.totalorder %s15, 0
    %p110 = por %p108, %p109
    %p111 = scmp.le.s32.totalorder 1, %s9
    %p112 = scmp.lt.s32.totalorder %s9, 3
    %p113 = pnand %p111, %p112
    %p114 = pneg %p113
    // Predicated region
    $region9: #{time_series_lstm_forward.1} parent=5 // pred_check
      _
    $region10: #{time_series_lstm_forward.1} parent=5 // pred_check_branch
      %116 = sbr.rel (%p113) target = $region12
    $region11: #{time_series_lstm_forward.1} parent=5 // pred_region
      %s117 = ssub.s32 %s9, 1
      // Predicated region
      $region13: #{time_series_lstm_forward.1} parent=11 // pred_check
        %p118 = pneg %p56
      $region14: #{time_series_lstm_forward.1} parent=11 // pred_check_branch
        %120 = sbr.rel (%p118) target = $region16
      $region15: #{time_series_lstm_forward.1} parent=11 // pred_region
        _
      $region16: #{time_series_lstm_forward.1} parent=11 // pred_fallthru
        _
      // Predicated region
      $region17: #{time_series_lstm_forward.1} parent=11 // pred_check
        %p121 = pneg %p77
      $region18: #{time_series_lstm_forward.1} parent=11 // pred_check_branch
        %123 = sbr.rel (%p121) target = $region20
      $region19: #{time_series_lstm_forward.1} parent=11 // pred_region
        _
      $region20: #{time_series_lstm_forward.1} parent=11 // pred_fallthru
        _
    $region12: #{time_series_lstm_forward.1} parent=5 // pred_fallthru
      _
    %p124 = scmp.lt.s32.totalorder %s9, 2
    // Predicated region
    $region21: #{time_series_lstm_forward.1} parent=5 // pred_check
      %p125 = pneg %p124
    $region22: #{time_series_lstm_forward.1} parent=5 // pred_check_branch
      %127 = sbr.rel (%p125) target = $region24
    $region23: #{time_series_lstm_forward.1} parent=5 // pred_region
      // Predicated region
      $region25: #{time_series_lstm_forward.1} parent=23 // pred_check
        %p128 = pneg %p29
      $region26: #{time_series_lstm_forward.1} parent=23 // pred_check_branch
        %130 = sbr.rel (%p128) target = $region28
      $region27: #{time_series_lstm_forward.1} parent=23 // pred_region
        %s131 = smul.u32 32, %s9
        %p132 = scmp.lt.s32.totalorder %s131, 63
        %s133 = scalar_select %p132, %s131, 63
        %s134 = smul.addr %s133, 8
        %s135 = scalar_lea.vmem %s0, %s134
        %s136 = smul.u32 32, %s9
      $region28: #{time_series_lstm_forward.1} parent=23 // pred_fallthru
        _
    $region24: #{time_series_lstm_forward.1} parent=5 // pred_fallthru
      _
    %p137 = scmp.le.s32.totalorder 1, %s9
    %p138 = scmp.lt.s32.totalorder %s9, 3
    %p139 = pnand %p137, %p138
    %p140 = pneg %p139
    // Predicated region
    $region29: #{time_series_lstm_forward.1} parent=5 // pred_check
      _
    $region30: #{time_series_lstm_forward.1} parent=5 // pred_check_branch
      %142 = sbr.rel (%p139) target = $region32
    $region31: #{time_series_lstm_forward.1} parent=5 // pred_region
      %s143 = ssub.s32 %s9, 1
      %s144 = smul.u32 32, %s14
      %p145 = scmp.lt.s32.totalorder %s144, 63
      %s146 = scalar_select %p145, %s144, 63
      %s147 = smul.addr %s146, 8
      %s148 = scalar_lea.vmem %s0, %s147
      %p149 = pneg %p35
      %p150 = pneg %p32
      %p151 = pneg %p56
      %p152 = pneg %p53
      %p153 = pneg %p77
      %p154 = pneg %p74
      %p155 = pneg %p103
      %p156 = pneg %p100
      %s157 = smul.u32 32, %s14
      %p158 = scmp.lt.s32.totalorder %s157, 63
      %s159 = scalar_select %p158, %s157, 63
      %s160 = smul.addr %s159, 8
      %s161 = scalar_lea.vmem %s3, %s160
      %s162 = smul.u32 32, %s14
      %p163 = scmp.lt.s32.totalorder %s162, 63
      %s164 = scalar_select %p163, %s162, 63
      %s165 = smul.addr %s164, 8
      %s166 = scalar_lea.vmem %s0, %s165
      %s167 = smul.u32 32, %s14
      %s168 = smul.u32 32, %s14
      %p169 = scmp.lt.s32.totalorder %s168, 63
      %s170 = scalar_select %p169, %s168, 63
      %s171 = smul.addr %s170, 8
      %s172 = scalar_lea.vmem %s3, %s171
      %s173 = smul.u32 32, %s14
      %v174 = vld [vmem:[%s166] sm:$0xff]
      %v175 = vld [vmem:[%s166 + $0x8] sm:$0xff]
      %v176 = vld [vmem:[%s166 + $0x10] sm:$0xff]
      %v177 = vld [vmem:[%s166 + $0x18] sm:$0xff]
      %v178 = vld [vmem:[%s166 + $0x20] sm:$0xff]
      %v179 = vld [vmem:[%s166 + $0x28] sm:$0xff]
      %v180 = vld [vmem:[%s166 + $0x30] sm:$0xff]
      %v181 = vld [vmem:[%s166 + $0x38] sm:$0xff]
      %v182 = vld [vmem:[%s166 + $0x40] sm:$0xff]
      %v183 = vld [vmem:[%s166 + $0x48] sm:$0xff]
      %v184 = vld [vmem:[%s166 + $0x50] sm:$0xff]
      %v185 = vld [vmem:[%s166 + $0x58] sm:$0xff]
      %v186 = vld [vmem:[%s166 + $0x60] sm:$0xff]
      %v187 = vld [vmem:[%s166 + $0x68] sm:$0xff]
      %v188 = vld [vmem:[%s166 + $0x70] sm:$0xff]
      %v189 = vld [vmem:[%s166 + $0x78] sm:$0xff]
      %v190 = vld [vmem:[%s166 + $0x80] sm:$0xff]
      %v191 = vld [vmem:[%s166 + $0x88] sm:$0xff]
      %v192 = vld [vmem:[%s166 + $0x90] sm:$0xff]
      %v193 = vld [vmem:[%s166 + $0x98] sm:$0xff]
      %v194 = vld [vmem:[%s166 + $0xa0] sm:$0xff]
      %v195 = vld [vmem:[%s166 + $0xa8] sm:$0xff]
      %v196 = vld [vmem:[%s166 + $0xb0] sm:$0xff]
      %v197 = vld [vmem:[%s166 + $0xb8] sm:$0xff]
      %v198 = vld [vmem:[%s166 + $0xc0] sm:$0xff]
      %v199 = vld [vmem:[%s166 + $0xc8] sm:$0xff]
      %v200 = vld [vmem:[%s166 + $0xd0] sm:$0xff]
      %v201 = vld [vmem:[%s166 + $0xd8] sm:$0xff]
      %v202 = vld [vmem:[%s166 + $0xe0] sm:$0xff]
      %v203 = vld [vmem:[%s166 + $0xe8] sm:$0xff]
      %v204 = vld [vmem:[%s166 + $0xf0] sm:$0xff]
      %v205 = vld [vmem:[%s166 + $0xf8] sm:$0xff]
      %v206 = vld [vmem:[%s1] sm:$0xff]
      %v207 = vld [vmem:[%s1 + $0x8] sm:$0xff]
      %v208 = vld [vmem:[%s2] sm:$0x3]
      %v210 = vlaneseq
      %v211 = vshrl.u32 %v210, 7
      %v212 = vsub.s32 0, %v211
      %v213 = vrot.slane %v208, %v212
      %v214 = vlaneseq
      %v215 = vshrl.u32 %v214, 7
      %v216 = vsub.s32 1, %v215
      %v217 = vrot.slane %v208, %v216
      %vm220 = vcmask 64512
      %v222 = vsel %vm220, %v174, 0
      %v225 = vsel %vm220, %v175, 0
      %v228 = vsel %vm220, %v176, 0
      %v231 = vsel %vm220, %v177, 0
      %v234 = vsel %vm220, %v178, 0
      %v237 = vsel %vm220, %v179, 0
      %v240 = vsel %vm220, %v180, 0
      %v243 = vsel %vm220, %v181, 0
      %v246 = vsel %vm220, %v182, 0
      %v249 = vsel %vm220, %v183, 0
      %v252 = vsel %vm220, %v184, 0
      %v255 = vsel %vm220, %v185, 0
      %v258 = vsel %vm220, %v186, 0
      %v261 = vsel %vm220, %v187, 0
      %v264 = vsel %vm220, %v188, 0
      %v267 = vsel %vm220, %v189, 0
      %v270 = vsel %vm220, %v190, 0
      %v273 = vsel %vm220, %v191, 0
      %v276 = vsel %vm220, %v192, 0
      %v279 = vsel %vm220, %v193, 0
      %v282 = vsel %vm220, %v194, 0
      %v285 = vsel %vm220, %v195, 0
      %v288 = vsel %vm220, %v196, 0
      %v291 = vsel %vm220, %v197, 0
      %v294 = vsel %vm220, %v198, 0
      %v297 = vsel %vm220, %v199, 0
      %v300 = vsel %vm220, %v200, 0
      %v303 = vsel %vm220, %v201, 0
      %v306 = vsel %vm220, %v202, 0
      %v309 = vsel %vm220, %v203, 0
      %v312 = vsel %vm220, %v204, 0
      %v315 = vsel %vm220, %v205, 0
      %317 = vmatprep.subr.mxu0 %v207
      %318 = vmatpush1.msra.mxu0 %v206
      %319 = vmatprep.subr.mxu0 0.0
      %320 = vmatpush1.msra.mxu0 0.0
      %321 = vmatprep.subr.mxu0 0.0
      %322 = vmatpush1.msra.mxu0 0.0
      %323 = vmatprep.subr.mxu0 0.0
      %324 = vmatpush1.msra.mxu0 0.0
      %325 = vmatprep.subr.mxu0 0.0
      %326 = vmatpush1.msra.mxu0 0.0
      %327 = vmatprep.subr.mxu0 0.0
      %328 = vmatpush1.msra.mxu0 0.0
      %329 = vmatprep.subr.mxu0 0.0
      %330 = vmatpush1.msra.mxu0 0.0
      %331 = vmatprep.subr.mxu0 0.0
      %332 = vmatpush1.msra.mxu0 0.0
      %333 = vmatprep.subr.mxu0 0.0
      %334 = vmatpush1.msra.mxu0 0.0
      %335 = vmatprep.subr.mxu0 0.0
      %336 = vmatpush1.msra.mxu0 0.0
      %337 = vmatprep.subr.mxu0 0.0
      %338 = vmatpush1.msra.mxu0 0.0
      %339 = vmatprep.subr.mxu0 0.0
      %340 = vmatpush1.msra.mxu0 0.0
      %341 = vmatprep.subr.mxu0 0.0
      %342 = vmatpush1.msra.mxu0 0.0
      %343 = vmatprep.subr.mxu0 0.0
      %344 = vmatpush1.msra.mxu0 0.0
      %345 = vmatprep.subr.mxu0 0.0
      %346 = vmatpush1.msra.mxu0 0.0
      %347 = vmatprep.subr.mxu0 0.0
      %348 = vmatpush1.msra.mxu0 0.0
      %349 = vmatprep.subr.mxu0 0.0
      %350 = vmatpush1.msra.mxu0 0.0
      %351 = vmatprep.subr.mxu0 0.0
      %352 = vmatpush1.msra.mxu0 0.0
      %353 = vmatprep.subr.mxu0 0.0
      %354 = vmatpush1.msra.mxu0 0.0
      %355 = vmatprep.subr.mxu0 0.0
      %356 = vmatpush1.msra.mxu0 0.0
      %357 = vmatprep.subr.mxu0 0.0
      %358 = vmatpush1.msra.mxu0 0.0
      %359 = vmatprep.subr.mxu0 0.0
      %360 = vmatpush1.msra.mxu0 0.0
      %361 = vmatprep.subr.mxu0 0.0
      %362 = vmatpush1.msra.mxu0 0.0
      %363 = vmatprep.subr.mxu0 0.0
      %364 = vmatpush1.msra.mxu0 0.0
      %365 = vmatprep.subr.mxu0 0.0
      %366 = vmatpush1.msra.mxu0 0.0
      %367 = vmatprep.subr.mxu0 0.0
      %368 = vmatpush1.msra.mxu0 0.0
      %369 = vmatprep.subr.mxu0 0.0
      %370 = vmatpush1.msra.mxu0 0.0
      %371 = vmatprep.subr.mxu0 0.0
      %372 = vmatpush1.msra.mxu0 0.0
      %373 = vmatprep.subr.mxu0 0.0
      %374 = vmatpush1.msra.mxu0 0.0
      %375 = vmatprep.subr.mxu0 0.0
      %376 = vmatpush1.msra.mxu0 0.0
      %377 = vmatprep.subr.mxu0 0.0
      %378 = vmatpush1.msra.mxu0 0.0
      %379 = vmatprep.subr.mxu0 0.0
      %380 = vmatpush1.msra.mxu0 0.0
      %381 = vmatprep.mubr.f32.mxu0 0.0
      %382 = vmatmul.mubr.f32.gmra.mrb[0].mxu0 %v222
      %v383 = vpop.f32.mrb[0].mxu0
      %v384 = vadd.f32 %v213, %v383
      %v385 = vpop.f32.mrb[0].mxu0
      %v386 = vadd.f32 %v217, %v385
      %387 = vmatprep.mubr.f32.mxu0 0.0
      %388 = vmatmul.mubr.f32.gmra.mrb[0].mxu0 %v225
      %v389 = vpop.f32.mrb[0].mxu0
      %v390 = vadd.f32 %v213, %v389
      %v391 = vpop.f32.mrb[0].mxu0
      %v392 = vadd.f32 %v217, %v391
      %393 = vmatprep.mubr.f32.mxu0 0.0
      %394 = vmatmul.mubr.f32.gmra.mrb[0].mxu0 %v228
      %v395 = vpop.f32.mrb[0].mxu0
      %v396 = vadd.f32 %v213, %v395
      %v397 = vpop.f32.mrb[0].mxu0
      %v398 = vadd.f32 %v217, %v397
      %399 = vmatprep.mubr.f32.mxu0 0.0
      %400 = vmatmul.mubr.f32.gmra.mrb[0].mxu0 %v231
      %v401 = vpop.f32.mrb[0].mxu0
      %v402 = vadd.f32 %v213, %v401
      %v403 = vpop.f32.mrb[0].mxu0
      %v404 = vadd.f32 %v217, %v403
      %405 = vmatprep.mubr.f32.mxu0 0.0
      %406 = vmatmul.mubr.f32.gmra.mrb[0].mxu0 %v234
      %v407 = vpop.f32.mrb[0].mxu0
      %v408 = vadd.f32 %v213, %v407
      %v409 = vpop.f32.mrb[0].mxu0
      %v410 = vadd.f32 %v217, %v409
      %411 = vmatprep.mubr.f32.mxu0 0.0
      %412 = vmatmul.mubr.f32.gmra.mrb[0].mxu0 %v237
      %v413 = vpop.f32.mrb[0].mxu0
      %v414 = vadd.f32 %v213, %v413
      %v415 = vpop.f32.mrb[0].mxu0
      %v416 = vadd.f32 %v217, %v415
      %417 = vmatprep.mubr.f32.mxu0 0.0
      %418 = vmatmul.mubr.f32.gmra.mrb[0].mxu0 %v240
      %v419 = vpop.f32.mrb[0].mxu0
      %v420 = vadd.f32 %v213, %v419
      %v421 = vpop.f32.mrb[0].mxu0
      %v422 = vadd.f32 %v217, %v421
      %423 = vmatprep.mubr.f32.mxu0 0.0
      %424 = vmatmul.mubr.f32.gmra.mrb[0].mxu0 %v243
      %v425 = vpop.f32.mrb[0].mxu0
      %v426 = vadd.f32 %v213, %v425
      %v427 = vpop.f32.mrb[0].mxu0
      %v428 = vadd.f32 %v217, %v427
      %429 = vmatprep.mubr.f32.mxu0 0.0
      %430 = vmatmul.mubr.f32.gmra.mrb[0].mxu0 %v246
      %v431 = vpop.f32.mrb[0].mxu0
      %v432 = vadd.f32 %v213, %v431
      %v433 = vpop.f32.mrb[0].mxu0
      %v434 = vadd.f32 %v217, %v433
      %435 = vmatprep.mubr.f32.mxu0 0.0
      %436 = vmatmul.mubr.f32.gmra.mrb[0].mxu0 %v249
      %v437 = vpop.f32.mrb[0].mxu0
      %v438 = vadd.f32 %v213, %v437
      %v439 = vpop.f32.mrb[0].mxu0
      %v440 = vadd.f32 %v217, %v439
      %441 = vmatprep.mubr.f32.mxu0 0.0
      %442 = vmatmul.mubr.f32.gmra.mrb[0].mxu0 %v252
      %v443 = vpop.f32.mrb[0].mxu0
      %v444 = vadd.f32 %v213, %v443
      %v445 = vpop.f32.mrb[0].mxu0
      %v446 = vadd.f32 %v217, %v445
      %447 = vmatprep.mubr.f32.mxu0 0.0
      %448 = vmatmul.mubr.f32.gmra.mrb[0].mxu0 %v255
      %v449 = vpop.f32.mrb[0].mxu0
      %v450 = vadd.f32 %v213, %v449
      %v451 = vpop.f32.mrb[0].mxu0
      %v452 = vadd.f32 %v217, %v451
      %453 = vmatprep.mubr.f32.mxu0 0.0
      %454 = vmatmul.mubr.f32.gmra.mrb[0].mxu0 %v258
      %v455 = vpop.f32.mrb[0].mxu0
      %v456 = vadd.f32 %v213, %v455
      %v457 = vpop.f32.mrb[0].mxu0
      %v458 = vadd.f32 %v217, %v457
      %459 = vmatprep.mubr.f32.mxu0 0.0
      %460 = vmatmul.mubr.f32.gmra.mrb[0].mxu0 %v261
      %v461 = vpop.f32.mrb[0].mxu0
      %v462 = vadd.f32 %v213, %v461
      %v463 = vpop.f32.mrb[0].mxu0
      %v464 = vadd.f32 %v217, %v463
      %465 = vmatprep.mubr.f32.mxu0 0.0
      %466 = vmatmul.mubr.f32.gmra.mrb[0].mxu0 %v264
      %v467 = vpop.f32.mrb[0].mxu0
      %v468 = vadd.f32 %v213, %v467
      %v469 = vpop.f32.mrb[0].mxu0
      %v470 = vadd.f32 %v217, %v469
      %471 = vmatprep.mubr.f32.mxu0 0.0
      %472 = vmatmul.mubr.f32.gmra.mrb[0].mxu0 %v267
      %v473 = vpop.f32.mrb[0].mxu0
      %v474 = vadd.f32 %v213, %v473
      %v475 = vpop.f32.mrb[0].mxu0
      %v476 = vadd.f32 %v217, %v475
      %477 = vmatprep.mubr.f32.mxu0 0.0
      %478 = vmatmul.mubr.f32.gmra.mrb[0].mxu0 %v270
      %v479 = vpop.f32.mrb[0].mxu0
      %v480 = vadd.f32 %v213, %v479
      %v481 = vpop.f32.mrb[0].mxu0
      %v482 = vadd.f32 %v217, %v481
      %483 = vmatprep.mubr.f32.mxu0 0.0
      %484 = vmatmul.mubr.f32.gmra.mrb[0].mxu0 %v273
      %v485 = vpop.f32.mrb[0].mxu0
      %v486 = vadd.f32 %v213, %v485
      %v487 = vpop.f32.mrb[0].mxu0
      %v488 = vadd.f32 %v217, %v487
      %489 = vmatprep.mubr.f32.mxu0 0.0
      %490 = vmatmul.mubr.f32.gmra.mrb[0].mxu0 %v276
      %v491 = vpop.f32.mrb[0].mxu0
      %v492 = vadd.f32 %v213, %v491
      %v493 = vpop.f32.mrb[0].mxu0
      %v494 = vadd.f32 %v217, %v493
      %495 = vmatprep.mubr.f32.mxu0 0.0
      %496 = vmatmul.mubr.f32.gmra.mrb[0].mxu0 %v279
      %v497 = vpop.f32.mrb[0].mxu0
      %v498 = vadd.f32 %v213, %v497
      %v499 = vpop.f32.mrb[0].mxu0
      %v500 = vadd.f32 %v217, %v499
      %501 = vmatprep.mubr.f32.mxu0 0.0
      %502 = vmatmul.mubr.f32.gmra.mrb[0].mxu0 %v282
      %v503 = vpop.f32.mrb[0].mxu0
      %v504 = vadd.f32 %v213, %v503
      %v505 = vpop.f32.mrb[0].mxu0
      %v506 = vadd.f32 %v217, %v505
      %507 = vmatprep.mubr.f32.mxu0 0.0
      %508 = vmatmul.mubr.f32.gmra.mrb[0].mxu0 %v285
      %v509 = vpop.f32.mrb[0].mxu0
      %v510 = vadd.f32 %v213, %v509
      %v511 = vpop.f32.mrb[0].mxu0
      %v512 = vadd.f32 %v217, %v511
      %513 = vmatprep.mubr.f32.mxu0 0.0
      %514 = vmatmul.mubr.f32.gmra.mrb[0].mxu0 %v288
      %v515 = vpop.f32.mrb[0].mxu0
      %v516 = vadd.f32 %v213, %v515
      %v517 = vpop.f32.mrb[0].mxu0
      %v518 = vadd.f32 %v217, %v517
      %519 = vmatprep.mubr.f32.mxu0 0.0
      %520 = vmatmul.mubr.f32.gmra.mrb[0].mxu0 %v291
      %v521 = vpop.f32.mrb[0].mxu0
      %v522 = vadd.f32 %v213, %v521
      %v523 = vpop.f32.mrb[0].mxu0
      %v524 = vadd.f32 %v217, %v523
      %525 = vmatprep.mubr.f32.mxu0 0.0
      %526 = vmatmul.mubr.f32.gmra.mrb[0].mxu0 %v294
      %v527 = vpop.f32.mrb[0].mxu0
      %v528 = vadd.f32 %v213, %v527
      %v529 = vpop.f32.mrb[0].mxu0
      %v530 = vadd.f32 %v217, %v529
      %531 = vmatprep.mubr.f32.mxu0 0.0
      %532 = vmatmul.mubr.f32.gmra.mrb[0].mxu0 %v297
      %v533 = vpop.f32.mrb[0].mxu0
      %v534 = vadd.f32 %v213, %v533
      %v535 = vpop.f32.mrb[0].mxu0
      %v536 = vadd.f32 %v217, %v535
      %537 = vmatprep.mubr.f32.mxu0 0.0
      %538 = vmatmul.mubr.f32.gmra.mrb[0].mxu0 %v300
      %v539 = vpop.f32.mrb[0].mxu0
      %v540 = vadd.f32 %v213, %v539
      %v541 = vpop.f32.mrb[0].mxu0
      %v542 = vadd.f32 %v217, %v541
      %543 = vmatprep.mubr.f32.mxu0 0.0
      %544 = vmatmul.mubr.f32.gmra.mrb[0].mxu0 %v303
      %v545 = vpop.f32.mrb[0].mxu0
      %v546 = vadd.f32 %v213, %v545
      %v547 = vpop.f32.mrb[0].mxu0
      %v548 = vadd.f32 %v217, %v547
      %549 = vmatprep.mubr.f32.mxu0 0.0
      %550 = vmatmul.mubr.f32.gmra.mrb[0].mxu0 %v306
      %v551 = vpop.f32.mrb[0].mxu0
      %v552 = vadd.f32 %v213, %v551
      %v553 = vpop.f32.mrb[0].mxu0
      %v554 = vadd.f32 %v217, %v553
      %555 = vmatprep.mubr.f32.mxu0 0.0
      %556 = vmatmul.mubr.f32.gmra.mrb[0].mxu0 %v309
      %v557 = vpop.f32.mrb[0].mxu0
      %v558 = vadd.f32 %v213, %v557
      %v559 = vpop.f32.mrb[0].mxu0
      %v560 = vadd.f32 %v217, %v559
      %561 = vmatprep.mubr.f32.mxu0 0.0
      %562 = vmatmul.mubr.f32.gmra.mrb[0].mxu0 %v312
      %v563 = vpop.f32.mrb[0].mxu0
      %v564 = vadd.f32 %v213, %v563
      %v565 = vpop.f32.mrb[0].mxu0
      %v566 = vadd.f32 %v217, %v565
      %567 = vmatprep.mubr.f32.mxu0 0.0
      %568 = vmatmul.mubr.f32.gmra.mrb[0].mxu0 %v315
      %v569 = vpop.f32.mrb[0].mxu0
      %v570 = vadd.f32 %v213, %v569
      %v571 = vpop.f32.mrb[0].mxu0
      %v572 = vadd.f32 %v217, %v571
      %573 = vdwg.mxu0
      %v574 = vmax.f32 %v384, 0.0
      %v575 = vmax.f32 %v390, 0.0
      %v576 = vmax.f32 %v396, 0.0
      %v577 = vmax.f32 %v402, 0.0
      %v578 = vmax.f32 %v408, 0.0
      %v579 = vmax.f32 %v414, 0.0
      %v580 = vmax.f32 %v420, 0.0
      %v581 = vmax.f32 %v426, 0.0
      %v582 = vmax.f32 %v432, 0.0
      %v583 = vmax.f32 %v438, 0.0
      %v584 = vmax.f32 %v444, 0.0
      %v585 = vmax.f32 %v450, 0.0
      %v586 = vmax.f32 %v456, 0.0
      %v587 = vmax.f32 %v462, 0.0
      %v588 = vmax.f32 %v468, 0.0
      %v589 = vmax.f32 %v474, 0.0
      %v590 = vmax.f32 %v480, 0.0
      %v591 = vmax.f32 %v486, 0.0
      %v592 = vmax.f32 %v492, 0.0
      %v593 = vmax.f32 %v498, 0.0
      %v594 = vmax.f32 %v504, 0.0
      %v595 = vmax.f32 %v510, 0.0
      %v596 = vmax.f32 %v516, 0.0
      %v597 = vmax.f32 %v522, 0.0
      %v598 = vmax.f32 %v528, 0.0
      %v599 = vmax.f32 %v534, 0.0
      %v600 = vmax.f32 %v540, 0.0
      %v601 = vmax.f32 %v546, 0.0
      %v602 = vmax.f32 %v552, 0.0
      %v603 = vmax.f32 %v558, 0.0
      %v604 = vmax.f32 %v564, 0.0
      %v605 = vmax.f32 %v570, 0.0
      %v606 = vxor.u32 %v384, 2147483648
      %v607 = vxor.u32 %v386, 2147483648
      %v608 = vxor.u32 %v390, 2147483648
      %v609 = vxor.u32 %v392, 2147483648
      %v610 = vxor.u32 %v396, 2147483648
      %v611 = vxor.u32 %v398, 2147483648
      %v612 = vxor.u32 %v402, 2147483648
      %v613 = vxor.u32 %v404, 2147483648
      %v614 = vxor.u32 %v408, 2147483648
      %v615 = vxor.u32 %v410, 2147483648
      %v616 = vxor.u32 %v414, 2147483648
      %v617 = vxor.u32 %v416, 2147483648
      %v618 = vxor.u32 %v420, 2147483648
      %v619 = vxor.u32 %v422, 2147483648
      %v620 = vxor.u32 %v426, 2147483648
      %v621 = vxor.u32 %v428, 2147483648
      %v622 = vxor.u32 %v432, 2147483648
      %v623 = vxor.u32 %v434, 2147483648
      %v624 = vxor.u32 %v438, 2147483648
      %v625 = vxor.u32 %v440, 2147483648
      %v626 = vxor.u32 %v444, 2147483648
      %v627 = vxor.u32 %v446, 2147483648
      %v628 = vxor.u32 %v450, 2147483648
      %v629 = vxor.u32 %v452, 2147483648
      %v630 = vxor.u32 %v456, 2147483648
      %v631 = vxor.u32 %v458, 2147483648
      %v632 = vxor.u32 %v462, 2147483648
      %v633 = vxor.u32 %v464, 2147483648
      %v634 = vxor.u32 %v468, 2147483648
      %v635 = vxor.u32 %v470, 2147483648
      %v636 = vxor.u32 %v474, 2147483648
      %v637 = vxor.u32 %v476, 2147483648
      %v638 = vxor.u32 %v480, 2147483648
      %v639 = vxor.u32 %v482, 2147483648
      %v640 = vxor.u32 %v486, 2147483648
      %v641 = vxor.u32 %v488, 2147483648
      %v642 = vxor.u32 %v492, 2147483648
      %v643 = vxor.u32 %v494, 2147483648
      %v644 = vxor.u32 %v498, 2147483648
      %v645 = vxor.u32 %v500, 2147483648
      %v646 = vxor.u32 %v504, 2147483648
      %v647 = vxor.u32 %v506, 2147483648
      %v648 = vxor.u32 %v510, 2147483648
      %v649 = vxor.u32 %v512, 2147483648
      %v650 = vxor.u32 %v516, 2147483648
      %v651 = vxor.u32 %v518, 2147483648
      %v652 = vxor.u32 %v522, 2147483648
      %v653 = vxor.u32 %v524, 2147483648
      %v654 = vxor.u32 %v528, 2147483648
      %v655 = vxor.u32 %v530, 2147483648
      %v656 = vxor.u32 %v534, 2147483648
      %v657 = vxor.u32 %v536, 2147483648
      %v658 = vxor.u32 %v540, 2147483648
      %v659 = vxor.u32 %v542, 2147483648
      %v660 = vxor.u32 %v546, 2147483648
      %v661 = vxor.u32 %v548, 2147483648
      %v662 = vxor.u32 %v552, 2147483648
      %v663 = vxor.u32 %v554, 2147483648
      %v664 = vxor.u32 %v558, 2147483648
      %v665 = vxor.u32 %v560, 2147483648
      %v666 = vxor.u32 %v564, 2147483648
      %v667 = vxor.u32 %v566, 2147483648
      %v668 = vxor.u32 %v570, 2147483648
      %v669 = vxor.u32 %v572, 2147483648
      %v670 = vmul.f32 %v606, 1.442695
      %v671 = vpow.pop %v670
      %v672 = vmul.f32 %v607, 1.442695
      %v673 = vpow.pop %v672
      %v674 = vmul.f32 %v608, 1.442695
      %v675 = vpow.pop %v674
      %v676 = vmul.f32 %v609, 1.442695
      %v677 = vpow.pop %v676
      %v678 = vmul.f32 %v610, 1.442695
      %v679 = vpow.pop %v678
      %v680 = vmul.f32 %v611, 1.442695
      %v681 = vpow.pop %v680
      %v682 = vmul.f32 %v612, 1.442695
      %v683 = vpow.pop %v682
      %v684 = vmul.f32 %v613, 1.442695
      %v685 = vpow.pop %v684
      %v686 = vmul.f32 %v614, 1.442695
      %v687 = vpow.pop %v686
      %v688 = vmul.f32 %v615, 1.442695
      %v689 = vpow.pop %v688
      %v690 = vmul.f32 %v616, 1.442695
      %v691 = vpow.pop %v690
      %v692 = vmul.f32 %v617, 1.442695
      %v693 = vpow.pop %v692
      %v694 = vmul.f32 %v618, 1.442695
      %v695 = vpow.pop %v694
      %v696 = vmul.f32 %v619, 1.442695
      %v697 = vpow.pop %v696
      %v698 = vmul.f32 %v620, 1.442695
      %v699 = vpow.pop %v698
      %v700 = vmul.f32 %v621, 1.442695
      %v701 = vpow.pop %v700
      %v702 = vmul.f32 %v622, 1.442695
      %v703 = vpow.pop %v702
      %v704 = vmul.f32 %v623, 1.442695
      %v705 = vpow.pop %v704
      %v706 = vmul.f32 %v624, 1.442695
      %v707 = vpow.pop %v706
      %v708 = vmul.f32 %v625, 1.442695
      %v709 = vpow.pop %v708
      %v710 = vmul.f32 %v626, 1.442695
      %v711 = vpow.pop %v710
      %v712 = vmul.f32 %v627, 1.442695
      %v713 = vpow.pop %v712
      %v714 = vmul.f32 %v628, 1.442695
      %v715 = vpow.pop %v714
      %v716 = vmul.f32 %v629, 1.442695
      %v717 = vpow.pop %v716
      %v718 = vmul.f32 %v630, 1.442695
      %v719 = vpow.pop %v718
      %v720 = vmul.f32 %v631, 1.442695
      %v721 = vpow.pop %v720
      %v722 = vmul.f32 %v632, 1.442695
      %v723 = vpow.pop %v722
      %v724 = vmul.f32 %v633, 1.442695
      %v725 = vpow.pop %v724
      %v726 = vmul.f32 %v634, 1.442695
      %v727 = vpow.pop %v726
      %v728 = vmul.f32 %v635, 1.442695
      %v729 = vpow.pop %v728
      %v730 = vmul.f32 %v636, 1.442695
      %v731 = vpow.pop %v730
      %v732 = vmul.f32 %v637, 1.442695
      %v733 = vpow.pop %v732
      %v734 = vmul.f32 %v638, 1.442695
      %v735 = vpow.pop %v734
      %v736 = vmul.f32 %v639, 1.442695
      %v737 = vpow.pop %v736
      %v738 = vmul.f32 %v640, 1.442695
      %v739 = vpow.pop %v738
      %v740 = vmul.f32 %v641, 1.442695
      %v741 = vpow.pop %v740
      %v742 = vmul.f32 %v642, 1.442695
      %v743 = vpow.pop %v742
      %v744 = vmul.f32 %v643, 1.442695
      %v745 = vpow.pop %v744
      %v746 = vmul.f32 %v644, 1.442695
      %v747 = vpow.pop %v746
      %v748 = vmul.f32 %v645, 1.442695
      %v749 = vpow.pop %v748
      %v750 = vmul.f32 %v646, 1.442695
      %v751 = vpow.pop %v750
      %v752 = vmul.f32 %v647, 1.442695
      %v753 = vpow.pop %v752
      %v754 = vmul.f32 %v648, 1.442695
      %v755 = vpow.pop %v754
      %v756 = vmul.f32 %v649, 1.442695
      %v757 = vpow.pop %v756
      %v758 = vmul.f32 %v650, 1.442695
      %v759 = vpow.pop %v758
      %v760 = vmul.f32 %v651, 1.442695
      %v761 = vpow.pop %v760
      %v762 = vmul.f32 %v652, 1.442695
      %v763 = vpow.pop %v762
      %v764 = vmul.f32 %v653, 1.442695
      %v765 = vpow.pop %v764
      %v766 = vmul.f32 %v654, 1.442695
      %v767 = vpow.pop %v766
      %v768 = vmul.f32 %v655, 1.442695
      %v769 = vpow.pop %v768
      %v770 = vmul.f32 %v656, 1.442695
      %v771 = vpow.pop %v770
      %v772 = vmul.f32 %v657, 1.442695
      %v773 = vpow.pop %v772
      %v774 = vmul.f32 %v658, 1.442695
      %v775 = vpow.pop %v774
      %v776 = vmul.f32 %v659, 1.442695
      %v777 = vpow.pop %v776
      %v778 = vmul.f32 %v660, 1.442695
      %v779 = vpow.pop %v778
      %v780 = vmul.f32 %v661, 1.442695
      %v781 = vpow.pop %v780
      %v782 = vmul.f32 %v662, 1.442695
      %v783 = vpow.pop %v782
      %v784 = vmul.f32 %v663, 1.442695
      %v785 = vpow.pop %v784
      %v786 = vmul.f32 %v664, 1.442695
      %v787 = vpow.pop %v786
      %v788 = vmul.f32 %v665, 1.442695
      %v789 = vpow.pop %v788
      %v790 = vmul.f32 %v666, 1.442695
      %v791 = vpow.pop %v790
      %v792 = vmul.f32 %v667, 1.442695
      %v793 = vpow.pop %v792
      %v794 = vmul.f32 %v668, 1.442695
      %v795 = vpow.pop %v794
      %v796 = vmul.f32 %v669, 1.442695
      %v797 = vpow.pop %v796
      %v798 = vadd.f32 %v671, 1.0
      %v799 = vadd.f32 %v673, 1.0
      %v800 = vadd.f32 %v675, 1.0
      %v801 = vadd.f32 %v677, 1.0
      %v802 = vadd.f32 %v679, 1.0
      %v803 = vadd.f32 %v681, 1.0
      %v804 = vadd.f32 %v683, 1.0
      %v805 = vadd.f32 %v685, 1.0
      %v806 = vadd.f32 %v687, 1.0
      %v807 = vadd.f32 %v689, 1.0
      %v808 = vadd.f32 %v691, 1.0
      %v809 = vadd.f32 %v693, 1.0
      %v810 = vadd.f32 %v695, 1.0
      %v811 = vadd.f32 %v697, 1.0
      %v812 = vadd.f32 %v699, 1.0
      %v813 = vadd.f32 %v701, 1.0
      %v814 = vadd.f32 %v703, 1.0
      %v815 = vadd.f32 %v705, 1.0
      %v816 = vadd.f32 %v707, 1.0
      %v817 = vadd.f32 %v709, 1.0
      %v818 = vadd.f32 %v711, 1.0
      %v819 = vadd.f32 %v713, 1.0
      %v820 = vadd.f32 %v715, 1.0
      %v821 = vadd.f32 %v717, 1.0
      %v822 = vadd.f32 %v719, 1.0
      %v823 = vadd.f32 %v721, 1.0
      %v824 = vadd.f32 %v723, 1.0
      %v825 = vadd.f32 %v725, 1.0
      %v826 = vadd.f32 %v727, 1.0
      %v827 = vadd.f32 %v729, 1.0
      %v828 = vadd.f32 %v731, 1.0
      %v829 = vadd.f32 %v733, 1.0
      %v830 = vadd.f32 %v735, 1.0
      %v831 = vadd.f32 %v737, 1.0
      %v832 = vadd.f32 %v739, 1.0
      %v833 = vadd.f32 %v741, 1.0
      %v834 = vadd.f32 %v743, 1.0
      %v835 = vadd.f32 %v745, 1.0
      %v836 = vadd.f32 %v747, 1.0
      %v837 = vadd.f32 %v749, 1.0
      %v838 = vadd.f32 %v751, 1.0
      %v839 = vadd.f32 %v753, 1.0
      %v840 = vadd.f32 %v755, 1.0
      %v841 = vadd.f32 %v757, 1.0
      %v842 = vadd.f32 %v759, 1.0
      %v843 = vadd.f32 %v761, 1.0
      %v844 = vadd.f32 %v763, 1.0
      %v845 = vadd.f32 %v765, 1.0
      %v846 = vadd.f32 %v767, 1.0
      %v847 = vadd.f32 %v769, 1.0
      %v848 = vadd.f32 %v771, 1.0
      %v849 = vadd.f32 %v773, 1.0
      %v850 = vadd.f32 %v775, 1.0
      %v851 = vadd.f32 %v777, 1.0
      %v852 = vadd.f32 %v779, 1.0
      %v853 = vadd.f32 %v781, 1.0
      %v854 = vadd.f32 %v783, 1.0
      %v855 = vadd.f32 %v785, 1.0
      %v856 = vadd.f32 %v787, 1.0
      %v857 = vadd.f32 %v789, 1.0
      %v858 = vadd.f32 %v791, 1.0
      %v859 = vadd.f32 %v793, 1.0
      %v860 = vadd.f32 %v795, 1.0
      %v861 = vadd.f32 %v797, 1.0
      %v862 = vrcp.pop %v798
      %v863 = vmul.f32 1.0, %v862
      %v864 = vrcp.pop %v799
      %v865 = vmul.f32 1.0, %v864
      %v866 = vrcp.pop %v800
      %v867 = vmul.f32 1.0, %v866
      %v868 = vrcp.pop %v801
      %v869 = vmul.f32 1.0, %v868
      %v870 = vrcp.pop %v802
      %v871 = vmul.f32 1.0, %v870
      %v872 = vrcp.pop %v803
      %v873 = vmul.f32 1.0, %v872
      %v874 = vrcp.pop %v804
      %v875 = vmul.f32 1.0, %v874
      %v876 = vrcp.pop %v805
      %v877 = vmul.f32 1.0, %v876
      %v878 = vrcp.pop %v806
      %v879 = vmul.f32 1.0, %v878
      %v880 = vrcp.pop %v807
      %v881 = vmul.f32 1.0, %v880
      %v882 = vrcp.pop %v808
      %v883 = vmul.f32 1.0, %v882
      %v884 = vrcp.pop %v809
      %v885 = vmul.f32 1.0, %v884
      %v886 = vrcp.pop %v810
      %v887 = vmul.f32 1.0, %v886
      %v888 = vrcp.pop %v811
      %v889 = vmul.f32 1.0, %v888
      %v890 = vrcp.pop %v812
      %v891 = vmul.f32 1.0, %v890
      %v892 = vrcp.pop %v813
      %v893 = vmul.f32 1.0, %v892
      %v894 = vrcp.pop %v814
      %v895 = vmul.f32 1.0, %v894
      %v896 = vrcp.pop %v815
      %v897 = vmul.f32 1.0, %v896
      %v898 = vrcp.pop %v816
      %v899 = vmul.f32 1.0, %v898
      %v900 = vrcp.pop %v817
      %v901 = vmul.f32 1.0, %v900
      %v902 = vrcp.pop %v818
      %v903 = vmul.f32 1.0, %v902
      %v904 = vrcp.pop %v819
      %v905 = vmul.f32 1.0, %v904
      %v906 = vrcp.pop %v820
      %v907 = vmul.f32 1.0, %v906
      %v908 = vrcp.pop %v821
      %v909 = vmul.f32 1.0, %v908
      %v910 = vrcp.pop %v822
      %v911 = vmul.f32 1.0, %v910
      %v912 = vrcp.pop %v823
      %v913 = vmul.f32 1.0, %v912
      %v914 = vrcp.pop %v824
      %v915 = vmul.f32 1.0, %v914
      %v916 = vrcp.pop %v825
      %v917 = vmul.f32 1.0, %v916
      %v918 = vrcp.pop %v826
      %v919 = vmul.f32 1.0, %v918
      %v920 = vrcp.pop %v827
      %v921 = vmul.f32 1.0, %v920
      %v922 = vrcp.pop %v828
      %v923 = vmul.f32 1.0, %v922
      %v924 = vrcp.pop %v829
      %v925 = vmul.f32 1.0, %v924
      %v926 = vrcp.pop %v830
      %v927 = vmul.f32 1.0, %v926
      %v928 = vrcp.pop %v831
      %v929 = vmul.f32 1.0, %v928
      %v930 = vrcp.pop %v832
      %v931 = vmul.f32 1.0, %v930
      %v932 = vrcp.pop %v833
      %v933 = vmul.f32 1.0, %v932
      %v934 = vrcp.pop %v834
      %v935 = vmul.f32 1.0, %v934
      %v936 = vrcp.pop %v835
      %v937 = vmul.f32 1.0, %v936
      %v938 = vrcp.pop %v836
      %v939 = vmul.f32 1.0, %v938
      %v940 = vrcp.pop %v837
      %v941 = vmul.f32 1.0, %v940
      %v942 = vrcp.pop %v838
      %v943 = vmul.f32 1.0, %v942
      %v944 = vrcp.pop %v839
      %v945 = vmul.f32 1.0, %v944
      %v946 = vrcp.pop %v840
      %v947 = vmul.f32 1.0, %v946
      %v948 = vrcp.pop %v841
      %v949 = vmul.f32 1.0, %v948
      %v950 = vrcp.pop %v842
      %v951 = vmul.f32 1.0, %v950
      %v952 = vrcp.pop %v843
      %v953 = vmul.f32 1.0, %v952
      %v954 = vrcp.pop %v844
      %v955 = vmul.f32 1.0, %v954
      %v956 = vrcp.pop %v845
      %v957 = vmul.f32 1.0, %v956
      %v958 = vrcp.pop %v846
      %v959 = vmul.f32 1.0, %v958
      %v960 = vrcp.pop %v847
      %v961 = vmul.f32 1.0, %v960
      %v962 = vrcp.pop %v848
      %v963 = vmul.f32 1.0, %v962
      %v964 = vrcp.pop %v849
      %v965 = vmul.f32 1.0, %v964
      %v966 = vrcp.pop %v850
      %v967 = vmul.f32 1.0, %v966
      %v968 = vrcp.pop %v851
      %v969 = vmul.f32 1.0, %v968
      %v970 = vrcp.pop %v852
      %v971 = vmul.f32 1.0, %v970
      %v972 = vrcp.pop %v853
      %v973 = vmul.f32 1.0, %v972
      %v974 = vrcp.pop %v854
      %v975 = vmul.f32 1.0, %v974
      %v976 = vrcp.pop %v855
      %v977 = vmul.f32 1.0, %v976
      %v978 = vrcp.pop %v856
      %v979 = vmul.f32 1.0, %v978
      %v980 = vrcp.pop %v857
      %v981 = vmul.f32 1.0, %v980
      %v982 = vrcp.pop %v858
      %v983 = vmul.f32 1.0, %v982
      %v984 = vrcp.pop %v859
      %v985 = vmul.f32 1.0, %v984
      %v986 = vrcp.pop %v860
      %v987 = vmul.f32 1.0, %v986
      %v988 = vrcp.pop %v861
      %v989 = vmul.f32 1.0, %v988
      %v990 = vtanh.pop %v386
      %v991 = vtanh.pop %v392
      %v992 = vtanh.pop %v398
      %v993 = vtanh.pop %v404
      %v994 = vtanh.pop %v410
      %v995 = vtanh.pop %v416
      %v996 = vtanh.pop %v422
      %v997 = vtanh.pop %v428
      %v998 = vtanh.pop %v434
      %v999 = vtanh.pop %v440
      %v1000 = vtanh.pop %v446
      %v1001 = vtanh.pop %v452
      %v1002 = vtanh.pop %v458
      %v1003 = vtanh.pop %v464
      %v1004 = vtanh.pop %v470
      %v1005 = vtanh.pop %v476
      %v1006 = vtanh.pop %v482
      %v1007 = vtanh.pop %v488
      %v1008 = vtanh.pop %v494
      %v1009 = vtanh.pop %v500
      %v1010 = vtanh.pop %v506
      %v1011 = vtanh.pop %v512
      %v1012 = vtanh.pop %v518
      %v1013 = vtanh.pop %v524
      %v1014 = vtanh.pop %v530
      %v1015 = vtanh.pop %v536
      %v1016 = vtanh.pop %v542
      %v1017 = vtanh.pop %v548
      %v1018 = vtanh.pop %v554
      %v1019 = vtanh.pop %v560
      %v1020 = vtanh.pop %v566
      %v1021 = vtanh.pop %v572
      %v1022 = vmul.f32 %v863, %v990
      %v1023 = vmul.f32 %v867, %v991
      %v1024 = vmul.f32 %v871, %v992
      %v1025 = vmul.f32 %v875, %v993
      %v1026 = vmul.f32 %v879, %v994
      %v1027 = vmul.f32 %v883, %v995
      %v1028 = vmul.f32 %v887, %v996
      %v1029 = vmul.f32 %v891, %v997
      %v1030 = vmul.f32 %v895, %v998
      %v1031 = vmul.f32 %v899, %v999
      %v1032 = vmul.f32 %v903, %v1000
      %v1033 = vmul.f32 %v907, %v1001
      %v1034 = vmul.f32 %v911, %v1002
      %v1035 = vmul.f32 %v915, %v1003
      %v1036 = vmul.f32 %v919, %v1004
      %v1037 = vmul.f32 %v923, %v1005
      %v1038 = vmul.f32 %v927, %v1006
      %v1039 = vmul.f32 %v931, %v1007
      %v1040 = vmul.f32 %v935, %v1008
      %v1041 = vmul.f32 %v939, %v1009
      %v1042 = vmul.f32 %v943, %v1010
      %v1043 = vmul.f32 %v947, %v1011
      %v1044 = vmul.f32 %v951, %v1012
      %v1045 = vmul.f32 %v955, %v1013
      %v1046 = vmul.f32 %v959, %v1014
      %v1047 = vmul.f32 %v963, %v1015
      %v1048 = vmul.f32 %v967, %v1016
      %v1049 = vmul.f32 %v971, %v1017
      %v1050 = vmul.f32 %v975, %v1018
      %v1051 = vmul.f32 %v979, %v1019
      %v1052 = vmul.f32 %v983, %v1020
      %v1053 = vmul.f32 %v987, %v1021
      %v1054 = vtanh.pop %v1022
      %v1055 = vtanh.pop %v1023
      %v1056 = vtanh.pop %v1024
      %v1057 = vtanh.pop %v1025
      %v1058 = vtanh.pop %v1026
      %v1059 = vtanh.pop %v1027
      %v1060 = vtanh.pop %v1028
      %v1061 = vtanh.pop %v1029
      %v1062 = vtanh.pop %v1030
      %v1063 = vtanh.pop %v1031
      %v1064 = vtanh.pop %v1032
      %v1065 = vtanh.pop %v1033
      %v1066 = vtanh.pop %v1034
      %v1067 = vtanh.pop %v1035
      %v1068 = vtanh.pop %v1036
      %v1069 = vtanh.pop %v1037
      %v1070 = vtanh.pop %v1038
      %v1071 = vtanh.pop %v1039
      %v1072 = vtanh.pop %v1040
      %v1073 = vtanh.pop %v1041
      %v1074 = vtanh.pop %v1042
      %v1075 = vtanh.pop %v1043
      %v1076 = vtanh.pop %v1044
      %v1077 = vtanh.pop %v1045
      %v1078 = vtanh.pop %v1046
      %v1079 = vtanh.pop %v1047
      %v1080 = vtanh.pop %v1048
      %v1081 = vtanh.pop %v1049
      %v1082 = vtanh.pop %v1050
      %v1083 = vtanh.pop %v1051
      %v1084 = vtanh.pop %v1052
      %v1085 = vtanh.pop %v1053
      %1118 = vrot.lane.b32.xlu0 %v1054, 64
      %v1119 = vpop.permute.xlu0 %1118
      %1120 = vrot.lane.b32.xlu0 %v1055, 64
      %v1121 = vpop.permute.xlu0 %1120
      %1122 = vrot.lane.b32.xlu0 %v1056, 64
      %v1123 = vpop.permute.xlu0 %1122
      %1124 = vrot.lane.b32.xlu0 %v1057, 64
      %v1125 = vpop.permute.xlu0 %1124
      %1126 = vrot.lane.b32.xlu0 %v1058, 64
      %v1127 = vpop.permute.xlu0 %1126
      %1128 = vrot.lane.b32.xlu0 %v1059, 64
      %v1129 = vpop.permute.xlu0 %1128
      %1130 = vrot.lane.b32.xlu0 %v1060, 64
      %v1131 = vpop.permute.xlu0 %1130
      %1132 = vrot.lane.b32.xlu0 %v1061, 64
      %v1133 = vpop.permute.xlu0 %1132
      %1134 = vrot.lane.b32.xlu0 %v1062, 64
      %v1135 = vpop.permute.xlu0 %1134
      %1136 = vrot.lane.b32.xlu0 %v1063, 64
      %v1137 = vpop.permute.xlu0 %1136
      %1138 = vrot.lane.b32.xlu0 %v1064, 64
      %v1139 = vpop.permute.xlu0 %1138
      %1140 = vrot.lane.b32.xlu0 %v1065, 64
      %v1141 = vpop.permute.xlu0 %1140
      %1142 = vrot.lane.b32.xlu0 %v1066, 64
      %v1143 = vpop.permute.xlu0 %1142
      %1144 = vrot.lane.b32.xlu0 %v1067, 64
      %v1145 = vpop.permute.xlu0 %1144
      %1146 = vrot.lane.b32.xlu0 %v1068, 64
      %v1147 = vpop.permute.xlu0 %1146
      %1148 = vrot.lane.b32.xlu0 %v1069, 64
      %v1149 = vpop.permute.xlu0 %1148
      %1150 = vrot.lane.b32.xlu0 %v1070, 64
      %v1151 = vpop.permute.xlu0 %1150
      %1152 = vrot.lane.b32.xlu0 %v1071, 64
      %v1153 = vpop.permute.xlu0 %1152
      %1154 = vrot.lane.b32.xlu0 %v1072, 64
      %v1155 = vpop.permute.xlu0 %1154
      %1156 = vrot.lane.b32.xlu0 %v1073, 64
      %v1157 = vpop.permute.xlu0 %1156
      %1158 = vrot.lane.b32.xlu0 %v1074, 64
      %v1159 = vpop.permute.xlu0 %1158
      %1160 = vrot.lane.b32.xlu0 %v1075, 64
      %v1161 = vpop.permute.xlu0 %1160
      %1162 = vrot.lane.b32.xlu0 %v1076, 64
      %v1163 = vpop.permute.xlu0 %1162
      %1164 = vrot.lane.b32.xlu0 %v1077, 64
      %v1165 = vpop.permute.xlu0 %1164
      %1166 = vrot.lane.b32.xlu0 %v1078, 64
      %v1167 = vpop.permute.xlu0 %1166
      %1168 = vrot.lane.b32.xlu0 %v1079, 64
      %v1169 = vpop.permute.xlu0 %1168
      %1170 = vrot.lane.b32.xlu0 %v1080, 64
      %v1171 = vpop.permute.xlu0 %1170
      %1172 = vrot.lane.b32.xlu0 %v1081, 64
      %v1173 = vpop.permute.xlu0 %1172
      %1174 = vrot.lane.b32.xlu0 %v1082, 64
      %v1175 = vpop.permute.xlu0 %1174
      %1176 = vrot.lane.b32.xlu0 %v1083, 64
      %v1177 = vpop.permute.xlu0 %1176
      %1178 = vrot.lane.b32.xlu0 %v1084, 64
      %v1179 = vpop.permute.xlu0 %1178
      %1180 = vrot.lane.b32.xlu0 %v1085, 64
      %v1181 = vpop.permute.xlu0 %1180
      %v1214 = vmul.f32 %v865, %v1119
      %v1215 = vmul.f32 %v869, %v1121
      %v1216 = vmul.f32 %v873, %v1123
      %v1217 = vmul.f32 %v877, %v1125
      %v1218 = vmul.f32 %v881, %v1127
      %v1219 = vmul.f32 %v885, %v1129
      %v1220 = vmul.f32 %v889, %v1131
      %v1221 = vmul.f32 %v893, %v1133
      %v1222 = vmul.f32 %v897, %v1135
      %v1223 = vmul.f32 %v901, %v1137
      %v1224 = vmul.f32 %v905, %v1139
      %v1225 = vmul.f32 %v909, %v1141
      %v1226 = vmul.f32 %v913, %v1143
      %v1227 = vmul.f32 %v917, %v1145
      %v1228 = vmul.f32 %v921, %v1147
      %v1229 = vmul.f32 %v925, %v1149
      %v1230 = vmul.f32 %v929, %v1151
      %v1231 = vmul.f32 %v933, %v1153
      %v1232 = vmul.f32 %v937, %v1155
      %v1233 = vmul.f32 %v941, %v1157
      %v1234 = vmul.f32 %v945, %v1159
      %v1235 = vmul.f32 %v949, %v1161
      %v1236 = vmul.f32 %v953, %v1163
      %v1237 = vmul.f32 %v957, %v1165
      %v1238 = vmul.f32 %v961, %v1167
      %v1239 = vmul.f32 %v965, %v1169
      %v1240 = vmul.f32 %v969, %v1171
      %v1241 = vmul.f32 %v973, %v1173
      %v1242 = vmul.f32 %v977, %v1175
      %v1243 = vmul.f32 %v981, %v1177
      %v1244 = vmul.f32 %v985, %v1179
      %v1245 = vmul.f32 %v989, %v1181
      %v1246 = vld [vmem:[%s1 + $0x90] sm:$0xff]
      %v1247 = vld [vmem:[%s1 + $0xa0] sm:$0xff]
      %v1248 = vld [vmem:[%s1 + $0xb0] sm:$0xff]
      %v1249 = vld [vmem:[%s1 + $0xc0] sm:$0xff]
      %v1250 = vld [vmem:[%s2 + $0x2] sm:$0x1]
      %v1252 = vlaneseq
      %v1253 = vshrl.u32 %v1252, 7
      %v1254 = vsub.s32 0, %v1253
      %v1255 = vrot.slane %v1250, %v1254
      %1289 = vrot.lane.b32.xlu0 %v574, 96
      %v1290 = vpop.permute.xlu0 %1289
      %1291 = vrot.lane.b32.xlu0 %v575, 96
      %v1292 = vpop.permute.xlu0 %1291
      %1293 = vrot.lane.b32.xlu0 %v576, 96
      %v1294 = vpop.permute.xlu0 %1293
      %1295 = vrot.lane.b32.xlu0 %v577, 96
      %v1296 = vpop.permute.xlu0 %1295
      %1297 = vrot.lane.b32.xlu0 %v578, 96
      %v1298 = vpop.permute.xlu0 %1297
      %1299 = vrot.lane.b32.xlu0 %v579, 96
      %v1300 = vpop.permute.xlu0 %1299
      %1301 = vrot.lane.b32.xlu0 %v580, 96
      %v1302 = vpop.permute.xlu0 %1301
      %1303 = vrot.lane.b32.xlu0 %v581, 96
      %v1304 = vpop.permute.xlu0 %1303
      %1305 = vrot.lane.b32.xlu0 %v582, 96
      %v1306 = vpop.permute.xlu0 %1305
      %1307 = vrot.lane.b32.xlu0 %v583, 96
      %v1308 = vpop.permute.xlu0 %1307
      %1309 = vrot.lane.b32.xlu0 %v584, 96
      %v1310 = vpop.permute.xlu0 %1309
      %1311 = vrot.lane.b32.xlu0 %v585, 96
      %v1312 = vpop.permute.xlu0 %1311
      %1313 = vrot.lane.b32.xlu0 %v586, 96
      %v1314 = vpop.permute.xlu0 %1313
      %1315 = vrot.lane.b32.xlu0 %v587, 96
      %v1316 = vpop.permute.xlu0 %1315
      %1317 = vrot.lane.b32.xlu0 %v588, 96
      %v1318 = vpop.permute.xlu0 %1317
      %1319 = vrot.lane.b32.xlu0 %v589, 96
      %v1320 = vpop.permute.xlu0 %1319
      %1321 = vrot.lane.b32.xlu0 %v590, 96
      %v1322 = vpop.permute.xlu0 %1321
      %1323 = vrot.lane.b32.xlu0 %v591, 96
      %v1324 = vpop.permute.xlu0 %1323
      %1325 = vrot.lane.b32.xlu0 %v592, 96
      %v1326 = vpop.permute.xlu0 %1325
      %1327 = vrot.lane.b32.xlu0 %v593, 96
      %v1328 = vpop.permute.xlu0 %1327
      %1329 = vrot.lane.b32.xlu0 %v594, 96
      %v1330 = vpop.permute.xlu0 %1329
      %1331 = vrot.lane.b32.xlu0 %v595, 96
      %v1332 = vpop.permute.xlu0 %1331
      %1333 = vrot.lane.b32.xlu0 %v596, 96
      %v1334 = vpop.permute.xlu0 %1333
      %1335 = vrot.lane.b32.xlu0 %v597, 96
      %v1336 = vpop.permute.xlu0 %1335
      %1337 = vrot.lane.b32.xlu0 %v598, 96
      %v1338 = vpop.permute.xlu0 %1337
      %1339 = vrot.lane.b32.xlu0 %v599, 96
      %v1340 = vpop.permute.xlu0 %1339
      %1341 = vrot.lane.b32.xlu0 %v600, 96
      %v1342 = vpop.permute.xlu0 %1341
      %1343 = vrot.lane.b32.xlu0 %v601, 96
      %v1344 = vpop.permute.xlu0 %1343
      %1345 = vrot.lane.b32.xlu0 %v602, 96
      %v1346 = vpop.permute.xlu0 %1345
      %1347 = vrot.lane.b32.xlu0 %v603, 96
      %v1348 = vpop.permute.xlu0 %1347
      %1349 = vrot.lane.b32.xlu0 %v604, 96
      %v1350 = vpop.permute.xlu0 %1349
      %1351 = vrot.lane.b32.xlu0 %v605, 96
      %v1352 = vpop.permute.xlu0 %1351
      %1357 = vrot.lane.b32.xlu0 %v1246, 96
      %v1358 = vpop.permute.xlu0 %1357
      %1359 = vrot.lane.b32.xlu0 %v1247, 96
      %v1360 = vpop.permute.xlu0 %1359
      %1361 = vrot.lane.b32.xlu0 %v1248, 96
      %v1362 = vpop.permute.xlu0 %1361
      %1363 = vrot.lane.b32.xlu0 %v1249, 96
      %v1364 = vpop.permute.xlu0 %1363
      %vm1369 = vcmask 261120
      %v1370 = vsel %vm1369, %v1290, 0
      %v1372 = vsel %vm1369, %v1292, 0
      %v1374 = vsel %vm1369, %v1294, 0
      %v1376 = vsel %vm1369, %v1296, 0
      %v1378 = vsel %vm1369, %v1298, 0
      %v1380 = vsel %vm1369, %v1300, 0
      %v1382 = vsel %vm1369, %v1302, 0
      %v1384 = vsel %vm1369, %v1304, 0
      %v1386 = vsel %vm1369, %v1306, 0
      %v1388 = vsel %vm1369, %v1308, 0
      %v1390 = vsel %vm1369, %v1310, 0
      %v1392 = vsel %vm1369, %v1312, 0
      %v1394 = vsel %vm1369, %v1314, 0
      %v1396 = vsel %vm1369, %v1316, 0
      %v1398 = vsel %vm1369, %v1318, 0
      %v1400 = vsel %vm1369, %v1320, 0
      %v1402 = vsel %vm1369, %v1322, 0
      %v1404 = vsel %vm1369, %v1324, 0
      %v1406 = vsel %vm1369, %v1326, 0
      %v1408 = vsel %vm1369, %v1328, 0
      %v1410 = vsel %vm1369, %v1330, 0
      %v1412 = vsel %vm1369, %v1332, 0
      %v1414 = vsel %vm1369, %v1334, 0
      %v1416 = vsel %vm1369, %v1336, 0
      %v1418 = vsel %vm1369, %v1338, 0
      %v1420 = vsel %vm1369, %v1340, 0
      %v1422 = vsel %vm1369, %v1342, 0
      %v1424 = vsel %vm1369, %v1344, 0
      %v1426 = vsel %vm1369, %v1346, 0
      %v1428 = vsel %vm1369, %v1348, 0
      %v1430 = vsel %vm1369, %v1350, 0
      %v1432 = vsel %vm1369, %v1352, 0
      %1434 = vmatprep.subr.mxu0 0.0
      %1435 = vmatpush1.msra.mxu0 %v1358
      %1436 = vmatprep.subr.mxu0 0.0
      %1437 = vmatpush1.msra.mxu0 %v1360
      %1438 = vmatprep.subr.mxu0 0.0
      %1439 = vmatpush1.msra.mxu0 %v1362
      %1440 = vmatprep.subr.mxu0 0.0
      %1441 = vmatpush1.msra.mxu0 %v1364
      %1442 = vmatprep.subr.mxu0 0.0
      %1443 = vmatpush1.msra.mxu0 0.0
      %1444 = vmatprep.subr.mxu0 0.0
      %1445 = vmatpush1.msra.mxu0 0.0
      %1446 = vmatprep.subr.mxu0 0.0
      %1447 = vmatpush1.msra.mxu0 0.0
      %1448 = vmatprep.subr.mxu0 0.0
      %1449 = vmatpush1.msra.mxu0 0.0
      %1450 = vmatprep.subr.mxu0 0.0
      %1451 = vmatpush1.msra.mxu0 0.0
      %1452 = vmatprep.subr.mxu0 0.0
      %1453 = vmatpush1.msra.mxu0 0.0
      %1454 = vmatprep.subr.mxu0 0.0
      %1455 = vmatpush1.msra.mxu0 0.0
      %1456 = vmatprep.subr.mxu0 0.0
      %1457 = vmatpush1.msra.mxu0 0.0
      %1458 = vmatprep.subr.mxu0 0.0
      %1459 = vmatpush1.msra.mxu0 0.0
      %1460 = vmatprep.subr.mxu0 0.0
      %1461 = vmatpush1.msra.mxu0 0.0
      %1462 = vmatprep.subr.mxu0 0.0
      %1463 = vmatpush1.msra.mxu0 0.0
      %1464 = vmatprep.subr.mxu0 0.0
      %1465 = vmatpush1.msra.mxu0 0.0
      %1466 = vmatprep.subr.mxu0 0.0
      %1467 = vmatpush1.msra.mxu0 0.0
      %1468 = vmatprep.subr.mxu0 0.0
      %1469 = vmatpush1.msra.mxu0 0.0
      %1470 = vmatprep.subr.mxu0 0.0
      %1471 = vmatpush1.msra.mxu0 0.0
      %1472 = vmatprep.subr.mxu0 0.0
      %1473 = vmatpush1.msra.mxu0 0.0
      %1474 = vmatprep.subr.mxu0 0.0
      %1475 = vmatpush1.msra.mxu0 0.0
      %1476 = vmatprep.subr.mxu0 0.0
      %1477 = vmatpush1.msra.mxu0 0.0
      %1478 = vmatprep.subr.mxu0 0.0
      %1479 = vmatpush1.msra.mxu0 0.0
      %1480 = vmatprep.subr.mxu0 0.0
      %1481 = vmatpush1.msra.mxu0 0.0
      %1482 = vmatprep.subr.mxu0 0.0
      %1483 = vmatpush1.msra.mxu0 0.0
      %1484 = vmatprep.subr.mxu0 0.0
      %1485 = vmatpush1.msra.mxu0 0.0
      %1486 = vmatprep.subr.mxu0 0.0
      %1487 = vmatpush1.msra.mxu0 0.0
      %1488 = vmatprep.subr.mxu0 0.0
      %1489 = vmatpush1.msra.mxu0 0.0
      %1490 = vmatprep.subr.mxu0 0.0
      %1491 = vmatpush1.msra.mxu0 0.0
      %1492 = vmatprep.subr.mxu0 0.0
      %1493 = vmatpush1.msra.mxu0 0.0
      %1494 = vmatprep.subr.mxu0 0.0
      %1495 = vmatpush1.msra.mxu0 0.0
      %1496 = vmatprep.subr.mxu0 0.0
      %1497 = vmatpush1.msra.mxu0 0.0
      %1498 = vmatprep.mubr.f32.mxu0 0.0
      %1499 = vmatmul.mubr.f32.gmra.mrb[0].mxu0 %v1370
      %v1500 = vpop.f32.mrb[0].mxu0
      %v1501 = vadd.f32 %v1255, %v1500
      %v1502 = vpop.f32.mrb[0].mxu0
      %1503 = vmatprep.mubr.f32.mxu0 0.0
      %1504 = vmatmul.mubr.f32.gmra.mrb[0].mxu0 %v1372
      %v1505 = vpop.f32.mrb[0].mxu0
      %v1506 = vadd.f32 %v1255, %v1505
      %v1507 = vpop.f32.mrb[0].mxu0
      %1508 = vmatprep.mubr.f32.mxu0 0.0
      %1509 = vmatmul.mubr.f32.gmra.mrb[0].mxu0 %v1374
      %v1510 = vpop.f32.mrb[0].mxu0
      %v1511 = vadd.f32 %v1255, %v1510
      %v1512 = vpop.f32.mrb[0].mxu0
      %1513 = vmatprep.mubr.f32.mxu0 0.0
      %1514 = vmatmul.mubr.f32.gmra.mrb[0].mxu0 %v1376
      %v1515 = vpop.f32.mrb[0].mxu0
      %v1516 = vadd.f32 %v1255, %v1515
      %v1517 = vpop.f32.mrb[0].mxu0
      %1518 = vmatprep.mubr.f32.mxu0 0.0
      %1519 = vmatmul.mubr.f32.gmra.mrb[0].mxu0 %v1378
      %v1520 = vpop.f32.mrb[0].mxu0
      %v1521 = vadd.f32 %v1255, %v1520
      %v1522 = vpop.f32.mrb[0].mxu0
      %1523 = vmatprep.mubr.f32.mxu0 0.0
      %1524 = vmatmul.mubr.f32.gmra.mrb[0].mxu0 %v1380
      %v1525 = vpop.f32.mrb[0].mxu0
      %v1526 = vadd.f32 %v1255, %v1525
      %v1527 = vpop.f32.mrb[0].mxu0
      %1528 = vmatprep.mubr.f32.mxu0 0.0
      %1529 = vmatmul.mubr.f32.gmra.mrb[0].mxu0 %v1382
      %v1530 = vpop.f32.mrb[0].mxu0
      %v1531 = vadd.f32 %v1255, %v1530
      %v1532 = vpop.f32.mrb[0].mxu0
      %1533 = vmatprep.mubr.f32.mxu0 0.0
      %1534 = vmatmul.mubr.f32.gmra.mrb[0].mxu0 %v1384
      %v1535 = vpop.f32.mrb[0].mxu0
      %v1536 = vadd.f32 %v1255, %v1535
      %v1537 = vpop.f32.mrb[0].mxu0
      %1538 = vmatprep.mubr.f32.mxu0 0.0
      %1539 = vmatmul.mubr.f32.gmra.mrb[0].mxu0 %v1386
      %v1540 = vpop.f32.mrb[0].mxu0
      %v1541 = vadd.f32 %v1255, %v1540
      %v1542 = vpop.f32.mrb[0].mxu0
      %1543 = vmatprep.mubr.f32.mxu0 0.0
      %1544 = vmatmul.mubr.f32.gmra.mrb[0].mxu0 %v1388
      %v1545 = vpop.f32.mrb[0].mxu0
      %v1546 = vadd.f32 %v1255, %v1545
      %v1547 = vpop.f32.mrb[0].mxu0
      %1548 = vmatprep.mubr.f32.mxu0 0.0
      %1549 = vmatmul.mubr.f32.gmra.mrb[0].mxu0 %v1390
      %v1550 = vpop.f32.mrb[0].mxu0
      %v1551 = vadd.f32 %v1255, %v1550
      %v1552 = vpop.f32.mrb[0].mxu0
      %1553 = vmatprep.mubr.f32.mxu0 0.0
      %1554 = vmatmul.mubr.f32.gmra.mrb[0].mxu0 %v1392
      %v1555 = vpop.f32.mrb[0].mxu0
      %v1556 = vadd.f32 %v1255, %v1555
      %v1557 = vpop.f32.mrb[0].mxu0
      %1558 = vmatprep.mubr.f32.mxu0 0.0
      %1559 = vmatmul.mubr.f32.gmra.mrb[0].mxu0 %v1394
      %v1560 = vpop.f32.mrb[0].mxu0
      %v1561 = vadd.f32 %v1255, %v1560
      %v1562 = vpop.f32.mrb[0].mxu0
      %1563 = vmatprep.mubr.f32.mxu0 0.0
      %1564 = vmatmul.mubr.f32.gmra.mrb[0].mxu0 %v1396
      %v1565 = vpop.f32.mrb[0].mxu0
      %v1566 = vadd.f32 %v1255, %v1565
      %v1567 = vpop.f32.mrb[0].mxu0
      %1568 = vmatprep.mubr.f32.mxu0 0.0
      %1569 = vmatmul.mubr.f32.gmra.mrb[0].mxu0 %v1398
      %v1570 = vpop.f32.mrb[0].mxu0
      %v1571 = vadd.f32 %v1255, %v1570
      %v1572 = vpop.f32.mrb[0].mxu0
      %1573 = vmatprep.mubr.f32.mxu0 0.0
      %1574 = vmatmul.mubr.f32.gmra.mrb[0].mxu0 %v1400
      %v1575 = vpop.f32.mrb[0].mxu0
      %v1576 = vadd.f32 %v1255, %v1575
      %v1577 = vpop.f32.mrb[0].mxu0
      %1578 = vmatprep.mubr.f32.mxu0 0.0
      %1579 = vmatmul.mubr.f32.gmra.mrb[0].mxu0 %v1402
      %v1580 = vpop.f32.mrb[0].mxu0
      %v1581 = vadd.f32 %v1255, %v1580
      %v1582 = vpop.f32.mrb[0].mxu0
      %1583 = vmatprep.mubr.f32.mxu0 0.0
      %1584 = vmatmul.mubr.f32.gmra.mrb[0].mxu0 %v1404
      %v1585 = vpop.f32.mrb[0].mxu0
      %v1586 = vadd.f32 %v1255, %v1585
      %v1587 = vpop.f32.mrb[0].mxu0
      %1588 = vmatprep.mubr.f32.mxu0 0.0
      %1589 = vmatmul.mubr.f32.gmra.mrb[0].mxu0 %v1406
      %v1590 = vpop.f32.mrb[0].mxu0
      %v1591 = vadd.f32 %v1255, %v1590
      %v1592 = vpop.f32.mrb[0].mxu0
      %1593 = vmatprep.mubr.f32.mxu0 0.0
      %1594 = vmatmul.mubr.f32.gmra.mrb[0].mxu0 %v1408
      %v1595 = vpop.f32.mrb[0].mxu0
      %v1596 = vadd.f32 %v1255, %v1595
      %v1597 = vpop.f32.mrb[0].mxu0
      %1598 = vmatprep.mubr.f32.mxu0 0.0
      %1599 = vmatmul.mubr.f32.gmra.mrb[0].mxu0 %v1410
      %v1600 = vpop.f32.mrb[0].mxu0
      %v1601 = vadd.f32 %v1255, %v1600
      %v1602 = vpop.f32.mrb[0].mxu0
      %1603 = vmatprep.mubr.f32.mxu0 0.0
      %1604 = vmatmul.mubr.f32.gmra.mrb[0].mxu0 %v1412
      %v1605 = vpop.f32.mrb[0].mxu0
      %v1606 = vadd.f32 %v1255, %v1605
      %v1607 = vpop.f32.mrb[0].mxu0
      %1608 = vmatprep.mubr.f32.mxu0 0.0
      %1609 = vmatmul.mubr.f32.gmra.mrb[0].mxu0 %v1414
      %v1610 = vpop.f32.mrb[0].mxu0
      %v1611 = vadd.f32 %v1255, %v1610
      %v1612 = vpop.f32.mrb[0].mxu0
      %1613 = vmatprep.mubr.f32.mxu0 0.0
      %1614 = vmatmul.mubr.f32.gmra.mrb[0].mxu0 %v1416
      %v1615 = vpop.f32.mrb[0].mxu0
      %v1616 = vadd.f32 %v1255, %v1615
      %v1617 = vpop.f32.mrb[0].mxu0
      %1618 = vmatprep.mubr.f32.mxu0 0.0
      %1619 = vmatmul.mubr.f32.gmra.mrb[0].mxu0 %v1418
      %v1620 = vpop.f32.mrb[0].mxu0
      %v1621 = vadd.f32 %v1255, %v1620
      %v1622 = vpop.f32.mrb[0].mxu0
      %1623 = vmatprep.mubr.f32.mxu0 0.0
      %1624 = vmatmul.mubr.f32.gmra.mrb[0].mxu0 %v1420
      %v1625 = vpop.f32.mrb[0].mxu0
      %v1626 = vadd.f32 %v1255, %v1625
      %v1627 = vpop.f32.mrb[0].mxu0
      %1628 = vmatprep.mubr.f32.mxu0 0.0
      %1629 = vmatmul.mubr.f32.gmra.mrb[0].mxu0 %v1422
      %v1630 = vpop.f32.mrb[0].mxu0
      %v1631 = vadd.f32 %v1255, %v1630
      %v1632 = vpop.f32.mrb[0].mxu0
      %1633 = vmatprep.mubr.f32.mxu0 0.0
      %1634 = vmatmul.mubr.f32.gmra.mrb[0].mxu0 %v1424
      %v1635 = vpop.f32.mrb[0].mxu0
      %v1636 = vadd.f32 %v1255, %v1635
      %v1637 = vpop.f32.mrb[0].mxu0
      %1638 = vmatprep.mubr.f32.mxu0 0.0
      %1639 = vmatmul.mubr.f32.gmra.mrb[0].mxu0 %v1426
      %v1640 = vpop.f32.mrb[0].mxu0
      %v1641 = vadd.f32 %v1255, %v1640
      %v1642 = vpop.f32.mrb[0].mxu0
      %1643 = vmatprep.mubr.f32.mxu0 0.0
      %1644 = vmatmul.mubr.f32.gmra.mrb[0].mxu0 %v1428
      %v1645 = vpop.f32.mrb[0].mxu0
      %v1646 = vadd.f32 %v1255, %v1645
      %v1647 = vpop.f32.mrb[0].mxu0
      %1648 = vmatprep.mubr.f32.mxu0 0.0
      %1649 = vmatmul.mubr.f32.gmra.mrb[0].mxu0 %v1430
      %v1650 = vpop.f32.mrb[0].mxu0
      %v1651 = vadd.f32 %v1255, %v1650
      %v1652 = vpop.f32.mrb[0].mxu0
      %1653 = vmatprep.mubr.f32.mxu0 0.0
      %1654 = vmatmul.mubr.f32.gmra.mrb[0].mxu0 %v1432
      %v1655 = vpop.f32.mrb[0].mxu0
      %v1656 = vadd.f32 %v1255, %v1655
      %v1657 = vpop.f32.mrb[0].mxu0
      %1658 = vdwg.mxu0
      %v1659 = vmax.f32 %v1501, 0.0
      %v1660 = vmax.f32 %v1506, 0.0
      %v1661 = vmax.f32 %v1511, 0.0
      %v1662 = vmax.f32 %v1516, 0.0
      %v1663 = vmax.f32 %v1521, 0.0
      %v1664 = vmax.f32 %v1526, 0.0
      %v1665 = vmax.f32 %v1531, 0.0
      %v1666 = vmax.f32 %v1536, 0.0
      %v1667 = vmax.f32 %v1541, 0.0
      %v1668 = vmax.f32 %v1546, 0.0
      %v1669 = vmax.f32 %v1551, 0.0
      %v1670 = vmax.f32 %v1556, 0.0
      %v1671 = vmax.f32 %v1561, 0.0
      %v1672 = vmax.f32 %v1566, 0.0
      %v1673 = vmax.f32 %v1571, 0.0
      %v1674 = vmax.f32 %v1576, 0.0
      %v1675 = vmax.f32 %v1581, 0.0
      %v1676 = vmax.f32 %v1586, 0.0
      %v1677 = vmax.f32 %v1591, 0.0
      %v1678 = vmax.f32 %v1596, 0.0
      %v1679 = vmax.f32 %v1601, 0.0
      %v1680 = vmax.f32 %v1606, 0.0
      %v1681 = vmax.f32 %v1611, 0.0
      %v1682 = vmax.f32 %v1616, 0.0
      %v1683 = vmax.f32 %v1621, 0.0
      %v1684 = vmax.f32 %v1626, 0.0
      %v1685 = vmax.f32 %v1631, 0.0
      %v1686 = vmax.f32 %v1636, 0.0
      %v1687 = vmax.f32 %v1641, 0.0
      %v1688 = vmax.f32 %v1646, 0.0
      %v1689 = vmax.f32 %v1651, 0.0
      %v1690 = vmax.f32 %v1656, 0.0
      %v1691 = vld [vmem:[%s1 + $0x10] sm:$0xff]
      %v1692 = vld [vmem:[%s1 + $0x18] sm:$0xff]
      %v1693 = vld [vmem:[%s1 + $0x20] sm:$0xff]
      %v1694 = vld [vmem:[%s1 + $0x28] sm:$0xff]
      %v1695 = vld [vmem:[%s1 + $0x30] sm:$0xff]
      %v1696 = vld [vmem:[%s1 + $0x38] sm:$0xff]
      %v1697 = vld [vmem:[%s1 + $0x40] sm:$0xff]
      %v1698 = vld [vmem:[%s1 + $0x48] sm:$0xff]
      %v1699 = vld [vmem:[%s1 + $0x50] sm:$0xff]
      %v1700 = vld [vmem:[%s1 + $0x58] sm:$0xff]
      %v1701 = vld [vmem:[%s1 + $0x60] sm:$0xff]
      %v1702 = vld [vmem:[%s1 + $0x68] sm:$0xff]
      %v1703 = vld [vmem:[%s1 + $0x70] sm:$0xff]
      %v1704 = vld [vmem:[%s1 + $0x78] sm:$0xff]
      %v1705 = vld [vmem:[%s1 + $0x80] sm:$0xff]
      %v1706 = vld [vmem:[%s1 + $0x88] sm:$0xff]
      %v1707 = vld [vmem:[%s2 + $0x2] sm:$0x3]
      %v1709 = vlaneseq
      %v1710 = vshrl.u32 %v1709, 7
      %v1711 = vsub.s32 0, %v1710
      %v1712 = vrot.slane %v1707, %v1711
      %v1713 = vlaneseq
      %v1714 = vshrl.u32 %v1713, 7
      %v1715 = vsub.s32 1, %v1714
      %v1716 = vrot.slane %v1707, %v1715
      %1717 = vrot.lane.b32.xlu0 %v1712, 96
      %v1718 = vpop.permute.xlu0 %1717
      %1719 = vrot.lane.b32.xlu0 %v1716, 96
      %v1720 = vpop.permute.xlu0 %1719
      %vm1721 = vcmask 785408
      %v1722 = vsel %vm1721, %v1718, %v1720
      %vm1725 = vcmask 523264
      %v1727 = vsel %vm1725, %v1214, 0
      %v1730 = vsel %vm1725, %v1215, 0
      %v1733 = vsel %vm1725, %v1216, 0
      %v1736 = vsel %vm1725, %v1217, 0
      %v1739 = vsel %vm1725, %v1218, 0
      %v1742 = vsel %vm1725, %v1219, 0
      %v1745 = vsel %vm1725, %v1220, 0
      %v1748 = vsel %vm1725, %v1221, 0
      %v1751 = vsel %vm1725, %v1222, 0
      %v1754 = vsel %vm1725, %v1223, 0
      %v1757 = vsel %vm1725, %v1224, 0
      %v1760 = vsel %vm1725, %v1225, 0
      %v1763 = vsel %vm1725, %v1226, 0
      %v1766 = vsel %vm1725, %v1227, 0
      %v1769 = vsel %vm1725, %v1228, 0
      %v1772 = vsel %vm1725, %v1229, 0
      %v1775 = vsel %vm1725, %v1230, 0
      %v1778 = vsel %vm1725, %v1231, 0
      %v1781 = vsel %vm1725, %v1232, 0
      %v1784 = vsel %vm1725, %v1233, 0
      %v1787 = vsel %vm1725, %v1234, 0
      %v1790 = vsel %vm1725, %v1235, 0
      %v1793 = vsel %vm1725, %v1236, 0
      %v1796 = vsel %vm1725, %v1237, 0
      %v1799 = vsel %vm1725, %v1238, 0
      %v1802 = vsel %vm1725, %v1239, 0
      %v1805 = vsel %vm1725, %v1240, 0
      %v1808 = vsel %vm1725, %v1241, 0
      %v1811 = vsel %vm1725, %v1242, 0
      %v1814 = vsel %vm1725, %v1243, 0
      %v1817 = vsel %vm1725, %v1244, 0
      %v1820 = vsel %vm1725, %v1245, 0
      %1822 = vmatprep.subr.mxu0 %v1692
      %1823 = vmatpush1.msra.mxu0 %v1691
      %1824 = vmatprep.subr.mxu0 %v1694
      %1825 = vmatpush1.msra.mxu0 %v1693
      %1826 = vmatprep.subr.mxu0 %v1696
      %1827 = vmatpush1.msra.mxu0 %v1695
      %1828 = vmatprep.subr.mxu0 %v1698
      %1829 = vmatpush1.msra.mxu0 %v1697
      %1830 = vmatprep.subr.mxu0 %v1700
      %1831 = vmatpush1.msra.mxu0 %v1699
      %1832 = vmatprep.subr.mxu0 %v1702
      %1833 = vmatpush1.msra.mxu0 %v1701
      %1834 = vmatprep.subr.mxu0 %v1704
      %1835 = vmatpush1.msra.mxu0 %v1703
      %1836 = vmatprep.subr.mxu0 %v1706
      %1837 = vmatpush1.msra.mxu0 %v1705
      %1838 = vmatprep.subr.mxu0 0.0
      %1839 = vmatpush1.msra.mxu0 0.0
      %1840 = vmatprep.subr.mxu0 0.0
      %1841 = vmatpush1.msra.mxu0 0.0
      %1842 = vmatprep.subr.mxu0 0.0
      %1843 = vmatpush1.msra.mxu0 0.0
      %1844 = vmatprep.subr.mxu0 0.0
      %1845 = vmatpush1.msra.mxu0 0.0
      %1846 = vmatprep.subr.mxu0 0.0
      %1847 = vmatpush1.msra.mxu0 0.0
      %1848 = vmatprep.subr.mxu0 0.0
      %1849 = vmatpush1.msra.mxu0 0.0
      %1850 = vmatprep.subr.mxu0 0.0
      %1851 = vmatpush1.msra.mxu0 0.0
      %1852 = vmatprep.subr.mxu0 0.0
      %1853 = vmatpush1.msra.mxu0 0.0
      %1854 = vmatprep.subr.mxu0 0.0
      %1855 = vmatpush1.msra.mxu0 0.0
      %1856 = vmatprep.subr.mxu0 0.0
      %1857 = vmatpush1.msra.mxu0 0.0
      %1858 = vmatprep.subr.mxu0 0.0
      %1859 = vmatpush1.msra.mxu0 0.0
      %1860 = vmatprep.subr.mxu0 0.0
      %1861 = vmatpush1.msra.mxu0 0.0
      %1862 = vmatprep.subr.mxu0 0.0
      %1863 = vmatpush1.msra.mxu0 0.0
      %1864 = vmatprep.subr.mxu0 0.0
      %1865 = vmatpush1.msra.mxu0 0.0
      %1866 = vmatprep.subr.mxu0 0.0
      %1867 = vmatpush1.msra.mxu0 0.0
      %1868 = vmatprep.subr.mxu0 0.0
      %1869 = vmatpush1.msra.mxu0 0.0
      %1870 = vmatprep.subr.mxu0 0.0
      %1871 = vmatpush1.msra.mxu0 0.0
      %1872 = vmatprep.subr.mxu0 0.0
      %1873 = vmatpush1.msra.mxu0 0.0
      %1874 = vmatprep.subr.mxu0 0.0
      %1875 = vmatpush1.msra.mxu0 0.0
      %1876 = vmatprep.subr.mxu0 0.0
      %1877 = vmatpush1.msra.mxu0 0.0
      %1878 = vmatprep.subr.mxu0 0.0
      %1879 = vmatpush1.msra.mxu0 0.0
      %1880 = vmatprep.subr.mxu0 0.0
      %1881 = vmatpush1.msra.mxu0 0.0
      %1882 = vmatprep.subr.mxu0 0.0
      %1883 = vmatpush1.msra.mxu0 0.0
      %1884 = vmatprep.subr.mxu0 0.0
      %1885 = vmatpush1.msra.mxu0 0.0
      %1886 = vmatprep.mubr.f32.mxu0 0.0
      %1887 = vmatmul.mubr.f32.gmra.mrb[0].mxu0 %v1727
      %v1888 = vpop.f32.mrb[0].mxu0
      %v1889 = vadd.f32 %v1722, %v1888
      %v1890 = vpop.f32.mrb[0].mxu0
      %v1891 = vadd.f32 %v1720, %v1890
      %1892 = vmatprep.mubr.f32.mxu0 0.0
      %1893 = vmatmul.mubr.f32.gmra.mrb[0].mxu0 %v1730
      %v1894 = vpop.f32.mrb[0].mxu0
      %v1895 = vadd.f32 %v1722, %v1894
      %v1896 = vpop.f32.mrb[0].mxu0
      %v1897 = vadd.f32 %v1720, %v1896
      %1898 = vmatprep.mubr.f32.mxu0 0.0
      %1899 = vmatmul.mubr.f32.gmra.mrb[0].mxu0 %v1733
      %v1900 = vpop.f32.mrb[0].mxu0
      %v1901 = vadd.f32 %v1722, %v1900
      %v1902 = vpop.f32.mrb[0].mxu0
      %v1903 = vadd.f32 %v1720, %v1902
      %1904 = vmatprep.mubr.f32.mxu0 0.0
      %1905 = vmatmul.mubr.f32.gmra.mrb[0].mxu0 %v1736
      %v1906 = vpop.f32.mrb[0].mxu0
      %v1907 = vadd.f32 %v1722, %v1906
      %v1908 = vpop.f32.mrb[0].mxu0
      %v1909 = vadd.f32 %v1720, %v1908
      %1910 = vmatprep.mubr.f32.mxu0 0.0
      %1911 = vmatmul.mubr.f32.gmra.mrb[0].mxu0 %v1739
      %v1912 = vpop.f32.mrb[0].mxu0
      %v1913 = vadd.f32 %v1722, %v1912
      %v1914 = vpop.f32.mrb[0].mxu0
      %v1915 = vadd.f32 %v1720, %v1914
      %1916 = vmatprep.mubr.f32.mxu0 0.0
      %1917 = vmatmul.mubr.f32.gmra.mrb[0].mxu0 %v1742
      %v1918 = vpop.f32.mrb[0].mxu0
      %v1919 = vadd.f32 %v1722, %v1918
      %v1920 = vpop.f32.mrb[0].mxu0
      %v1921 = vadd.f32 %v1720, %v1920
      %1922 = vmatprep.mubr.f32.mxu0 0.0
      %1923 = vmatmul.mubr.f32.gmra.mrb[0].mxu0 %v1745
      %v1924 = vpop.f32.mrb[0].mxu0
      %v1925 = vadd.f32 %v1722, %v1924
      %v1926 = vpop.f32.mrb[0].mxu0
      %v1927 = vadd.f32 %v1720, %v1926
      %1928 = vmatprep.mubr.f32.mxu0 0.0
      %1929 = vmatmul.mubr.f32.gmra.mrb[0].mxu0 %v1748
      %v1930 = vpop.f32.mrb[0].mxu0
      %v1931 = vadd.f32 %v1722, %v1930
      %v1932 = vpop.f32.mrb[0].mxu0
      %v1933 = vadd.f32 %v1720, %v1932
      %1934 = vmatprep.mubr.f32.mxu0 0.0
      %1935 = vmatmul.mubr.f32.gmra.mrb[0].mxu0 %v1751
      %v1936 = vpop.f32.mrb[0].mxu0
      %v1937 = vadd.f32 %v1722, %v1936
      %v1938 = vpop.f32.mrb[0].mxu0
      %v1939 = vadd.f32 %v1720, %v1938
      %1940 = vmatprep.mubr.f32.mxu0 0.0
      %1941 = vmatmul.mubr.f32.gmra.mrb[0].mxu0 %v1754
      %v1942 = vpop.f32.mrb[0].mxu0
      %v1943 = vadd.f32 %v1722, %v1942
      %v1944 = vpop.f32.mrb[0].mxu0
      %v1945 = vadd.f32 %v1720, %v1944
      %1946 = vmatprep.mubr.f32.mxu0 0.0
      %1947 = vmatmul.mubr.f32.gmra.mrb[0].mxu0 %v1757
      %v1948 = vpop.f32.mrb[0].mxu0
      %v1949 = vadd.f32 %v1722, %v1948
      %v1950 = vpop.f32.mrb[0].mxu0
      %v1951 = vadd.f32 %v1720, %v1950
      %1952 = vmatprep.mubr.f32.mxu0 0.0
      %1953 = vmatmul.mubr.f32.gmra.mrb[0].mxu0 %v1760
      %v1954 = vpop.f32.mrb[0].mxu0
      %v1955 = vadd.f32 %v1722, %v1954
      %v1956 = vpop.f32.mrb[0].mxu0
      %v1957 = vadd.f32 %v1720, %v1956
      %1958 = vmatprep.mubr.f32.mxu0 0.0
      %1959 = vmatmul.mubr.f32.gmra.mrb[0].mxu0 %v1763
      %v1960 = vpop.f32.mrb[0].mxu0
      %v1961 = vadd.f32 %v1722, %v1960
      %v1962 = vpop.f32.mrb[0].mxu0
      %v1963 = vadd.f32 %v1720, %v1962
      %1964 = vmatprep.mubr.f32.mxu0 0.0
      %1965 = vmatmul.mubr.f32.gmra.mrb[0].mxu0 %v1766
      %v1966 = vpop.f32.mrb[0].mxu0
      %v1967 = vadd.f32 %v1722, %v1966
      %v1968 = vpop.f32.mrb[0].mxu0
      %v1969 = vadd.f32 %v1720, %v1968
      %1970 = vmatprep.mubr.f32.mxu0 0.0
      %1971 = vmatmul.mubr.f32.gmra.mrb[0].mxu0 %v1769
      %v1972 = vpop.f32.mrb[0].mxu0
      %v1973 = vadd.f32 %v1722, %v1972
      %v1974 = vpop.f32.mrb[0].mxu0
      %v1975 = vadd.f32 %v1720, %v1974
      %1976 = vmatprep.mubr.f32.mxu0 0.0
      %1977 = vmatmul.mubr.f32.gmra.mrb[0].mxu0 %v1772
      %v1978 = vpop.f32.mrb[0].mxu0
      %v1979 = vadd.f32 %v1722, %v1978
      %v1980 = vpop.f32.mrb[0].mxu0
      %v1981 = vadd.f32 %v1720, %v1980
      %1982 = vmatprep.mubr.f32.mxu0 0.0
      %1983 = vmatmul.mubr.f32.gmra.mrb[0].mxu0 %v1775
      %v1984 = vpop.f32.mrb[0].mxu0
      %v1985 = vadd.f32 %v1722, %v1984
      %v1986 = vpop.f32.mrb[0].mxu0
      %v1987 = vadd.f32 %v1720, %v1986
      %1988 = vmatprep.mubr.f32.mxu0 0.0
      %1989 = vmatmul.mubr.f32.gmra.mrb[0].mxu0 %v1778
      %v1990 = vpop.f32.mrb[0].mxu0
      %v1991 = vadd.f32 %v1722, %v1990
      %v1992 = vpop.f32.mrb[0].mxu0
      %v1993 = vadd.f32 %v1720, %v1992
      %1994 = vmatprep.mubr.f32.mxu0 0.0
      %1995 = vmatmul.mubr.f32.gmra.mrb[0].mxu0 %v1781
      %v1996 = vpop.f32.mrb[0].mxu0
      %v1997 = vadd.f32 %v1722, %v1996
      %v1998 = vpop.f32.mrb[0].mxu0
      %v1999 = vadd.f32 %v1720, %v1998
      %2000 = vmatprep.mubr.f32.mxu0 0.0
      %2001 = vmatmul.mubr.f32.gmra.mrb[0].mxu0 %v1784
      %v2002 = vpop.f32.mrb[0].mxu0
      %v2003 = vadd.f32 %v1722, %v2002
      %v2004 = vpop.f32.mrb[0].mxu0
      %v2005 = vadd.f32 %v1720, %v2004
      %2006 = vmatprep.mubr.f32.mxu0 0.0
      %2007 = vmatmul.mubr.f32.gmra.mrb[0].mxu0 %v1787
      %v2008 = vpop.f32.mrb[0].mxu0
      %v2009 = vadd.f32 %v1722, %v2008
      %v2010 = vpop.f32.mrb[0].mxu0
      %v2011 = vadd.f32 %v1720, %v2010
      %2012 = vmatprep.mubr.f32.mxu0 0.0
      %2013 = vmatmul.mubr.f32.gmra.mrb[0].mxu0 %v1790
      %v2014 = vpop.f32.mrb[0].mxu0
      %v2015 = vadd.f32 %v1722, %v2014
      %v2016 = vpop.f32.mrb[0].mxu0
      %v2017 = vadd.f32 %v1720, %v2016
      %2018 = vmatprep.mubr.f32.mxu0 0.0
      %2019 = vmatmul.mubr.f32.gmra.mrb[0].mxu0 %v1793
      %v2020 = vpop.f32.mrb[0].mxu0
      %v2021 = vadd.f32 %v1722, %v2020
      %v2022 = vpop.f32.mrb[0].mxu0
      %v2023 = vadd.f32 %v1720, %v2022
      %2024 = vmatprep.mubr.f32.mxu0 0.0
      %2025 = vmatmul.mubr.f32.gmra.mrb[0].mxu0 %v1796
      %v2026 = vpop.f32.mrb[0].mxu0
      %v2027 = vadd.f32 %v1722, %v2026
      %v2028 = vpop.f32.mrb[0].mxu0
      %v2029 = vadd.f32 %v1720, %v2028
      %2030 = vmatprep.mubr.f32.mxu0 0.0
      %2031 = vmatmul.mubr.f32.gmra.mrb[0].mxu0 %v1799
      %v2032 = vpop.f32.mrb[0].mxu0
      %v2033 = vadd.f32 %v1722, %v2032
      %v2034 = vpop.f32.mrb[0].mxu0
      %v2035 = vadd.f32 %v1720, %v2034
      %2036 = vmatprep.mubr.f32.mxu0 0.0
      %2037 = vmatmul.mubr.f32.gmra.mrb[0].mxu0 %v1802
      %v2038 = vpop.f32.mrb[0].mxu0
      %v2039 = vadd.f32 %v1722, %v2038
      %v2040 = vpop.f32.mrb[0].mxu0
      %v2041 = vadd.f32 %v1720, %v2040
      %2042 = vmatprep.mubr.f32.mxu0 0.0
      %2043 = vmatmul.mubr.f32.gmra.mrb[0].mxu0 %v1805
      %v2044 = vpop.f32.mrb[0].mxu0
      %v2045 = vadd.f32 %v1722, %v2044
      %v2046 = vpop.f32.mrb[0].mxu0
      %v2047 = vadd.f32 %v1720, %v2046
      %2048 = vmatprep.mubr.f32.mxu0 0.0
      %2049 = vmatmul.mubr.f32.gmra.mrb[0].mxu0 %v1808
      %v2050 = vpop.f32.mrb[0].mxu0
      %v2051 = vadd.f32 %v1722, %v2050
      %v2052 = vpop.f32.mrb[0].mxu0
      %v2053 = vadd.f32 %v1720, %v2052
      %2054 = vmatprep.mubr.f32.mxu0 0.0
      %2055 = vmatmul.mubr.f32.gmra.mrb[0].mxu0 %v1811
      %v2056 = vpop.f32.mrb[0].mxu0
      %v2057 = vadd.f32 %v1722, %v2056
      %v2058 = vpop.f32.mrb[0].mxu0
      %v2059 = vadd.f32 %v1720, %v2058
      %2060 = vmatprep.mubr.f32.mxu0 0.0
      %2061 = vmatmul.mubr.f32.gmra.mrb[0].mxu0 %v1814
      %v2062 = vpop.f32.mrb[0].mxu0
      %v2063 = vadd.f32 %v1722, %v2062
      %v2064 = vpop.f32.mrb[0].mxu0
      %v2065 = vadd.f32 %v1720, %v2064
      %2066 = vmatprep.mubr.f32.mxu0 0.0
      %2067 = vmatmul.mubr.f32.gmra.mrb[0].mxu0 %v1817
      %v2068 = vpop.f32.mrb[0].mxu0
      %v2069 = vadd.f32 %v1722, %v2068
      %v2070 = vpop.f32.mrb[0].mxu0
      %v2071 = vadd.f32 %v1720, %v2070
      %2072 = vmatprep.mubr.f32.mxu0 0.0
      %2073 = vmatmul.mubr.f32.gmra.mrb[0].mxu0 %v1820
      %v2074 = vpop.f32.mrb[0].mxu0
      %v2075 = vadd.f32 %v1722, %v2074
      %v2076 = vpop.f32.mrb[0].mxu0
      %v2077 = vadd.f32 %v1720, %v2076
      %2078 = vdwg.mxu0
      %v2079 = vxor.u32 %v1889, 2147483648
      %v2080 = vxor.u32 %v1895, 2147483648
      %v2081 = vxor.u32 %v1901, 2147483648
      %v2082 = vxor.u32 %v1907, 2147483648
      %v2083 = vxor.u32 %v1913, 2147483648
      %v2084 = vxor.u32 %v1919, 2147483648
      %v2085 = vxor.u32 %v1925, 2147483648
      %v2086 = vxor.u32 %v1931, 2147483648
      %v2087 = vxor.u32 %v1937, 2147483648
      %v2088 = vxor.u32 %v1943, 2147483648
      %v2089 = vxor.u32 %v1949, 2147483648
      %v2090 = vxor.u32 %v1955, 2147483648
      %v2091 = vxor.u32 %v1961, 2147483648
      %v2092 = vxor.u32 %v1967, 2147483648
      %v2093 = vxor.u32 %v1973, 2147483648
      %v2094 = vxor.u32 %v1979, 2147483648
      %v2095 = vxor.u32 %v1985, 2147483648
      %v2096 = vxor.u32 %v1991, 2147483648
      %v2097 = vxor.u32 %v1997, 2147483648
      %v2098 = vxor.u32 %v2003, 2147483648
      %v2099 = vxor.u32 %v2009, 2147483648
      %v2100 = vxor.u32 %v2015, 2147483648
      %v2101 = vxor.u32 %v2021, 2147483648
      %v2102 = vxor.u32 %v2027, 2147483648
      %v2103 = vxor.u32 %v2033, 2147483648
      %v2104 = vxor.u32 %v2039, 2147483648
      %v2105 = vxor.u32 %v2045, 2147483648
      %v2106 = vxor.u32 %v2051, 2147483648
      %v2107 = vxor.u32 %v2057, 2147483648
      %v2108 = vxor.u32 %v2063, 2147483648
      %v2109 = vxor.u32 %v2069, 2147483648
      %v2110 = vxor.u32 %v2075, 2147483648
      %v2111 = vmul.f32 %v2079, 1.442695
      %v2112 = vpow.pop %v2111
      %v2113 = vmul.f32 %v2080, 1.442695
      %v2114 = vpow.pop %v2113
      %v2115 = vmul.f32 %v2081, 1.442695
      %v2116 = vpow.pop %v2115
      %v2117 = vmul.f32 %v2082, 1.442695
      %v2118 = vpow.pop %v2117
      %v2119 = vmul.f32 %v2083, 1.442695
      %v2120 = vpow.pop %v2119
      %v2121 = vmul.f32 %v2084, 1.442695
      %v2122 = vpow.pop %v2121
      %v2123 = vmul.f32 %v2085, 1.442695
      %v2124 = vpow.pop %v2123
      %v2125 = vmul.f32 %v2086, 1.442695
      %v2126 = vpow.pop %v2125
      %v2127 = vmul.f32 %v2087, 1.442695
      %v2128 = vpow.pop %v2127
      %v2129 = vmul.f32 %v2088, 1.442695
      %v2130 = vpow.pop %v2129
      %v2131 = vmul.f32 %v2089, 1.442695
      %v2132 = vpow.pop %v2131
      %v2133 = vmul.f32 %v2090, 1.442695
      %v2134 = vpow.pop %v2133
      %v2135 = vmul.f32 %v2091, 1.442695
      %v2136 = vpow.pop %v2135
      %v2137 = vmul.f32 %v2092, 1.442695
      %v2138 = vpow.pop %v2137
      %v2139 = vmul.f32 %v2093, 1.442695
      %v2140 = vpow.pop %v2139
      %v2141 = vmul.f32 %v2094, 1.442695
      %v2142 = vpow.pop %v2141
      %v2143 = vmul.f32 %v2095, 1.442695
      %v2144 = vpow.pop %v2143
      %v2145 = vmul.f32 %v2096, 1.442695
      %v2146 = vpow.pop %v2145
      %v2147 = vmul.f32 %v2097, 1.442695
      %v2148 = vpow.pop %v2147
      %v2149 = vmul.f32 %v2098, 1.442695
      %v2150 = vpow.pop %v2149
      %v2151 = vmul.f32 %v2099, 1.442695
      %v2152 = vpow.pop %v2151
      %v2153 = vmul.f32 %v2100, 1.442695
      %v2154 = vpow.pop %v2153
      %v2155 = vmul.f32 %v2101, 1.442695
      %v2156 = vpow.pop %v2155
      %v2157 = vmul.f32 %v2102, 1.442695
      %v2158 = vpow.pop %v2157
      %v2159 = vmul.f32 %v2103, 1.442695
      %v2160 = vpow.pop %v2159
      %v2161 = vmul.f32 %v2104, 1.442695
      %v2162 = vpow.pop %v2161
      %v2163 = vmul.f32 %v2105, 1.442695
      %v2164 = vpow.pop %v2163
      %v2165 = vmul.f32 %v2106, 1.442695
      %v2166 = vpow.pop %v2165
      %v2167 = vmul.f32 %v2107, 1.442695
      %v2168 = vpow.pop %v2167
      %v2169 = vmul.f32 %v2108, 1.442695
      %v2170 = vpow.pop %v2169
      %v2171 = vmul.f32 %v2109, 1.442695
      %v2172 = vpow.pop %v2171
      %v2173 = vmul.f32 %v2110, 1.442695
      %v2174 = vpow.pop %v2173
      %v2175 = vadd.f32 %v2112, 1.0
      %v2176 = vadd.f32 %v2114, 1.0
      %v2177 = vadd.f32 %v2116, 1.0
      %v2178 = vadd.f32 %v2118, 1.0
      %v2179 = vadd.f32 %v2120, 1.0
      %v2180 = vadd.f32 %v2122, 1.0
      %v2181 = vadd.f32 %v2124, 1.0
      %v2182 = vadd.f32 %v2126, 1.0
      %v2183 = vadd.f32 %v2128, 1.0
      %v2184 = vadd.f32 %v2130, 1.0
      %v2185 = vadd.f32 %v2132, 1.0
      %v2186 = vadd.f32 %v2134, 1.0
      %v2187 = vadd.f32 %v2136, 1.0
      %v2188 = vadd.f32 %v2138, 1.0
      %v2189 = vadd.f32 %v2140, 1.0
      %v2190 = vadd.f32 %v2142, 1.0
      %v2191 = vadd.f32 %v2144, 1.0
      %v2192 = vadd.f32 %v2146, 1.0
      %v2193 = vadd.f32 %v2148, 1.0
      %v2194 = vadd.f32 %v2150, 1.0
      %v2195 = vadd.f32 %v2152, 1.0
      %v2196 = vadd.f32 %v2154, 1.0
      %v2197 = vadd.f32 %v2156, 1.0
      %v2198 = vadd.f32 %v2158, 1.0
      %v2199 = vadd.f32 %v2160, 1.0
      %v2200 = vadd.f32 %v2162, 1.0
      %v2201 = vadd.f32 %v2164, 1.0
      %v2202 = vadd.f32 %v2166, 1.0
      %v2203 = vadd.f32 %v2168, 1.0
      %v2204 = vadd.f32 %v2170, 1.0
      %v2205 = vadd.f32 %v2172, 1.0
      %v2206 = vadd.f32 %v2174, 1.0
      %v2207 = vrcp.pop %v2175
      %v2208 = vmul.f32 1.0, %v2207
      %v2209 = vrcp.pop %v2176
      %v2210 = vmul.f32 1.0, %v2209
      %v2211 = vrcp.pop %v2177
      %v2212 = vmul.f32 1.0, %v2211
      %v2213 = vrcp.pop %v2178
      %v2214 = vmul.f32 1.0, %v2213
      %v2215 = vrcp.pop %v2179
      %v2216 = vmul.f32 1.0, %v2215
      %v2217 = vrcp.pop %v2180
      %v2218 = vmul.f32 1.0, %v2217
      %v2219 = vrcp.pop %v2181
      %v2220 = vmul.f32 1.0, %v2219
      %v2221 = vrcp.pop %v2182
      %v2222 = vmul.f32 1.0, %v2221
      %v2223 = vrcp.pop %v2183
      %v2224 = vmul.f32 1.0, %v2223
      %v2225 = vrcp.pop %v2184
      %v2226 = vmul.f32 1.0, %v2225
      %v2227 = vrcp.pop %v2185
      %v2228 = vmul.f32 1.0, %v2227
      %v2229 = vrcp.pop %v2186
      %v2230 = vmul.f32 1.0, %v2229
      %v2231 = vrcp.pop %v2187
      %v2232 = vmul.f32 1.0, %v2231
      %v2233 = vrcp.pop %v2188
      %v2234 = vmul.f32 1.0, %v2233
      %v2235 = vrcp.pop %v2189
      %v2236 = vmul.f32 1.0, %v2235
      %v2237 = vrcp.pop %v2190
      %v2238 = vmul.f32 1.0, %v2237
      %v2239 = vrcp.pop %v2191
      %v2240 = vmul.f32 1.0, %v2239
      %v2241 = vrcp.pop %v2192
      %v2242 = vmul.f32 1.0, %v2241
      %v2243 = vrcp.pop %v2193
      %v2244 = vmul.f32 1.0, %v2243
      %v2245 = vrcp.pop %v2194
      %v2246 = vmul.f32 1.0, %v2245
      %v2247 = vrcp.pop %v2195
      %v2248 = vmul.f32 1.0, %v2247
      %v2249 = vrcp.pop %v2196
      %v2250 = vmul.f32 1.0, %v2249
      %v2251 = vrcp.pop %v2197
      %v2252 = vmul.f32 1.0, %v2251
      %v2253 = vrcp.pop %v2198
      %v2254 = vmul.f32 1.0, %v2253
      %v2255 = vrcp.pop %v2199
      %v2256 = vmul.f32 1.0, %v2255
      %v2257 = vrcp.pop %v2200
      %v2258 = vmul.f32 1.0, %v2257
      %v2259 = vrcp.pop %v2201
      %v2260 = vmul.f32 1.0, %v2259
      %v2261 = vrcp.pop %v2202
      %v2262 = vmul.f32 1.0, %v2261
      %v2263 = vrcp.pop %v2203
      %v2264 = vmul.f32 1.0, %v2263
      %v2265 = vrcp.pop %v2204
      %v2266 = vmul.f32 1.0, %v2265
      %v2267 = vrcp.pop %v2205
      %v2268 = vmul.f32 1.0, %v2267
      %v2269 = vrcp.pop %v2206
      %v2270 = vmul.f32 1.0, %v2269
      %v2271 = vtanh.pop %v1891
      %v2272 = vtanh.pop %v1897
      %v2273 = vtanh.pop %v1903
      %v2274 = vtanh.pop %v1909
      %v2275 = vtanh.pop %v1915
      %v2276 = vtanh.pop %v1921
      %v2277 = vtanh.pop %v1927
      %v2278 = vtanh.pop %v1933
      %v2279 = vtanh.pop %v1939
      %v2280 = vtanh.pop %v1945
      %v2281 = vtanh.pop %v1951
      %v2282 = vtanh.pop %v1957
      %v2283 = vtanh.pop %v1963
      %v2284 = vtanh.pop %v1969
      %v2285 = vtanh.pop %v1975
      %v2286 = vtanh.pop %v1981
      %v2287 = vtanh.pop %v1987
      %v2288 = vtanh.pop %v1993
      %v2289 = vtanh.pop %v1999
      %v2290 = vtanh.pop %v2005
      %v2291 = vtanh.pop %v2011
      %v2292 = vtanh.pop %v2017
      %v2293 = vtanh.pop %v2023
      %v2294 = vtanh.pop %v2029
      %v2295 = vtanh.pop %v2035
      %v2296 = vtanh.pop %v2041
      %v2297 = vtanh.pop %v2047
      %v2298 = vtanh.pop %v2053
      %v2299 = vtanh.pop %v2059
      %v2300 = vtanh.pop %v2065
      %v2301 = vtanh.pop %v2071
      %v2302 = vtanh.pop %v2077
      %v2303 = vmul.f32 %v2208, %v2271
      %v2304 = vmul.f32 %v2210, %v2272
      %v2305 = vmul.f32 %v2212, %v2273
      %v2306 = vmul.f32 %v2214, %v2274
      %v2307 = vmul.f32 %v2216, %v2275
      %v2308 = vmul.f32 %v2218, %v2276
      %v2309 = vmul.f32 %v2220, %v2277
      %v2310 = vmul.f32 %v2222, %v2278
      %v2311 = vmul.f32 %v2224, %v2279
      %v2312 = vmul.f32 %v2226, %v2280
      %v2313 = vmul.f32 %v2228, %v2281
      %v2314 = vmul.f32 %v2230, %v2282
      %v2315 = vmul.f32 %v2232, %v2283
      %v2316 = vmul.f32 %v2234, %v2284
      %v2317 = vmul.f32 %v2236, %v2285
      %v2318 = vmul.f32 %v2238, %v2286
      %v2319 = vmul.f32 %v2240, %v2287
      %v2320 = vmul.f32 %v2242, %v2288
      %v2321 = vmul.f32 %v2244, %v2289
      %v2322 = vmul.f32 %v2246, %v2290
      %v2323 = vmul.f32 %v2248, %v2291
      %v2324 = vmul.f32 %v2250, %v2292
      %v2325 = vmul.f32 %v2252, %v2293
      %v2326 = vmul.f32 %v2254, %v2294
      %v2327 = vmul.f32 %v2256, %v2295
      %v2328 = vmul.f32 %v2258, %v2296
      %v2329 = vmul.f32 %v2260, %v2297
      %v2330 = vmul.f32 %v2262, %v2298
      %v2331 = vmul.f32 %v2264, %v2299
      %v2332 = vmul.f32 %v2266, %v2300
      %v2333 = vmul.f32 %v2268, %v2301
      %v2334 = vmul.f32 %v2270, %v2302
      %v2335 = vtanh.pop %v2303
      %v2336 = vtanh.pop %v2304
      %v2337 = vtanh.pop %v2305
      %v2338 = vtanh.pop %v2306
      %v2339 = vtanh.pop %v2307
      %v2340 = vtanh.pop %v2308
      %v2341 = vtanh.pop %v2309
      %v2342 = vtanh.pop %v2310
      %v2343 = vtanh.pop %v2311
      %v2344 = vtanh.pop %v2312
      %v2345 = vtanh.pop %v2313
      %v2346 = vtanh.pop %v2314
      %v2347 = vtanh.pop %v2315
      %v2348 = vtanh.pop %v2316
      %v2349 = vtanh.pop %v2317
      %v2350 = vtanh.pop %v2318
      %v2351 = vtanh.pop %v2319
      %v2352 = vtanh.pop %v2320
      %v2353 = vtanh.pop %v2321
      %v2354 = vtanh.pop %v2322
      %v2355 = vtanh.pop %v2323
      %v2356 = vtanh.pop %v2324
      %v2357 = vtanh.pop %v2325
      %v2358 = vtanh.pop %v2326
      %v2359 = vtanh.pop %v2327
      %v2360 = vtanh.pop %v2328
      %v2361 = vtanh.pop %v2329
      %v2362 = vtanh.pop %v2330
      %v2363 = vtanh.pop %v2331
      %v2364 = vtanh.pop %v2332
      %v2365 = vtanh.pop %v2333
      %v2366 = vtanh.pop %v2334
      %2399 = vrot.lane.b32.xlu0 %v2335, 64
      %v2400 = vpop.permute.xlu0 %2399
      %2401 = vrot.lane.b32.xlu0 %v2336, 64
      %v2402 = vpop.permute.xlu0 %2401
      %2403 = vrot.lane.b32.xlu0 %v2337, 64
      %v2404 = vpop.permute.xlu0 %2403
      %2405 = vrot.lane.b32.xlu0 %v2338, 64
      %v2406 = vpop.permute.xlu0 %2405
      %2407 = vrot.lane.b32.xlu0 %v2339, 64
      %v2408 = vpop.permute.xlu0 %2407
      %2409 = vrot.lane.b32.xlu0 %v2340, 64
      %v2410 = vpop.permute.xlu0 %2409
      %2411 = vrot.lane.b32.xlu0 %v2341, 64
      %v2412 = vpop.permute.xlu0 %2411
      %2413 = vrot.lane.b32.xlu0 %v2342, 64
      %v2414 = vpop.permute.xlu0 %2413
      %2415 = vrot.lane.b32.xlu0 %v2343, 64
      %v2416 = vpop.permute.xlu0 %2415
      %2417 = vrot.lane.b32.xlu0 %v2344, 64
      %v2418 = vpop.permute.xlu0 %2417
      %2419 = vrot.lane.b32.xlu0 %v2345, 64
      %v2420 = vpop.permute.xlu0 %2419
      %2421 = vrot.lane.b32.xlu0 %v2346, 64
      %v2422 = vpop.permute.xlu0 %2421
      %2423 = vrot.lane.b32.xlu0 %v2347, 64
      %v2424 = vpop.permute.xlu0 %2423
      %2425 = vrot.lane.b32.xlu0 %v2348, 64
      %v2426 = vpop.permute.xlu0 %2425
      %2427 = vrot.lane.b32.xlu0 %v2349, 64
      %v2428 = vpop.permute.xlu0 %2427
      %2429 = vrot.lane.b32.xlu0 %v2350, 64
      %v2430 = vpop.permute.xlu0 %2429
      %2431 = vrot.lane.b32.xlu0 %v2351, 64
      %v2432 = vpop.permute.xlu0 %2431
      %2433 = vrot.lane.b32.xlu0 %v2352, 64
      %v2434 = vpop.permute.xlu0 %2433
      %2435 = vrot.lane.b32.xlu0 %v2353, 64
      %v2436 = vpop.permute.xlu0 %2435
      %2437 = vrot.lane.b32.xlu0 %v2354, 64
      %v2438 = vpop.permute.xlu0 %2437
      %2439 = vrot.lane.b32.xlu0 %v2355, 64
      %v2440 = vpop.permute.xlu0 %2439
      %2441 = vrot.lane.b32.xlu0 %v2356, 64
      %v2442 = vpop.permute.xlu0 %2441
      %2443 = vrot.lane.b32.xlu0 %v2357, 64
      %v2444 = vpop.permute.xlu0 %2443
      %2445 = vrot.lane.b32.xlu0 %v2358, 64
      %v2446 = vpop.permute.xlu0 %2445
      %2447 = vrot.lane.b32.xlu0 %v2359, 64
      %v2448 = vpop.permute.xlu0 %2447
      %2449 = vrot.lane.b32.xlu0 %v2360, 64
      %v2450 = vpop.permute.xlu0 %2449
      %2451 = vrot.lane.b32.xlu0 %v2361, 64
      %v2452 = vpop.permute.xlu0 %2451
      %2453 = vrot.lane.b32.xlu0 %v2362, 64
      %v2454 = vpop.permute.xlu0 %2453
      %2455 = vrot.lane.b32.xlu0 %v2363, 64
      %v2456 = vpop.permute.xlu0 %2455
      %2457 = vrot.lane.b32.xlu0 %v2364, 64
      %v2458 = vpop.permute.xlu0 %2457
      %2459 = vrot.lane.b32.xlu0 %v2365, 64
      %v2460 = vpop.permute.xlu0 %2459
      %2461 = vrot.lane.b32.xlu0 %v2366, 64
      %v2462 = vpop.permute.xlu0 %2461
      %v2495 = vmul.f32 %v2208, %v2400
      %v2496 = vmul.f32 %v2210, %v2402
      %v2497 = vmul.f32 %v2212, %v2404
      %v2498 = vmul.f32 %v2214, %v2406
      %v2499 = vmul.f32 %v2216, %v2408
      %v2500 = vmul.f32 %v2218, %v2410
      %v2501 = vmul.f32 %v2220, %v2412
      %v2502 = vmul.f32 %v2222, %v2414
      %v2503 = vmul.f32 %v2224, %v2416
      %v2504 = vmul.f32 %v2226, %v2418
      %v2505 = vmul.f32 %v2228, %v2420
      %v2506 = vmul.f32 %v2230, %v2422
      %v2507 = vmul.f32 %v2232, %v2424
      %v2508 = vmul.f32 %v2234, %v2426
      %v2509 = vmul.f32 %v2236, %v2428
      %v2510 = vmul.f32 %v2238, %v2430
      %v2511 = vmul.f32 %v2240, %v2432
      %v2512 = vmul.f32 %v2242, %v2434
      %v2513 = vmul.f32 %v2244, %v2436
      %v2514 = vmul.f32 %v2246, %v2438
      %v2515 = vmul.f32 %v2248, %v2440
      %v2516 = vmul.f32 %v2250, %v2442
      %v2517 = vmul.f32 %v2252, %v2444
      %v2518 = vmul.f32 %v2254, %v2446
      %v2519 = vmul.f32 %v2256, %v2448
      %v2520 = vmul.f32 %v2258, %v2450
      %v2521 = vmul.f32 %v2260, %v2452
      %v2522 = vmul.f32 %v2262, %v2454
      %v2523 = vmul.f32 %v2264, %v2456
      %v2524 = vmul.f32 %v2266, %v2458
      %v2525 = vmul.f32 %v2268, %v2460
      %v2526 = vmul.f32 %v2270, %v2462
      %2527 = vst.msk [vmem:[#allocation2] sm:$0xff] %vm1369, %v574
      %2528 = vst.msk [vmem:[#allocation2 + $0x8] sm:$0xff] %vm1369, %v575
      %2529 = vst.msk [vmem:[#allocation2 + $0x10] sm:$0xff] %vm1369, %v576
      %2530 = vst.msk [vmem:[#allocation2 + $0x18] sm:$0xff] %vm1369, %v577
      %2531 = vst.msk [vmem:[#allocation2 + $0x20] sm:$0xff] %vm1369, %v578
      %2532 = vst.msk [vmem:[#allocation2 + $0x28] sm:$0xff] %vm1369, %v579
      %2533 = vst.msk [vmem:[#allocation2 + $0x30] sm:$0xff] %vm1369, %v580
      %2534 = vst.msk [vmem:[#allocation2 + $0x38] sm:$0xff] %vm1369, %v581
      %2535 = vst.msk [vmem:[#allocation2 + $0x40] sm:$0xff] %vm1369, %v582
      %2536 = vst.msk [vmem:[#allocation2 + $0x48] sm:$0xff] %vm1369, %v583
      %2537 = vst.msk [vmem:[#allocation2 + $0x50] sm:$0xff] %vm1369, %v584
      %2538 = vst.msk [vmem:[#allocation2 + $0x58] sm:$0xff] %vm1369, %v585
      %2539 = vst.msk [vmem:[#allocation2 + $0x60] sm:$0xff] %vm1369, %v586
      %2540 = vst.msk [vmem:[#allocation2 + $0x68] sm:$0xff] %vm1369, %v587
      %2541 = vst.msk [vmem:[#allocation2 + $0x70] sm:$0xff] %vm1369, %v588
      %2542 = vst.msk [vmem:[#allocation2 + $0x78] sm:$0xff] %vm1369, %v589
      %2543 = vst.msk [vmem:[#allocation2 + $0x80] sm:$0xff] %vm1369, %v590
      %2544 = vst.msk [vmem:[#allocation2 + $0x88] sm:$0xff] %vm1369, %v591
      %2545 = vst.msk [vmem:[#allocation2 + $0x90] sm:$0xff] %vm1369, %v592
      %2546 = vst.msk [vmem:[#allocation2 + $0x98] sm:$0xff] %vm1369, %v593
      %2547 = vst.msk [vmem:[#allocation2 + $0xa0] sm:$0xff] %vm1369, %v594
      %2548 = vst.msk [vmem:[#allocation2 + $0xa8] sm:$0xff] %vm1369, %v595
      %2549 = vst.msk [vmem:[#allocation2 + $0xb0] sm:$0xff] %vm1369, %v596
      %2550 = vst.msk [vmem:[#allocation2 + $0xb8] sm:$0xff] %vm1369, %v597
      %2551 = vst.msk [vmem:[#allocation2 + $0xc0] sm:$0xff] %vm1369, %v598
      %2552 = vst.msk [vmem:[#allocation2 + $0xc8] sm:$0xff] %vm1369, %v599
      %2553 = vst.msk [vmem:[#allocation2 + $0xd0] sm:$0xff] %vm1369, %v600
      %2554 = vst.msk [vmem:[#allocation2 + $0xd8] sm:$0xff] %vm1369, %v601
      %2555 = vst.msk [vmem:[#allocation2 + $0xe0] sm:$0xff] %vm1369, %v602
      %2556 = vst.msk [vmem:[#allocation2 + $0xe8] sm:$0xff] %vm1369, %v603
      %2557 = vst.msk [vmem:[#allocation2 + $0xf0] sm:$0xff] %vm1369, %v604
      %2558 = vst.msk [vmem:[#allocation2 + $0xf8] sm:$0xff] %vm1369, %v605
      %2591 = vrot.lane.b32.xlu0 %v1659, 32
      %v2592 = vpop.permute.xlu0 %2591
      %2593 = vrot.lane.b32.xlu0 %v1660, 32
      %v2594 = vpop.permute.xlu0 %2593
      %2595 = vrot.lane.b32.xlu0 %v1661, 32
      %v2596 = vpop.permute.xlu0 %2595
      %2597 = vrot.lane.b32.xlu0 %v1662, 32
      %v2598 = vpop.permute.xlu0 %2597
      %2599 = vrot.lane.b32.xlu0 %v1663, 32
      %v2600 = vpop.permute.xlu0 %2599
      %2601 = vrot.lane.b32.xlu0 %v1664, 32
      %v2602 = vpop.permute.xlu0 %2601
      %2603 = vrot.lane.b32.xlu0 %v1665, 32
      %v2604 = vpop.permute.xlu0 %2603
      %2605 = vrot.lane.b32.xlu0 %v1666, 32
      %v2606 = vpop.permute.xlu0 %2605
      %2607 = vrot.lane.b32.xlu0 %v1667, 32
      %v2608 = vpop.permute.xlu0 %2607
      %2609 = vrot.lane.b32.xlu0 %v1668, 32
      %v2610 = vpop.permute.xlu0 %2609
      %2611 = vrot.lane.b32.xlu0 %v1669, 32
      %v2612 = vpop.permute.xlu0 %2611
      %2613 = vrot.lane.b32.xlu0 %v1670, 32
      %v2614 = vpop.permute.xlu0 %2613
      %2615 = vrot.lane.b32.xlu0 %v1671, 32
      %v2616 = vpop.permute.xlu0 %2615
      %2617 = vrot.lane.b32.xlu0 %v1672, 32
      %v2618 = vpop.permute.xlu0 %2617
      %2619 = vrot.lane.b32.xlu0 %v1673, 32
      %v2620 = vpop.permute.xlu0 %2619
      %2621 = vrot.lane.b32.xlu0 %v1674, 32
      %v2622 = vpop.permute.xlu0 %2621
      %2623 = vrot.lane.b32.xlu0 %v1675, 32
      %v2624 = vpop.permute.xlu0 %2623
      %2625 = vrot.lane.b32.xlu0 %v1676, 32
      %v2626 = vpop.permute.xlu0 %2625
      %2627 = vrot.lane.b32.xlu0 %v1677, 32
      %v2628 = vpop.permute.xlu0 %2627
      %2629 = vrot.lane.b32.xlu0 %v1678, 32
      %v2630 = vpop.permute.xlu0 %2629
      %2631 = vrot.lane.b32.xlu0 %v1679, 32
      %v2632 = vpop.permute.xlu0 %2631
      %2633 = vrot.lane.b32.xlu0 %v1680, 32
      %v2634 = vpop.permute.xlu0 %2633
      %2635 = vrot.lane.b32.xlu0 %v1681, 32
      %v2636 = vpop.permute.xlu0 %2635
      %2637 = vrot.lane.b32.xlu0 %v1682, 32
      %v2638 = vpop.permute.xlu0 %2637
      %2639 = vrot.lane.b32.xlu0 %v1683, 32
      %v2640 = vpop.permute.xlu0 %2639
      %2641 = vrot.lane.b32.xlu0 %v1684, 32
      %v2642 = vpop.permute.xlu0 %2641
      %2643 = vrot.lane.b32.xlu0 %v1685, 32
      %v2644 = vpop.permute.xlu0 %2643
      %2645 = vrot.lane.b32.xlu0 %v1686, 32
      %v2646 = vpop.permute.xlu0 %2645
      %2647 = vrot.lane.b32.xlu0 %v1687, 32
      %v2648 = vpop.permute.xlu0 %2647
      %2649 = vrot.lane.b32.xlu0 %v1688, 32
      %v2650 = vpop.permute.xlu0 %2649
      %2651 = vrot.lane.b32.xlu0 %v1689, 32
      %v2652 = vpop.permute.xlu0 %2651
      %2653 = vrot.lane.b32.xlu0 %v1690, 32
      %v2654 = vpop.permute.xlu0 %2653
      %vm2687 = vcmask 523520
      %2688 = vst.msk [vmem:[#allocation2] sm:$0xff] %vm2687, %v2592
      %2689 = vst.msk [vmem:[#allocation2 + $0x8] sm:$0xff] %vm2687, %v2594
      %2690 = vst.msk [vmem:[#allocation2 + $0x10] sm:$0xff] %vm2687, %v2596
      %2691 = vst.msk [vmem:[#allocation2 + $0x18] sm:$0xff] %vm2687, %v2598
      %2692 = vst.msk [vmem:[#allocation2 + $0x20] sm:$0xff] %vm2687, %v2600
      %2693 = vst.msk [vmem:[#allocation2 + $0x28] sm:$0xff] %vm2687, %v2602
      %2694 = vst.msk [vmem:[#allocation2 + $0x30] sm:$0xff] %vm2687, %v2604
      %2695 = vst.msk [vmem:[#allocation2 + $0x38] sm:$0xff] %vm2687, %v2606
      %2696 = vst.msk [vmem:[#allocation2 + $0x40] sm:$0xff] %vm2687, %v2608
      %2697 = vst.msk [vmem:[#allocation2 + $0x48] sm:$0xff] %vm2687, %v2610
      %2698 = vst.msk [vmem:[#allocation2 + $0x50] sm:$0xff] %vm2687, %v2612
      %2699 = vst.msk [vmem:[#allocation2 + $0x58] sm:$0xff] %vm2687, %v2614
      %2700 = vst.msk [vmem:[#allocation2 + $0x60] sm:$0xff] %vm2687, %v2616
      %2701 = vst.msk [vmem:[#allocation2 + $0x68] sm:$0xff] %vm2687, %v2618
      %2702 = vst.msk [vmem:[#allocation2 + $0x70] sm:$0xff] %vm2687, %v2620
      %2703 = vst.msk [vmem:[#allocation2 + $0x78] sm:$0xff] %vm2687, %v2622
      %2704 = vst.msk [vmem:[#allocation2 + $0x80] sm:$0xff] %vm2687, %v2624
      %2705 = vst.msk [vmem:[#allocation2 + $0x88] sm:$0xff] %vm2687, %v2626
      %2706 = vst.msk [vmem:[#allocation2 + $0x90] sm:$0xff] %vm2687, %v2628
      %2707 = vst.msk [vmem:[#allocation2 + $0x98] sm:$0xff] %vm2687, %v2630
      %2708 = vst.msk [vmem:[#allocation2 + $0xa0] sm:$0xff] %vm2687, %v2632
      %2709 = vst.msk [vmem:[#allocation2 + $0xa8] sm:$0xff] %vm2687, %v2634
      %2710 = vst.msk [vmem:[#allocation2 + $0xb0] sm:$0xff] %vm2687, %v2636
      %2711 = vst.msk [vmem:[#allocation2 + $0xb8] sm:$0xff] %vm2687, %v2638
      %2712 = vst.msk [vmem:[#allocation2 + $0xc0] sm:$0xff] %vm2687, %v2640
      %2713 = vst.msk [vmem:[#allocation2 + $0xc8] sm:$0xff] %vm2687, %v2642
      %2714 = vst.msk [vmem:[#allocation2 + $0xd0] sm:$0xff] %vm2687, %v2644
      %2715 = vst.msk [vmem:[#allocation2 + $0xd8] sm:$0xff] %vm2687, %v2646
      %2716 = vst.msk [vmem:[#allocation2 + $0xe0] sm:$0xff] %vm2687, %v2648
      %2717 = vst.msk [vmem:[#allocation2 + $0xe8] sm:$0xff] %vm2687, %v2650
      %2718 = vst.msk [vmem:[#allocation2 + $0xf0] sm:$0xff] %vm2687, %v2652
      %2719 = vst.msk [vmem:[#allocation2 + $0xf8] sm:$0xff] %vm2687, %v2654
      %vm2720 = vcmask 1048064
      %2721 = vst.msk [vmem:[#allocation2] sm:$0xff] %vm2720, %v2495
      %2722 = vst.msk [vmem:[#allocation2 + $0x8] sm:$0xff] %vm2720, %v2496
      %2723 = vst.msk [vmem:[#allocation2 + $0x10] sm:$0xff] %vm2720, %v2497
      %2724 = vst.msk [vmem:[#allocation2 + $0x18] sm:$0xff] %vm2720, %v2498
      %2725 = vst.msk [vmem:[#allocation2 + $0x20] sm:$0xff] %vm2720, %v2499
      %2726 = vst.msk [vmem:[#allocation2 + $0x28] sm:$0xff] %vm2720, %v2500
      %2727 = vst.msk [vmem:[#allocation2 + $0x30] sm:$0xff] %vm2720, %v2501
      %2728 = vst.msk [vmem:[#allocation2 + $0x38] sm:$0xff] %vm2720, %v2502
      %2729 = vst.msk [vmem:[#allocation2 + $0x40] sm:$0xff] %vm2720, %v2503
      %2730 = vst.msk [vmem:[#allocation2 + $0x48] sm:$0xff] %vm2720, %v2504
      %2731 = vst.msk [vmem:[#allocation2 + $0x50] sm:$0xff] %vm2720, %v2505
      %2732 = vst.msk [vmem:[#allocation2 + $0x58] sm:$0xff] %vm2720, %v2506
      %2733 = vst.msk [vmem:[#allocation2 + $0x60] sm:$0xff] %vm2720, %v2507
      %2734 = vst.msk [vmem:[#allocation2 + $0x68] sm:$0xff] %vm2720, %v2508
      %2735 = vst.msk [vmem:[#allocation2 + $0x70] sm:$0xff] %vm2720, %v2509
      %2736 = vst.msk [vmem:[#allocation2 + $0x78] sm:$0xff] %vm2720, %v2510
      %2737 = vst.msk [vmem:[#allocation2 + $0x80] sm:$0xff] %vm2720, %v2511
      %2738 = vst.msk [vmem:[#allocation2 + $0x88] sm:$0xff] %vm2720, %v2512
      %2739 = vst.msk [vmem:[#allocation2 + $0x90] sm:$0xff] %vm2720, %v2513
      %2740 = vst.msk [vmem:[#allocation2 + $0x98] sm:$0xff] %vm2720, %v2514
      %2741 = vst.msk [vmem:[#allocation2 + $0xa0] sm:$0xff] %vm2720, %v2515
      %2742 = vst.msk [vmem:[#allocation2 + $0xa8] sm:$0xff] %vm2720, %v2516
      %2743 = vst.msk [vmem:[#allocation2 + $0xb0] sm:$0xff] %vm2720, %v2517
      %2744 = vst.msk [vmem:[#allocation2 + $0xb8] sm:$0xff] %vm2720, %v2518
      %2745 = vst.msk [vmem:[#allocation2 + $0xc0] sm:$0xff] %vm2720, %v2519
      %2746 = vst.msk [vmem:[#allocation2 + $0xc8] sm:$0xff] %vm2720, %v2520
      %2747 = vst.msk [vmem:[#allocation2 + $0xd0] sm:$0xff] %vm2720, %v2521
      %2748 = vst.msk [vmem:[#allocation2 + $0xd8] sm:$0xff] %vm2720, %v2522
      %2749 = vst.msk [vmem:[#allocation2 + $0xe0] sm:$0xff] %vm2720, %v2523
      %2750 = vst.msk [vmem:[#allocation2 + $0xe8] sm:$0xff] %vm2720, %v2524
      %2751 = vst.msk [vmem:[#allocation2 + $0xf0] sm:$0xff] %vm2720, %v2525
      %2752 = vst.msk [vmem:[#allocation2 + $0xf8] sm:$0xff] %vm2720, %v2526
      %v2753 = vld [vmem:[#allocation2] sm:$0xff]
      %v2754 = vld [vmem:[#allocation2 + $0x8] sm:$0xff]
      %v2755 = vld [vmem:[#allocation2 + $0x10] sm:$0xff]
      %v2756 = vld [vmem:[#allocation2 + $0x18] sm:$0xff]
      %v2757 = vld [vmem:[#allocation2 + $0x20] sm:$0xff]
      %v2758 = vld [vmem:[#allocation2 + $0x28] sm:$0xff]
      %v2759 = vld [vmem:[#allocation2 + $0x30] sm:$0xff]
      %v2760 = vld [vmem:[#allocation2 + $0x38] sm:$0xff]
      %v2761 = vld [vmem:[#allocation2 + $0x40] sm:$0xff]
      %v2762 = vld [vmem:[#allocation2 + $0x48] sm:$0xff]
      %v2763 = vld [vmem:[#allocation2 + $0x50] sm:$0xff]
      %v2764 = vld [vmem:[#allocation2 + $0x58] sm:$0xff]
      %v2765 = vld [vmem:[#allocation2 + $0x60] sm:$0xff]
      %v2766 = vld [vmem:[#allocation2 + $0x68] sm:$0xff]
      %v2767 = vld [vmem:[#allocation2 + $0x70] sm:$0xff]
      %v2768 = vld [vmem:[#allocation2 + $0x78] sm:$0xff]
      %v2769 = vld [vmem:[#allocation2 + $0x80] sm:$0xff]
      %v2770 = vld [vmem:[#allocation2 + $0x88] sm:$0xff]
      %v2771 = vld [vmem:[#allocation2 + $0x90] sm:$0xff]
      %v2772 = vld [vmem:[#allocation2 + $0x98] sm:$0xff]
      %v2773 = vld [vmem:[#allocation2 + $0xa0] sm:$0xff]
      %v2774 = vld [vmem:[#allocation2 + $0xa8] sm:$0xff]
      %v2775 = vld [vmem:[#allocation2 + $0xb0] sm:$0xff]
      %v2776 = vld [vmem:[#allocation2 + $0xb8] sm:$0xff]
      %v2777 = vld [vmem:[#allocation2 + $0xc0] sm:$0xff]
      %v2778 = vld [vmem:[#allocation2 + $0xc8] sm:$0xff]
      %v2779 = vld [vmem:[#allocation2 + $0xd0] sm:$0xff]
      %v2780 = vld [vmem:[#allocation2 + $0xd8] sm:$0xff]
      %v2781 = vld [vmem:[#allocation2 + $0xe0] sm:$0xff]
      %v2782 = vld [vmem:[#allocation2 + $0xe8] sm:$0xff]
      %v2783 = vld [vmem:[#allocation2 + $0xf0] sm:$0xff]
      %v2784 = vld [vmem:[#allocation2 + $0xf8] sm:$0xff]
      %v2785 = vld [vmem:[%s1 + $0x90] sm:$0xff]
      %v2786 = vld [vmem:[%s1 + $0xa0] sm:$0xff]
      %v2787 = vld [vmem:[%s1 + $0xb0] sm:$0xff]
      %v2788 = vld [vmem:[%s1 + $0xc0] sm:$0xff]
      %v2789 = vld [vmem:[%s1 + $0xd0] sm:$0xff]
      %v2790 = vld [vmem:[%s1 + $0xe0] sm:$0xff]
      %v2791 = vld [vmem:[%s1 + $0xf0] sm:$0xff]
      %v2792 = vld [vmem:[%s1 + $0x100] sm:$0xff]
      %v2793 = vld [vmem:[%s1 + $0x110] sm:$0xff]
      %v2794 = vld [vmem:[%s1 + $0x120] sm:$0xff]
      %v2795 = vld [vmem:[%s1 + $0x130] sm:$0xff]
      %v2796 = vld [vmem:[%s1 + $0x140] sm:$0xff]
      %v2797 = vld [vmem:[%s1 + $0x150] sm:$0xff]
      %v2798 = vld [vmem:[%s1 + $0x160] sm:$0xff]
      %v2799 = vld [vmem:[%s1 + $0x170] sm:$0xff]
      %v2800 = vld [vmem:[%s1 + $0x180] sm:$0xff]
      %v2801 = vld [vmem:[%s2 + $0x3] sm:$0x1]
      %v2803 = vlaneseq
      %v2804 = vshrl.u32 %v2803, 7
      %v2805 = vsub.s32 0, %v2804
      %v2806 = vrot.slane %v2801, %v2805
      %2807 = vrot.lane.b32.xlu0 %v2806, 32
      %v2808 = vpop.permute.xlu0 %2807
      %2810 = vmatprep.subr.mxu0 0.0
      %2811 = vmatpush1.msra.mxu0 %v2785
      %2812 = vmatprep.subr.mxu0 0.0
      %2813 = vmatpush1.msra.mxu0 %v2786
      %2814 = vmatprep.subr.mxu0 0.0
      %2815 = vmatpush1.msra.mxu0 %v2787
      %2816 = vmatprep.subr.mxu0 0.0
      %2817 = vmatpush1.msra.mxu0 %v2788
      %2818 = vmatprep.subr.mxu0 0.0
      %2819 = vmatpush1.msra.mxu0 %v2789
      %2820 = vmatprep.subr.mxu0 0.0
      %2821 = vmatpush1.msra.mxu0 %v2790
      %2822 = vmatprep.subr.mxu0 0.0
      %2823 = vmatpush1.msra.mxu0 %v2791
      %2824 = vmatprep.subr.mxu0 0.0
      %2825 = vmatpush1.msra.mxu0 %v2792
      %2826 = vmatprep.subr.mxu0 0.0
      %2827 = vmatpush1.msra.mxu0 %v2793
      %2828 = vmatprep.subr.mxu0 0.0
      %2829 = vmatpush1.msra.mxu0 %v2794
      %2830 = vmatprep.subr.mxu0 0.0
      %2831 = vmatpush1.msra.mxu0 %v2795
      %2832 = vmatprep.subr.mxu0 0.0
      %2833 = vmatpush1.msra.mxu0 %v2796
      %2834 = vmatprep.subr.mxu0 0.0
      %2835 = vmatpush1.msra.mxu0 %v2797
      %2836 = vmatprep.subr.mxu0 0.0
      %2837 = vmatpush1.msra.mxu0 %v2798
      %2838 = vmatprep.subr.mxu0 0.0
      %2839 = vmatpush1.msra.mxu0 %v2799
      %2840 = vmatprep.subr.mxu0 0.0
      %2841 = vmatpush1.msra.mxu0 %v2800
      %2842 = vmatprep.subr.mxu0 0.0
      %2843 = vmatpush1.msra.mxu0 0.0
      %2844 = vmatprep.subr.mxu0 0.0
      %2845 = vmatpush1.msra.mxu0 0.0
      %2846 = vmatprep.subr.mxu0 0.0
      %2847 = vmatpush1.msra.mxu0 0.0
      %2848 = vmatprep.subr.mxu0 0.0
      %2849 = vmatpush1.msra.mxu0 0.0
      %2850 = vmatprep.subr.mxu0 0.0
      %2851 = vmatpush1.msra.mxu0 0.0
      %2852 = vmatprep.subr.mxu0 0.0
      %2853 = vmatpush1.msra.mxu0 0.0
      %2854 = vmatprep.subr.mxu0 0.0
      %2855 = vmatpush1.msra.mxu0 0.0
      %2856 = vmatprep.subr.mxu0 0.0
      %2857 = vmatpush1.msra.mxu0 0.0
      %2858 = vmatprep.subr.mxu0 0.0
      %2859 = vmatpush1.msra.mxu0 0.0
      %2860 = vmatprep.subr.mxu0 0.0
      %2861 = vmatpush1.msra.mxu0 0.0
      %2862 = vmatprep.subr.mxu0 0.0
      %2863 = vmatpush1.msra.mxu0 0.0
      %2864 = vmatprep.subr.mxu0 0.0
      %2865 = vmatpush1.msra.mxu0 0.0
      %2866 = vmatprep.subr.mxu0 0.0
      %2867 = vmatpush1.msra.mxu0 0.0
      %2868 = vmatprep.subr.mxu0 0.0
      %2869 = vmatpush1.msra.mxu0 0.0
      %2870 = vmatprep.subr.mxu0 0.0
      %2871 = vmatpush1.msra.mxu0 0.0
      %2872 = vmatprep.subr.mxu0 0.0
      %2873 = vmatpush1.msra.mxu0 0.0
      %2874 = vmatprep.mubr.f32.mxu0 0.0
      %2875 = vmatmul.mubr.f32.gmra.mrb[0].mxu0 %v2753
      %v2876 = vpop.f32.mrb[0].mxu0
      %v2877 = vadd.f32 %v2808, %v2876
      %v2878 = vpop.f32.mrb[0].mxu0
      %2879 = vmatprep.mubr.f32.mxu0 0.0
      %2880 = vmatmul.mubr.f32.gmra.mrb[0].mxu0 %v2754
      %v2881 = vpop.f32.mrb[0].mxu0
      %v2882 = vadd.f32 %v2808, %v2881
      %v2883 = vpop.f32.mrb[0].mxu0
      %2884 = vmatprep.mubr.f32.mxu0 0.0
      %2885 = vmatmul.mubr.f32.gmra.mrb[0].mxu0 %v2755
      %v2886 = vpop.f32.mrb[0].mxu0
      %v2887 = vadd.f32 %v2808, %v2886
      %v2888 = vpop.f32.mrb[0].mxu0
      %2889 = vmatprep.mubr.f32.mxu0 0.0
      %2890 = vmatmul.mubr.f32.gmra.mrb[0].mxu0 %v2756
      %v2891 = vpop.f32.mrb[0].mxu0
      %v2892 = vadd.f32 %v2808, %v2891
      %v2893 = vpop.f32.mrb[0].mxu0
      %2894 = vmatprep.mubr.f32.mxu0 0.0
      %2895 = vmatmul.mubr.f32.gmra.mrb[0].mxu0 %v2757
      %v2896 = vpop.f32.mrb[0].mxu0
      %v2897 = vadd.f32 %v2808, %v2896
      %v2898 = vpop.f32.mrb[0].mxu0
      %2899 = vmatprep.mubr.f32.mxu0 0.0
      %2900 = vmatmul.mubr.f32.gmra.mrb[0].mxu0 %v2758
      %v2901 = vpop.f32.mrb[0].mxu0
      %v2902 = vadd.f32 %v2808, %v2901
      %v2903 = vpop.f32.mrb[0].mxu0
      %2904 = vmatprep.mubr.f32.mxu0 0.0
      %2905 = vmatmul.mubr.f32.gmra.mrb[0].mxu0 %v2759
      %v2906 = vpop.f32.mrb[0].mxu0
      %v2907 = vadd.f32 %v2808, %v2906
      %v2908 = vpop.f32.mrb[0].mxu0
      %2909 = vmatprep.mubr.f32.mxu0 0.0
      %2910 = vmatmul.mubr.f32.gmra.mrb[0].mxu0 %v2760
      %v2911 = vpop.f32.mrb[0].mxu0
      %v2912 = vadd.f32 %v2808, %v2911
      %v2913 = vpop.f32.mrb[0].mxu0
      %2914 = vmatprep.mubr.f32.mxu0 0.0
      %2915 = vmatmul.mubr.f32.gmra.mrb[0].mxu0 %v2761
      %v2916 = vpop.f32.mrb[0].mxu0
      %v2917 = vadd.f32 %v2808, %v2916
      %v2918 = vpop.f32.mrb[0].mxu0
      %2919 = vmatprep.mubr.f32.mxu0 0.0
      %2920 = vmatmul.mubr.f32.gmra.mrb[0].mxu0 %v2762
      %v2921 = vpop.f32.mrb[0].mxu0
      %v2922 = vadd.f32 %v2808, %v2921
      %v2923 = vpop.f32.mrb[0].mxu0
      %2924 = vmatprep.mubr.f32.mxu0 0.0
      %2925 = vmatmul.mubr.f32.gmra.mrb[0].mxu0 %v2763
      %v2926 = vpop.f32.mrb[0].mxu0
      %v2927 = vadd.f32 %v2808, %v2926
      %v2928 = vpop.f32.mrb[0].mxu0
      %2929 = vmatprep.mubr.f32.mxu0 0.0
      %2930 = vmatmul.mubr.f32.gmra.mrb[0].mxu0 %v2764
      %v2931 = vpop.f32.mrb[0].mxu0
      %v2932 = vadd.f32 %v2808, %v2931
      %v2933 = vpop.f32.mrb[0].mxu0
      %2934 = vmatprep.mubr.f32.mxu0 0.0
      %2935 = vmatmul.mubr.f32.gmra.mrb[0].mxu0 %v2765
      %v2936 = vpop.f32.mrb[0].mxu0
      %v2937 = vadd.f32 %v2808, %v2936
      %v2938 = vpop.f32.mrb[0].mxu0
      %2939 = vmatprep.mubr.f32.mxu0 0.0
      %2940 = vmatmul.mubr.f32.gmra.mrb[0].mxu0 %v2766
      %v2941 = vpop.f32.mrb[0].mxu0
      %v2942 = vadd.f32 %v2808, %v2941
      %v2943 = vpop.f32.mrb[0].mxu0
      %2944 = vmatprep.mubr.f32.mxu0 0.0
      %2945 = vmatmul.mubr.f32.gmra.mrb[0].mxu0 %v2767
      %v2946 = vpop.f32.mrb[0].mxu0
      %v2947 = vadd.f32 %v2808, %v2946
      %v2948 = vpop.f32.mrb[0].mxu0
      %2949 = vmatprep.mubr.f32.mxu0 0.0
      %2950 = vmatmul.mubr.f32.gmra.mrb[0].mxu0 %v2768
      %v2951 = vpop.f32.mrb[0].mxu0
      %v2952 = vadd.f32 %v2808, %v2951
      %v2953 = vpop.f32.mrb[0].mxu0
      %2954 = vmatprep.mubr.f32.mxu0 0.0
      %2955 = vmatmul.mubr.f32.gmra.mrb[0].mxu0 %v2769
      %v2956 = vpop.f32.mrb[0].mxu0
      %v2957 = vadd.f32 %v2808, %v2956
      %v2958 = vpop.f32.mrb[0].mxu0
      %2959 = vmatprep.mubr.f32.mxu0 0.0
      %2960 = vmatmul.mubr.f32.gmra.mrb[0].mxu0 %v2770
      %v2961 = vpop.f32.mrb[0].mxu0
      %v2962 = vadd.f32 %v2808, %v2961
      %v2963 = vpop.f32.mrb[0].mxu0
      %2964 = vmatprep.mubr.f32.mxu0 0.0
      %2965 = vmatmul.mubr.f32.gmra.mrb[0].mxu0 %v2771
      %v2966 = vpop.f32.mrb[0].mxu0
      %v2967 = vadd.f32 %v2808, %v2966
      %v2968 = vpop.f32.mrb[0].mxu0
      %2969 = vmatprep.mubr.f32.mxu0 0.0
      %2970 = vmatmul.mubr.f32.gmra.mrb[0].mxu0 %v2772
      %v2971 = vpop.f32.mrb[0].mxu0
      %v2972 = vadd.f32 %v2808, %v2971
      %v2973 = vpop.f32.mrb[0].mxu0
      %2974 = vmatprep.mubr.f32.mxu0 0.0
      %2975 = vmatmul.mubr.f32.gmra.mrb[0].mxu0 %v2773
      %v2976 = vpop.f32.mrb[0].mxu0
      %v2977 = vadd.f32 %v2808, %v2976
      %v2978 = vpop.f32.mrb[0].mxu0
      %2979 = vmatprep.mubr.f32.mxu0 0.0
      %2980 = vmatmul.mubr.f32.gmra.mrb[0].mxu0 %v2774
      %v2981 = vpop.f32.mrb[0].mxu0
      %v2982 = vadd.f32 %v2808, %v2981
      %v2983 = vpop.f32.mrb[0].mxu0
      %2984 = vmatprep.mubr.f32.mxu0 0.0
      %2985 = vmatmul.mubr.f32.gmra.mrb[0].mxu0 %v2775
      %v2986 = vpop.f32.mrb[0].mxu0
      %v2987 = vadd.f32 %v2808, %v2986
      %v2988 = vpop.f32.mrb[0].mxu0
      %2989 = vmatprep.mubr.f32.mxu0 0.0
      %2990 = vmatmul.mubr.f32.gmra.mrb[0].mxu0 %v2776
      %v2991 = vpop.f32.mrb[0].mxu0
      %v2992 = vadd.f32 %v2808, %v2991
      %v2993 = vpop.f32.mrb[0].mxu0
      %2994 = vmatprep.mubr.f32.mxu0 0.0
      %2995 = vmatmul.mubr.f32.gmra.mrb[0].mxu0 %v2777
      %v2996 = vpop.f32.mrb[0].mxu0
      %v2997 = vadd.f32 %v2808, %v2996
      %v2998 = vpop.f32.mrb[0].mxu0
      %2999 = vmatprep.mubr.f32.mxu0 0.0
      %3000 = vmatmul.mubr.f32.gmra.mrb[0].mxu0 %v2778
      %v3001 = vpop.f32.mrb[0].mxu0
      %v3002 = vadd.f32 %v2808, %v3001
      %v3003 = vpop.f32.mrb[0].mxu0
      %3004 = vmatprep.mubr.f32.mxu0 0.0
      %3005 = vmatmul.mubr.f32.gmra.mrb[0].mxu0 %v2779
      %v3006 = vpop.f32.mrb[0].mxu0
      %v3007 = vadd.f32 %v2808, %v3006
      %v3008 = vpop.f32.mrb[0].mxu0
      %3009 = vmatprep.mubr.f32.mxu0 0.0
      %3010 = vmatmul.mubr.f32.gmra.mrb[0].mxu0 %v2780
      %v3011 = vpop.f32.mrb[0].mxu0
      %v3012 = vadd.f32 %v2808, %v3011
      %v3013 = vpop.f32.mrb[0].mxu0
      %3014 = vmatprep.mubr.f32.mxu0 0.0
      %3015 = vmatmul.mubr.f32.gmra.mrb[0].mxu0 %v2781
      %v3016 = vpop.f32.mrb[0].mxu0
      %v3017 = vadd.f32 %v2808, %v3016
      %v3018 = vpop.f32.mrb[0].mxu0
      %3019 = vmatprep.mubr.f32.mxu0 0.0
      %3020 = vmatmul.mubr.f32.gmra.mrb[0].mxu0 %v2782
      %v3021 = vpop.f32.mrb[0].mxu0
      %v3022 = vadd.f32 %v2808, %v3021
      %v3023 = vpop.f32.mrb[0].mxu0
      %3024 = vmatprep.mubr.f32.mxu0 0.0
      %3025 = vmatmul.mubr.f32.gmra.mrb[0].mxu0 %v2783
      %v3026 = vpop.f32.mrb[0].mxu0
      %v3027 = vadd.f32 %v2808, %v3026
      %v3028 = vpop.f32.mrb[0].mxu0
      %3029 = vmatprep.mubr.f32.mxu0 0.0
      %3030 = vmatmul.mubr.f32.gmra.mrb[0].mxu0 %v2784
      %v3031 = vpop.f32.mrb[0].mxu0
      %v3032 = vadd.f32 %v2808, %v3031
      %v3033 = vpop.f32.mrb[0].mxu0
      %3034 = vdwg.mxu0
      %v3035 = vmax.f32 %v2877, 0.0
      %v3036 = vmax.f32 %v2882, 0.0
      %v3037 = vmax.f32 %v2887, 0.0
      %v3038 = vmax.f32 %v2892, 0.0
      %v3039 = vmax.f32 %v2897, 0.0
      %v3040 = vmax.f32 %v2902, 0.0
      %v3041 = vmax.f32 %v2907, 0.0
      %v3042 = vmax.f32 %v2912, 0.0
      %v3043 = vmax.f32 %v2917, 0.0
      %v3044 = vmax.f32 %v2922, 0.0
      %v3045 = vmax.f32 %v2927, 0.0
      %v3046 = vmax.f32 %v2932, 0.0
      %v3047 = vmax.f32 %v2937, 0.0
      %v3048 = vmax.f32 %v2942, 0.0
      %v3049 = vmax.f32 %v2947, 0.0
      %v3050 = vmax.f32 %v2952, 0.0
      %v3051 = vmax.f32 %v2957, 0.0
      %v3052 = vmax.f32 %v2962, 0.0
      %v3053 = vmax.f32 %v2967, 0.0
      %v3054 = vmax.f32 %v2972, 0.0
      %v3055 = vmax.f32 %v2977, 0.0
      %v3056 = vmax.f32 %v2982, 0.0
      %v3057 = vmax.f32 %v2987, 0.0
      %v3058 = vmax.f32 %v2992, 0.0
      %v3059 = vmax.f32 %v2997, 0.0
      %v3060 = vmax.f32 %v3002, 0.0
      %v3061 = vmax.f32 %v3007, 0.0
      %v3062 = vmax.f32 %v3012, 0.0
      %v3063 = vmax.f32 %v3017, 0.0
      %v3064 = vmax.f32 %v3022, 0.0
      %v3065 = vmax.f32 %v3027, 0.0
      %v3066 = vmax.f32 %v3032, 0.0
      %v3067 = vld [vmem:[%s1 + $0x90] sm:$0xff]
      %v3068 = vld [vmem:[%s1 + $0xa0] sm:$0xff]
      %v3069 = vld [vmem:[%s1 + $0xb0] sm:$0xff]
      %v3070 = vld [vmem:[%s1 + $0xc0] sm:$0xff]
      %v3071 = vld [vmem:[%s2 + $0x4] sm:$0x1]
      %v3073 = vlaneseq
      %v3074 = vshrl.u32 %v3073, 7
      %v3075 = vsub.s32 0, %v3074
      %v3076 = vrot.slane %v3071, %v3075
      %3082 = vrot.lane.b32.xlu0 %v3067, 64
      %v3083 = vpop.permute.xlu0 %3082
      %3084 = vrot.lane.b32.xlu0 %v3068, 64
      %v3085 = vpop.permute.xlu0 %3084
      %3086 = vrot.lane.b32.xlu0 %v3069, 64
      %v3087 = vpop.permute.xlu0 %3086
      %3088 = vrot.lane.b32.xlu0 %v3070, 64
      %v3089 = vpop.permute.xlu0 %3088
      %v3095 = vsel %vm1369, %v3035, 0
      %v3098 = vsel %vm1369, %v3036, 0
      %v3101 = vsel %vm1369, %v3037, 0
      %v3104 = vsel %vm1369, %v3038, 0
      %v3107 = vsel %vm1369, %v3039, 0
      %v3110 = vsel %vm1369, %v3040, 0
      %v3113 = vsel %vm1369, %v3041, 0
      %v3116 = vsel %vm1369, %v3042, 0
      %v3119 = vsel %vm1369, %v3043, 0
      %v3122 = vsel %vm1369, %v3044, 0
      %v3125 = vsel %vm1369, %v3045, 0
      %v3128 = vsel %vm1369, %v3046, 0
      %v3131 = vsel %vm1369, %v3047, 0
      %v3134 = vsel %vm1369, %v3048, 0
      %v3137 = vsel %vm1369, %v3049, 0
      %v3140 = vsel %vm1369, %v3050, 0
      %v3143 = vsel %vm1369, %v3051, 0
      %v3146 = vsel %vm1369, %v3052, 0
      %v3149 = vsel %vm1369, %v3053, 0
      %v3152 = vsel %vm1369, %v3054, 0
      %v3155 = vsel %vm1369, %v3055, 0
      %v3158 = vsel %vm1369, %v3056, 0
      %v3161 = vsel %vm1369, %v3057, 0
      %v3164 = vsel %vm1369, %v3058, 0
      %v3167 = vsel %vm1369, %v3059, 0
      %v3170 = vsel %vm1369, %v3060, 0
      %v3173 = vsel %vm1369, %v3061, 0
      %v3176 = vsel %vm1369, %v3062, 0
      %v3179 = vsel %vm1369, %v3063, 0
      %v3182 = vsel %vm1369, %v3064, 0
      %v3185 = vsel %vm1369, %v3065, 0
      %v3188 = vsel %vm1369, %v3066, 0
      %3190 = vmatprep.subr.mxu0 0.0
      %3191 = vmatpush1.msra.mxu0 %v3083
      %3192 = vmatprep.subr.mxu0 0.0
      %3193 = vmatpush1.msra.mxu0 %v3085
      %3194 = vmatprep.subr.mxu0 0.0
      %3195 = vmatpush1.msra.mxu0 %v3087
      %3196 = vmatprep.subr.mxu0 0.0
      %3197 = vmatpush1.msra.mxu0 %v3089
      %3198 = vmatprep.subr.mxu0 0.0
      %3199 = vmatpush1.msra.mxu0 0.0
      %3200 = vmatprep.subr.mxu0 0.0
      %3201 = vmatpush1.msra.mxu0 0.0
      %3202 = vmatprep.subr.mxu0 0.0
      %3203 = vmatpush1.msra.mxu0 0.0
      %3204 = vmatprep.subr.mxu0 0.0
      %3205 = vmatpush1.msra.mxu0 0.0
      %3206 = vmatprep.subr.mxu0 0.0
      %3207 = vmatpush1.msra.mxu0 0.0
      %3208 = vmatprep.subr.mxu0 0.0
      %3209 = vmatpush1.msra.mxu0 0.0
      %3210 = vmatprep.subr.mxu0 0.0
      %3211 = vmatpush1.msra.mxu0 0.0
      %3212 = vmatprep.subr.mxu0 0.0
      %3213 = vmatpush1.msra.mxu0 0.0
      %3214 = vmatprep.subr.mxu0 0.0
      %3215 = vmatpush1.msra.mxu0 0.0
      %3216 = vmatprep.subr.mxu0 0.0
      %3217 = vmatpush1.msra.mxu0 0.0
      %3218 = vmatprep.subr.mxu0 0.0
      %3219 = vmatpush1.msra.mxu0 0.0
      %3220 = vmatprep.subr.mxu0 0.0
      %3221 = vmatpush1.msra.mxu0 0.0
      %3222 = vmatprep.subr.mxu0 0.0
      %3223 = vmatpush1.msra.mxu0 0.0
      %3224 = vmatprep.subr.mxu0 0.0
      %3225 = vmatpush1.msra.mxu0 0.0
      %3226 = vmatprep.subr.mxu0 0.0
      %3227 = vmatpush1.msra.mxu0 0.0
      %3228 = vmatprep.subr.mxu0 0.0
      %3229 = vmatpush1.msra.mxu0 0.0
      %3230 = vmatprep.subr.mxu0 0.0
      %3231 = vmatpush1.msra.mxu0 0.0
      %3232 = vmatprep.subr.mxu0 0.0
      %3233 = vmatpush1.msra.mxu0 0.0
      %3234 = vmatprep.subr.mxu0 0.0
      %3235 = vmatpush1.msra.mxu0 0.0
      %3236 = vmatprep.subr.mxu0 0.0
      %3237 = vmatpush1.msra.mxu0 0.0
      %3238 = vmatprep.subr.mxu0 0.0
      %3239 = vmatpush1.msra.mxu0 0.0
      %3240 = vmatprep.subr.mxu0 0.0
      %3241 = vmatpush1.msra.mxu0 0.0
      %3242 = vmatprep.subr.mxu0 0.0
      %3243 = vmatpush1.msra.mxu0 0.0
      %3244 = vmatprep.subr.mxu0 0.0
      %3245 = vmatpush1.msra.mxu0 0.0
      %3246 = vmatprep.subr.mxu0 0.0
      %3247 = vmatpush1.msra.mxu0 0.0
      %3248 = vmatprep.subr.mxu0 0.0
      %3249 = vmatpush1.msra.mxu0 0.0
      %3250 = vmatprep.subr.mxu0 0.0
      %3251 = vmatpush1.msra.mxu0 0.0
      %3252 = vmatprep.subr.mxu0 0.0
      %3253 = vmatpush1.msra.mxu0 0.0
      %3254 = vmatprep.mubr.f32.mxu0 0.0
      %3255 = vmatmul.mubr.f32.gmra.mrb[0].mxu0 %v3095
      %v3256 = vpop.f32.mrb[0].mxu0
      %v3257 = vadd.f32 %v3076, %v3256
      %v3258 = vpop.f32.mrb[0].mxu0
      %3259 = vmatprep.mubr.f32.mxu0 0.0
      %3260 = vmatmul.mubr.f32.gmra.mrb[0].mxu0 %v3098
      %v3261 = vpop.f32.mrb[0].mxu0
      %v3262 = vadd.f32 %v3076, %v3261
      %v3263 = vpop.f32.mrb[0].mxu0
      %3264 = vmatprep.mubr.f32.mxu0 0.0
      %3265 = vmatmul.mubr.f32.gmra.mrb[0].mxu0 %v3101
      %v3266 = vpop.f32.mrb[0].mxu0
      %v3267 = vadd.f32 %v3076, %v3266
      %v3268 = vpop.f32.mrb[0].mxu0
      %3269 = vmatprep.mubr.f32.mxu0 0.0
      %3270 = vmatmul.mubr.f32.gmra.mrb[0].mxu0 %v3104
      %v3271 = vpop.f32.mrb[0].mxu0
      %v3272 = vadd.f32 %v3076, %v3271
      %v3273 = vpop.f32.mrb[0].mxu0
      %3274 = vmatprep.mubr.f32.mxu0 0.0
      %3275 = vmatmul.mubr.f32.gmra.mrb[0].mxu0 %v3107
      %v3276 = vpop.f32.mrb[0].mxu0
      %v3277 = vadd.f32 %v3076, %v3276
      %v3278 = vpop.f32.mrb[0].mxu0
      %3279 = vmatprep.mubr.f32.mxu0 0.0
      %3280 = vmatmul.mubr.f32.gmra.mrb[0].mxu0 %v3110
      %v3281 = vpop.f32.mrb[0].mxu0
      %v3282 = vadd.f32 %v3076, %v3281
      %v3283 = vpop.f32.mrb[0].mxu0
      %3284 = vmatprep.mubr.f32.mxu0 0.0
      %3285 = vmatmul.mubr.f32.gmra.mrb[0].mxu0 %v3113
      %v3286 = vpop.f32.mrb[0].mxu0
      %v3287 = vadd.f32 %v3076, %v3286
      %v3288 = vpop.f32.mrb[0].mxu0
      %3289 = vmatprep.mubr.f32.mxu0 0.0
      %3290 = vmatmul.mubr.f32.gmra.mrb[0].mxu0 %v3116
      %v3291 = vpop.f32.mrb[0].mxu0
      %v3292 = vadd.f32 %v3076, %v3291
      %v3293 = vpop.f32.mrb[0].mxu0
      %3294 = vmatprep.mubr.f32.mxu0 0.0
      %3295 = vmatmul.mubr.f32.gmra.mrb[0].mxu0 %v3119
      %v3296 = vpop.f32.mrb[0].mxu0
      %v3297 = vadd.f32 %v3076, %v3296
      %v3298 = vpop.f32.mrb[0].mxu0
      %3299 = vmatprep.mubr.f32.mxu0 0.0
      %3300 = vmatmul.mubr.f32.gmra.mrb[0].mxu0 %v3122
      %v3301 = vpop.f32.mrb[0].mxu0
      %v3302 = vadd.f32 %v3076, %v3301
      %v3303 = vpop.f32.mrb[0].mxu0
      %3304 = vmatprep.mubr.f32.mxu0 0.0
      %3305 = vmatmul.mubr.f32.gmra.mrb[0].mxu0 %v3125
      %v3306 = vpop.f32.mrb[0].mxu0
      %v3307 = vadd.f32 %v3076, %v3306
      %v3308 = vpop.f32.mrb[0].mxu0
      %3309 = vmatprep.mubr.f32.mxu0 0.0
      %3310 = vmatmul.mubr.f32.gmra.mrb[0].mxu0 %v3128
      %v3311 = vpop.f32.mrb[0].mxu0
      %v3312 = vadd.f32 %v3076, %v3311
      %v3313 = vpop.f32.mrb[0].mxu0
      %3314 = vmatprep.mubr.f32.mxu0 0.0
      %3315 = vmatmul.mubr.f32.gmra.mrb[0].mxu0 %v3131
      %v3316 = vpop.f32.mrb[0].mxu0
      %v3317 = vadd.f32 %v3076, %v3316
      %v3318 = vpop.f32.mrb[0].mxu0
      %3319 = vmatprep.mubr.f32.mxu0 0.0
      %3320 = vmatmul.mubr.f32.gmra.mrb[0].mxu0 %v3134
      %v3321 = vpop.f32.mrb[0].mxu0
      %v3322 = vadd.f32 %v3076, %v3321
      %v3323 = vpop.f32.mrb[0].mxu0
      %3324 = vmatprep.mubr.f32.mxu0 0.0
      %3325 = vmatmul.mubr.f32.gmra.mrb[0].mxu0 %v3137
      %v3326 = vpop.f32.mrb[0].mxu0
      %v3327 = vadd.f32 %v3076, %v3326
      %v3328 = vpop.f32.mrb[0].mxu0
      %3329 = vmatprep.mubr.f32.mxu0 0.0
      %3330 = vmatmul.mubr.f32.gmra.mrb[0].mxu0 %v3140
      %v3331 = vpop.f32.mrb[0].mxu0
      %v3332 = vadd.f32 %v3076, %v3331
      %v3333 = vpop.f32.mrb[0].mxu0
      %3334 = vmatprep.mubr.f32.mxu0 0.0
      %3335 = vmatmul.mubr.f32.gmra.mrb[0].mxu0 %v3143
      %v3336 = vpop.f32.mrb[0].mxu0
      %v3337 = vadd.f32 %v3076, %v3336
      %v3338 = vpop.f32.mrb[0].mxu0
      %3339 = vmatprep.mubr.f32.mxu0 0.0
      %3340 = vmatmul.mubr.f32.gmra.mrb[0].mxu0 %v3146
      %v3341 = vpop.f32.mrb[0].mxu0
      %v3342 = vadd.f32 %v3076, %v3341
      %v3343 = vpop.f32.mrb[0].mxu0
      %3344 = vmatprep.mubr.f32.mxu0 0.0
      %3345 = vmatmul.mubr.f32.gmra.mrb[0].mxu0 %v3149
      %v3346 = vpop.f32.mrb[0].mxu0
      %v3347 = vadd.f32 %v3076, %v3346
      %v3348 = vpop.f32.mrb[0].mxu0
      %3349 = vmatprep.mubr.f32.mxu0 0.0
      %3350 = vmatmul.mubr.f32.gmra.mrb[0].mxu0 %v3152
      %v3351 = vpop.f32.mrb[0].mxu0
      %v3352 = vadd.f32 %v3076, %v3351
      %v3353 = vpop.f32.mrb[0].mxu0
      %3354 = vmatprep.mubr.f32.mxu0 0.0
      %3355 = vmatmul.mubr.f32.gmra.mrb[0].mxu0 %v3155
      %v3356 = vpop.f32.mrb[0].mxu0
      %v3357 = vadd.f32 %v3076, %v3356
      %v3358 = vpop.f32.mrb[0].mxu0
      %3359 = vmatprep.mubr.f32.mxu0 0.0
      %3360 = vmatmul.mubr.f32.gmra.mrb[0].mxu0 %v3158
      %v3361 = vpop.f32.mrb[0].mxu0
      %v3362 = vadd.f32 %v3076, %v3361
      %v3363 = vpop.f32.mrb[0].mxu0
      %3364 = vmatprep.mubr.f32.mxu0 0.0
      %3365 = vmatmul.mubr.f32.gmra.mrb[0].mxu0 %v3161
      %v3366 = vpop.f32.mrb[0].mxu0
      %v3367 = vadd.f32 %v3076, %v3366
      %v3368 = vpop.f32.mrb[0].mxu0
      %3369 = vmatprep.mubr.f32.mxu0 0.0
      %3370 = vmatmul.mubr.f32.gmra.mrb[0].mxu0 %v3164
      %v3371 = vpop.f32.mrb[0].mxu0
      %v3372 = vadd.f32 %v3076, %v3371
      %v3373 = vpop.f32.mrb[0].mxu0
      %3374 = vmatprep.mubr.f32.mxu0 0.0
      %3375 = vmatmul.mubr.f32.gmra.mrb[0].mxu0 %v3167
      %v3376 = vpop.f32.mrb[0].mxu0
      %v3377 = vadd.f32 %v3076, %v3376
      %v3378 = vpop.f32.mrb[0].mxu0
      %3379 = vmatprep.mubr.f32.mxu0 0.0
      %3380 = vmatmul.mubr.f32.gmra.mrb[0].mxu0 %v3170
      %v3381 = vpop.f32.mrb[0].mxu0
      %v3382 = vadd.f32 %v3076, %v3381
      %v3383 = vpop.f32.mrb[0].mxu0
      %3384 = vmatprep.mubr.f32.mxu0 0.0
      %3385 = vmatmul.mubr.f32.gmra.mrb[0].mxu0 %v3173
      %v3386 = vpop.f32.mrb[0].mxu0
      %v3387 = vadd.f32 %v3076, %v3386
      %v3388 = vpop.f32.mrb[0].mxu0
      %3389 = vmatprep.mubr.f32.mxu0 0.0
      %3390 = vmatmul.mubr.f32.gmra.mrb[0].mxu0 %v3176
      %v3391 = vpop.f32.mrb[0].mxu0
      %v3392 = vadd.f32 %v3076, %v3391
      %v3393 = vpop.f32.mrb[0].mxu0
      %3394 = vmatprep.mubr.f32.mxu0 0.0
      %3395 = vmatmul.mubr.f32.gmra.mrb[0].mxu0 %v3179
      %v3396 = vpop.f32.mrb[0].mxu0
      %v3397 = vadd.f32 %v3076, %v3396
      %v3398 = vpop.f32.mrb[0].mxu0
      %3399 = vmatprep.mubr.f32.mxu0 0.0
      %3400 = vmatmul.mubr.f32.gmra.mrb[0].mxu0 %v3182
      %v3401 = vpop.f32.mrb[0].mxu0
      %v3402 = vadd.f32 %v3076, %v3401
      %v3403 = vpop.f32.mrb[0].mxu0
      %3404 = vmatprep.mubr.f32.mxu0 0.0
      %3405 = vmatmul.mubr.f32.gmra.mrb[0].mxu0 %v3185
      %v3406 = vpop.f32.mrb[0].mxu0
      %v3407 = vadd.f32 %v3076, %v3406
      %v3408 = vpop.f32.mrb[0].mxu0
      %3409 = vmatprep.mubr.f32.mxu0 0.0
      %3410 = vmatmul.mubr.f32.gmra.mrb[0].mxu0 %v3188
      %v3411 = vpop.f32.mrb[0].mxu0
      %v3412 = vadd.f32 %v3076, %v3411
      %v3413 = vpop.f32.mrb[0].mxu0
      %3414 = vdwg.mxu0
      %vm3415 = vcmask 15360
      %3416 = vst.msk [vmem:[%s172] sm:$0xff] %vm3415, %v3257
      %3417 = vst.msk [vmem:[%s172 + $0x8] sm:$0xff] %vm3415, %v3262
      %3418 = vst.msk [vmem:[%s172 + $0x10] sm:$0xff] %vm3415, %v3267
      %3419 = vst.msk [vmem:[%s172 + $0x18] sm:$0xff] %vm3415, %v3272
      %3420 = vst.msk [vmem:[%s172 + $0x20] sm:$0xff] %vm3415, %v3277
      %3421 = vst.msk [vmem:[%s172 + $0x28] sm:$0xff] %vm3415, %v3282
      %3422 = vst.msk [vmem:[%s172 + $0x30] sm:$0xff] %vm3415, %v3287
      %3423 = vst.msk [vmem:[%s172 + $0x38] sm:$0xff] %vm3415, %v3292
      %3424 = vst.msk [vmem:[%s172 + $0x40] sm:$0xff] %vm3415, %v3297
      %3425 = vst.msk [vmem:[%s172 + $0x48] sm:$0xff] %vm3415, %v3302
      %3426 = vst.msk [vmem:[%s172 + $0x50] sm:$0xff] %vm3415, %v3307
      %3427 = vst.msk [vmem:[%s172 + $0x58] sm:$0xff] %vm3415, %v3312
      %3428 = vst.msk [vmem:[%s172 + $0x60] sm:$0xff] %vm3415, %v3317
      %3429 = vst.msk [vmem:[%s172 + $0x68] sm:$0xff] %vm3415, %v3322
      %3430 = vst.msk [vmem:[%s172 + $0x70] sm:$0xff] %vm3415, %v3327
      %3431 = vst.msk [vmem:[%s172 + $0x78] sm:$0xff] %vm3415, %v3332
      %3432 = vst.msk [vmem:[%s172 + $0x80] sm:$0xff] %vm3415, %v3337
      %3433 = vst.msk [vmem:[%s172 + $0x88] sm:$0xff] %vm3415, %v3342
      %3434 = vst.msk [vmem:[%s172 + $0x90] sm:$0xff] %vm3415, %v3347
      %3435 = vst.msk [vmem:[%s172 + $0x98] sm:$0xff] %vm3415, %v3352
      %3436 = vst.msk [vmem:[%s172 + $0xa0] sm:$0xff] %vm3415, %v3357
      %3437 = vst.msk [vmem:[%s172 + $0xa8] sm:$0xff] %vm3415, %v3362
      %3438 = vst.msk [vmem:[%s172 + $0xb0] sm:$0xff] %vm3415, %v3367
      %3439 = vst.msk [vmem:[%s172 + $0xb8] sm:$0xff] %vm3415, %v3372
      %3440 = vst.msk [vmem:[%s172 + $0xc0] sm:$0xff] %vm3415, %v3377
      %3441 = vst.msk [vmem:[%s172 + $0xc8] sm:$0xff] %vm3415, %v3382
      %3442 = vst.msk [vmem:[%s172 + $0xd0] sm:$0xff] %vm3415, %v3387
      %3443 = vst.msk [vmem:[%s172 + $0xd8] sm:$0xff] %vm3415, %v3392
      %3444 = vst.msk [vmem:[%s172 + $0xe0] sm:$0xff] %vm3415, %v3397
      %3445 = vst.msk [vmem:[%s172 + $0xe8] sm:$0xff] %vm3415, %v3402
      %3446 = vst.msk [vmem:[%s172 + $0xf0] sm:$0xff] %vm3415, %v3407
      %3447 = vst.msk [vmem:[%s172 + $0xf8] sm:$0xff] %vm3415, %v3412
      %s3448 = smul.u32 32, %s14
      %p3449 = scmp.lt.s32.totalorder %s3448, 63
      %s3450 = scalar_select %p3449, %s3448, 63
      %s3451 = smul.addr %s3450, 8
      %s3452 = scalar_lea.vmem %s3, %s3451
      // Predicated region
      $region33: #{time_series_lstm_forward.1} parent=31 // pred_check
        %p3453 = pneg %p100
      $region34: #{time_series_lstm_forward.1} parent=31 // pred_check_branch
        %3455 = sbr.rel (%p3453) target = $region36
      $region35: #{time_series_lstm_forward.1} parent=31 // pred_region
        %s3456 = smul.u32 32, %s14
      $region36: #{time_series_lstm_forward.1} parent=31 // pred_fallthru
        _
    $region32: #{time_series_lstm_forward.1} parent=5 // pred_fallthru
      _
    %p3457 = scmp.le.s32.totalorder 2, %s9
    // Predicated region
    $region37: #{time_series_lstm_forward.1} parent=5 // pred_check
      %p3458 = pneg %p3457
    $region38: #{time_series_lstm_forward.1} parent=5 // pred_check_branch
      %3460 = sbr.rel (%p3458) target = $region40
    $region39: #{time_series_lstm_forward.1} parent=5 // pred_region
      %s3461 = ssub.s32 %s9, 2
      // Predicated region
      $region41: #{time_series_lstm_forward.1} parent=39 // pred_check
        %p3462 = pneg %p106
      $region42: #{time_series_lstm_forward.1} parent=39 // pred_check_branch
        %3464 = sbr.rel (%p3462) target = $region44
      $region43: #{time_series_lstm_forward.1} parent=39 // pred_region
        %s3465 = smul.u32 32, %s15
        %p3466 = scmp.lt.s32.totalorder %s3465, 63
        %s3467 = scalar_select %p3466, %s3465, 63
        %s3468 = smul.addr %s3467, 8
        %s3469 = scalar_lea.vmem %s3, %s3468
      $region44: #{time_series_lstm_forward.1} parent=39 // pred_fallthru
        _
    $region40: #{time_series_lstm_forward.1} parent=5 // pred_fallthru
      _
  $region6: #{time_series_lstm_forward.1} parent=0 // loop_footer
    %s13 = sadd.s32 1, %s9
  $region7: #{time_series_lstm_forward.1} parent=0 // loop_footer_branch
    %8 = sbr.rel target = $region3
  $region8: #{time_series_lstm_forward.1} parent=0 // loop_exit
    _

</llo_original>
